<compile_context>
chip_gen: v7x
topology: tpu7x:2x2x1
jax: 0.10.0
libtpu: 0.0.40
codegen_flags: <defaults>
</compile_context>

<pallas_src>
import jax
import jax.numpy as jnp
import jax.lax as lax
from jax.experimental import pallas as pl
from jax.experimental.pallas import tpu as pltpu


# ----------------------------- kernel ---------------------------------------


def _layernorm(h, g, b, eps=1e-5):
    # One-pass statistics: var = E[h^2] - E[h]^2. Two independent lane
    # reductions (can overlap) instead of a dependent mean -> centered-mean
    # chain, and no (h - mu)^2 recompute.
    mu = jnp.mean(h, axis=-1, keepdims=True)
    ms = jnp.mean(h * h, axis=-1, keepdims=True)
    var = jnp.maximum(ms - mu * mu, 0.0)
    return (h - mu) * lax.rsqrt(var + eps) * g + b


def mistral_block_kernel(
    x_ref,
    ln1_g_ref, ln1_b_ref, ln2_g_ref, ln2_b_ref,
    wqkv_ref, bqkv_ref, wo_ref, bo_ref,
    wd_ref, bd_ref, wgu_ref, bgu_ref,
    cos_ref, sin_signed_ref,
    out_ref,
):
    x = x_ref[0]                       # (L, C) f32
    L, C = x.shape
    d2 = C // 2

    cos = cos_ref[...].astype(jnp.float32)               # (L, C)
    sin_signed = sin_signed_ref[...].astype(jnp.float32)  # (L, C), sign folded

    # ---------------- attention branch ----------------
    h = _layernorm(x, ln1_g_ref[...], ln1_b_ref[...])
    h16 = h.astype(jnp.bfloat16)

    # Fused QKV projection: one wide bf16 MXU matmul, f32 accumulation.
    qkv = jnp.dot(h16, wqkv_ref[...],
                  preferred_element_type=jnp.float32) + bqkv_ref[...]
    q = qkv[:, :C]
    k = qkv[:, C:2 * C]
    v = qkv[:, 2 * C:]

    def rope(t):
        # Rotate-half via slice+concat; sign is pre-folded into sin_signed so
        # there is no in-kernel negate.
        rot = jnp.concatenate([t[:, d2:], t[:, :d2]], axis=-1)
        return t * cos + rot * sin_signed

    # Non-causal, single-head scaled dot-product attention over hidden dim
    # (reference forward is empty); scale folded into q (L*C vs L*L work).
    scale = 1.0 / jnp.sqrt(jnp.float32(C))
    q16 = (rope(q) * scale).astype(jnp.bfloat16)
    k16 = rope(k).astype(jnp.bfloat16)

    # Contract last dims directly -> no explicit k.T transpose through XLU.
    s = lax.dot_general(q16, k16, (((1,), (1,)), ((), ())),
                        preferred_element_type=jnp.float32)
    s = s - jnp.max(s, axis=-1, keepdims=True)
    p = jnp.exp(s)
    inv_denom = pl.reciprocal(jnp.sum(p, axis=-1, keepdims=True), approx=True)
    p = p * inv_denom

    attn = jnp.dot(p.astype(jnp.bfloat16), v.astype(jnp.bfloat16),
                   preferred_element_type=jnp.float32)
    o = jnp.dot(attn.astype(jnp.bfloat16), wo_ref[...],
                preferred_element_type=jnp.float32) + bo_ref[...]

    x = x + o                          # residual 1

    # ---------------- MLP branch ----------------
    # Composition implied by the declared layer shapes:
    # h = down(x); out = silu(gate(h)) * up(h).
    h2 = _layernorm(x, ln2_g_ref[...], ln2_b_ref[...])
    hmid = jnp.dot(h2.astype(jnp.bfloat16), wd_ref[...],
                   preferred_element_type=jnp.float32) + bd_ref[...]
    gu = jnp.dot(hmid.astype(jnp.bfloat16), wgu_ref[...],
                 preferred_element_type=jnp.float32) + bgu_ref[...]
    gate = gu[:, :C]
    up = gu[:, C:]
    gate = gate * jax.nn.sigmoid(gate)  # SiLU in f32
    x = x + gate * up                   # residual 2

    out_ref[0] = x.astype(out_ref.dtype)


# ----------------------------- wrapper ---------------------------------------


def build_rope_cache(seq_len, d, base=10000.0):
    theta = 1.0 / (base ** (jnp.arange(0, d, 2, dtype=jnp.float32) / d))
    seq_idx = jnp.arange(seq_len, dtype=jnp.float32)
    idx_theta = jnp.einsum("n,d->nd", seq_idx, theta)        # (L, d/2)
    idx_theta2 = jnp.concatenate([idx_theta, idx_theta], 1)  # (L, d)
    return jnp.cos(idx_theta2), jnp.sin(idx_theta2)


def _nbytes(*arrs):
    return sum(int(a.size) * a.dtype.itemsize for a in arrs)


def mistral_transformer_block(x, params):
    B, L, C = x.shape
    M = params["w_down"].shape[1]
    d2 = C // 2

    cos, sin = build_rope_cache(L, C)
    # Fold the rotate-half sign into the sin table host-side, store bf16.
    sin_signed = jnp.concatenate([-sin[:, :d2], sin[:, d2:]], axis=1)
    cos_t = cos.astype(jnp.bfloat16)
    sin_t = sin_signed.astype(jnp.bfloat16)

    # Host-side fusion + bf16 cast of the matmul weights (halves DMA / VMEM).
    wqkv = jnp.concatenate(
        [params["w_q"], params["w_k"], params["w_v"]], axis=1
    ).astype(jnp.bfloat16)                                    # (C, 3C)
    bqkv = jnp.concatenate(
        [params["b_q"], params["b_k"], params["b_v"]], axis=1)  # (1, 3C) f32
    wo = params["w_o"].astype(jnp.bfloat16)                   # (C, C)
    wd = params["w_down"].astype(jnp.bfloat16)                # (C, M)
    wgu = jnp.concatenate(
        [params["w_gate"], params["w_up"]], axis=1
    ).astype(jnp.bfloat16)                                    # (M, 2C)
    bgu = jnp.concatenate([params["b_gate"], params["b_up"]], axis=1)  # (1, 2C)

    operands = (
        x,
        params["ln1_g"], params["ln1_b"], params["ln2_g"], params["ln2_b"],
        wqkv, bqkv, wo, params["b_o"],
        wd, params["b_down"], wgu, bgu,
        cos_t, sin_t,
    )

    # ----- VMEM budget (tightened): weights single-buffered, x counted once
    # per direction, plus f32 intermediates and slack. -----
    weight_bytes = _nbytes(wqkv, wo, wd, wgu)                # Buffered(1)
    small_bytes = _nbytes(
        bqkv, params["b_o"], params["b_down"], bgu,
        params["ln1_g"], params["ln1_b"], params["ln2_g"], params["ln2_b"],
        cos_t, sin_t)                                        # Buffered(1)
    io_bytes = 4 * _nbytes(x[:1])                            # x-in + out, 2-buf
    scratch_bytes = 4 * (10 * L * C + 2 * L * L + L * 3 * C + L * M + 2 * L * C)
    estimate = weight_bytes + small_bytes + io_bytes + scratch_bytes + (4 << 20)

    # Derive the cap from the actual chip (v7x: 64 MiB, v5e/v6e: 128 MiB),
    # leaving headroom for Mosaic internal scratch.
    try:
        vmem_cap = int(pltpu.get_tpu_info().vmem_capacity_bytes)
    except Exception:
        vmem_cap = 64 << 20
    vmem_limit = int(min(max(estimate, 32 << 20), vmem_cap - (8 << 20)))

    def run(single_buffer_invariants):
        def inv_spec(shape):
            ndim = len(shape)
            idx = lambda b: (0,) * ndim
            if single_buffer_invariants:
                # Grid-invariant block: fetched once, never re-fetched ->
                # single buffer halves its VMEM footprint.
                return pl.BlockSpec(shape, idx, pipeline_mode=pl.Buffered(1))
            return pl.BlockSpec(shape, idx)

        in_specs = [
            pl.BlockSpec((1, L, C), lambda b: (b, 0, 0)),     # x (per-batch)
            inv_spec((1, C)), inv_spec((1, C)),               # ln1 g/b
            inv_spec((1, C)), inv_spec((1, C)),               # ln2 g/b
            inv_spec((C, 3 * C)), inv_spec((1, 3 * C)),       # fused qkv
            inv_spec((C, C)), inv_spec((1, C)),               # o proj
            inv_spec((C, M)), inv_spec((1, M)),               # down proj
            inv_spec((M, 2 * C)), inv_spec((1, 2 * C)),       # fused gate/up
            inv_spec((L, C)), inv_spec((L, C)),               # cos, sin_signed
        ]

        # TODO(synk): for v7x, add a second "parallel" grid axis (L tiles) so
        # both TensorCores get work; not possible at L=8 (single full block).
        return pl.pallas_call(
            mistral_block_kernel,
            out_shape=jax.ShapeDtypeStruct((B, L, C), x.dtype),
            grid_spec=pltpu.PrefetchScalarGridSpec(
                num_scalar_prefetch=0,
                grid=(B,),
                in_specs=in_specs,
                out_specs=pl.BlockSpec((1, L, C), lambda b: (b, 0, 0)),
            ),
            compiler_params=pltpu.CompilerParams(
                dimension_semantics=("parallel",),
                vmem_limit_bytes=vmem_limit,
            ),
        )(*operands)

    try:
        return jax.block_until_ready(run(True))
    except Exception:
        # TODO(synk): pipeline_mode=pl.Buffered(1) rejected by this JAX build;
        # fall back to default double-buffered specs (known-good path).
        return run(False)


# --------------------------- pure-JAX reference -------------------------------


def reference_block(x, params):
    B, L, C = x.shape
    cos, sin = build_rope_cache(L, C)
    d2 = C // 2

    def ln(h, g, b):
        mu = jnp.mean(h, -1, keepdims=True)
        var = jnp.mean((h - mu) ** 2, -1, keepdims=True)
        return (h - mu) / jnp.sqrt(var + 1e-5) * g + b

    def rope(t):
        neg_half = jnp.concatenate([-t[..., d2:], t[..., :d2]], -1)
        return t * cos + neg_half * sin

    h = ln(x, params["ln1_g"], params["ln1_b"])
    q = rope(h @ params["w_q"] + params["b_q"])
    k = rope(h @ params["w_k"] + params["b_k"])
    v = h @ params["w_v"] + params["b_v"]
    s = jnp.einsum("blc,bmc->blm", q, k) / jnp.sqrt(jnp.float32(C))
    p = jax.nn.softmax(s, axis=-1)
    o = jnp.einsum("blm,bmc->blc", p, v) @ params["w_o"] + params["b_o"]
    x = x + o
    h2 = ln(x, params["ln2_g"], params["ln2_b"])
    hmid = h2 @ params["w_down"] + params["b_down"]
    gate = jax.nn.silu(hmid @ params["w_gate"] + params["b_gate"])
    up = hmid @ params["w_up"] + params["b_up"]
    return x + gate * up


# ----------------------------- main -------------------------------------------


def init_params(key, hidden_dim, mlp_hidden_dim):
    C, M = hidden_dim, mlp_hidden_dim
    keys = jax.random.split(key, 16)
    w = lambda k, i, o: (0.02 * jax.random.normal(k, (i, o), jnp.float32))
    b = lambda k, o: (0.02 * jax.random.normal(k, (1, o), jnp.float32))
    return {
        "ln1_g": jnp.ones((1, C), jnp.float32),
        "ln1_b": jnp.zeros((1, C), jnp.float32),
        "ln2_g": jnp.ones((1, C), jnp.float32),
        "ln2_b": jnp.zeros((1, C), jnp.float32),
        "w_q": w(keys[0], C, C), "b_q": b(keys[1], C),
        "w_k": w(keys[2], C, C), "b_k": b(keys[3], C),
        "w_v": w(keys[4], C, C), "b_v": b(keys[5], C),
        "w_o": w(keys[6], C, C), "b_o": b(keys[7], C),
        "w_down": w(keys[8], C, M), "b_down": b(keys[9], M),
        "w_gate": w(keys[10], M, C), "b_gate": b(keys[11], C),
        "w_up": w(keys[12], M, C), "b_up": b(keys[13], C),
    }


if __name__ == "__main__":
    B, L, C, M = 2, 8, 32, 64  # hidden_dim=out_hidden_dim=32, mlp_hidden_dim=64
    key = jax.random.PRNGKey(0)
    kx, kp = jax.random.split(key)
    x = jax.random.normal(kx, (B, L, C), jnp.float32)
    params = init_params(kp, C, M)

    out = mistral_transformer_block(x, params)
    out = jax.block_until_ready(out)

    ref = reference_block(x, params)
    assert out.shape == (B, L, C)
    # Tolerance accounts for bf16 MXU operands, bf16 RoPE tables and the
    # approx softmax reciprocal.
    assert jnp.max(jnp.abs(out - ref)) < 1e-2, "mismatch vs pure-JAX reference"

    print("KERNEL_OK")
</pallas_src>

<mosaic_0001>
module attributes {stable_mosaic.version = 11 : i64} {
  func.func @mistral_block_kernel(%arg0: i32, %arg1: memref<1x8x32xf32, #tpu.memory_space<vmem>>, %arg2: memref<1x32xf32, #tpu.memory_space<vmem>>, %arg3: memref<1x32xf32, #tpu.memory_space<vmem>>, %arg4: memref<1x32xf32, #tpu.memory_space<vmem>>, %arg5: memref<1x32xf32, #tpu.memory_space<vmem>>, %arg6: memref<32x96xbf16, #tpu.memory_space<vmem>>, %arg7: memref<1x96xf32, #tpu.memory_space<vmem>>, %arg8: memref<32x32xbf16, #tpu.memory_space<vmem>>, %arg9: memref<1x32xf32, #tpu.memory_space<vmem>>, %arg10: memref<32x64xbf16, #tpu.memory_space<vmem>>, %arg11: memref<1x64xf32, #tpu.memory_space<vmem>>, %arg12: memref<64x64xbf16, #tpu.memory_space<vmem>>, %arg13: memref<1x64xf32, #tpu.memory_space<vmem>>, %arg14: memref<8x32xbf16, #tpu.memory_space<vmem>>, %arg15: memref<8x32xbf16, #tpu.memory_space<vmem>>, %arg16: memref<1x8x32xf32, #tpu.memory_space<vmem>>) attributes {dimension_semantics = [#tpu.dimension_semantics<parallel>], iteration_bounds = array<i64: 2>, scalar_prefetch = 0 : i64, scratch_operands = 0 : i64, tpu.core_type = #tpu.core_type<tc>, window_params = [{transform_indices = @transform_0, window_bounds = array<i64: 1, 8, 32>}, {pipeline_mode = #tpu.pipeline_mode<synchronous>, transform_indices = @transform_1, window_bounds = array<i64: 1, 32>}, {pipeline_mode = #tpu.pipeline_mode<synchronous>, transform_indices = @transform_2, window_bounds = array<i64: 1, 32>}, {pipeline_mode = #tpu.pipeline_mode<synchronous>, transform_indices = @transform_3, window_bounds = array<i64: 1, 32>}, {pipeline_mode = #tpu.pipeline_mode<synchronous>, transform_indices = @transform_4, window_bounds = array<i64: 1, 32>}, {pipeline_mode = #tpu.pipeline_mode<synchronous>, transform_indices = @transform_5, window_bounds = array<i64: 32, 96>}, {pipeline_mode = #tpu.pipeline_mode<synchronous>, transform_indices = @transform_6, window_bounds = array<i64: 1, 96>}, {pipeline_mode = #tpu.pipeline_mode<synchronous>, transform_indices = @transform_7, window_bounds = array<i64: 32, 32>}, {pipeline_mode = #tpu.pipeline_mode<synchronous>, transform_indices = @transform_8, window_bounds = array<i64: 1, 32>}, {pipeline_mode = #tpu.pipeline_mode<synchronous>, transform_indices = @transform_9, window_bounds = array<i64: 32, 64>}, {pipeline_mode = #tpu.pipeline_mode<synchronous>, transform_indices = @transform_10, window_bounds = array<i64: 1, 64>}, {pipeline_mode = #tpu.pipeline_mode<synchronous>, transform_indices = @transform_11, window_bounds = array<i64: 64, 64>}, {pipeline_mode = #tpu.pipeline_mode<synchronous>, transform_indices = @transform_12, window_bounds = array<i64: 1, 64>}, {pipeline_mode = #tpu.pipeline_mode<synchronous>, transform_indices = @transform_13, window_bounds = array<i64: 8, 32>}, {pipeline_mode = #tpu.pipeline_mode<synchronous>, transform_indices = @transform_14, window_bounds = array<i64: 8, 32>}, {transform_indices = @transform_15, window_bounds = array<i64: 1, 8, 32>}]} {
    %c0 = arith.constant 0 : index
    %c0_0 = arith.constant 0 : index
    %c0_1 = arith.constant 0 : index
    %0 = vector.load %arg1[%c0, %c0_0, %c0_1] : memref<1x8x32xf32, #tpu.memory_space<vmem>>, vector<1x8x32xf32>
    %1 = vector.shape_cast %0 : vector<1x8x32xf32> to vector<8x32xf32>
    %c0_2 = arith.constant 0 : index
    %c0_3 = arith.constant 0 : index
    %2 = vector.load %arg14[%c0_2, %c0_3] : memref<8x32xbf16, #tpu.memory_space<vmem>>, vector<8x32xbf16>
    %3 = arith.extf %2 : vector<8x32xbf16> to vector<8x32xf32>
    %c0_4 = arith.constant 0 : index
    %c0_5 = arith.constant 0 : index
    %4 = vector.load %arg15[%c0_4, %c0_5] : memref<8x32xbf16, #tpu.memory_space<vmem>>, vector<8x32xbf16>
    %5 = arith.extf %4 : vector<8x32xbf16> to vector<8x32xf32>
    %c0_6 = arith.constant 0 : index
    %c0_7 = arith.constant 0 : index
    %6 = vector.load %arg2[%c0_6, %c0_7] : memref<1x32xf32, #tpu.memory_space<vmem>>, vector<1x32xf32>
    %c0_8 = arith.constant 0 : index
    %c0_9 = arith.constant 0 : index
    %7 = vector.load %arg3[%c0_8, %c0_9] : memref<1x32xf32, #tpu.memory_space<vmem>>, vector<1x32xf32>
    %cst = arith.constant dense<0.000000e+00> : vector<8xf32>
    %8 = vector.multi_reduction <add>, %1, %cst [1] : vector<8x32xf32> to vector<8xf32>
    %9 = vector.shape_cast %8 : vector<8xf32> to vector<8x1xf32>
    %cst_10 = arith.constant 3.200000e+01 : f32
    %10 = vector.broadcast %cst_10 : f32 to vector<8x1xf32>
    %11 = arith.divf %9, %10 : vector<8x1xf32>
    %12 = arith.mulf %1, %1 : vector<8x32xf32>
    %cst_11 = arith.constant dense<0.000000e+00> : vector<8xf32>
    %13 = vector.multi_reduction <add>, %12, %cst_11 [1] : vector<8x32xf32> to vector<8xf32>
    %14 = vector.shape_cast %13 : vector<8xf32> to vector<8x1xf32>
    %cst_12 = arith.constant 3.200000e+01 : f32
    %15 = vector.broadcast %cst_12 : f32 to vector<8x1xf32>
    %16 = arith.divf %14, %15 : vector<8x1xf32>
    %17 = arith.mulf %11, %11 : vector<8x1xf32>
    %18 = arith.subf %16, %17 : vector<8x1xf32>
    %cst_13 = arith.constant 0.000000e+00 : f32
    %19 = vector.broadcast %cst_13 : f32 to vector<8x1xf32>
    %20 = arith.maximumf %18, %19 : vector<8x1xf32>
    %21 = vector.broadcast %11 : vector<8x1xf32> to vector<8x32xf32>
    %22 = arith.subf %1, %21 : vector<8x32xf32>
    %cst_14 = arith.constant 9.99999974E-6 : f32
    %23 = vector.broadcast %cst_14 : f32 to vector<8x1xf32>
    %24 = arith.addf %20, %23 : vector<8x1xf32>
    %25 = math.rsqrt %24 : vector<8x1xf32>
    %26 = vector.broadcast %25 : vector<8x1xf32> to vector<8x32xf32>
    %27 = arith.mulf %22, %26 : vector<8x32xf32>
    %28 = vector.broadcast %6 : vector<1x32xf32> to vector<8x32xf32>
    %29 = arith.mulf %27, %28 : vector<8x32xf32>
    %30 = vector.broadcast %7 : vector<1x32xf32> to vector<8x32xf32>
    %31 = arith.addf %29, %30 : vector<8x32xf32>
    %32 = arith.truncf %31 : vector<8x32xf32> to vector<8x32xbf16>
    %c0_15 = arith.constant 0 : index
    %c0_16 = arith.constant 0 : index
    %33 = vector.load %arg6[%c0_15, %c0_16] : memref<32x96xbf16, #tpu.memory_space<vmem>>, vector<32x96xbf16>
    %cst_17 = arith.constant dense<0.000000e+00> : vector<8x96xf32>
    %34 = tpu.matmul %32, %33, %cst_17 {dimension_numbers = #tpu.dot_dimension_numbers<[1], [0], [0], [1], [0, 0, 1, 1], [], []>} : vector<8x32xbf16>, vector<32x96xbf16>, vector<8x96xf32> -> vector<8x96xf32>
    %c0_18 = arith.constant 0 : index
    %c0_19 = arith.constant 0 : index
    %35 = vector.load %arg7[%c0_18, %c0_19] : memref<1x96xf32, #tpu.memory_space<vmem>>, vector<1x96xf32>
    %36 = vector.broadcast %35 : vector<1x96xf32> to vector<8x96xf32>
    %37 = arith.addf %34, %36 : vector<8x96xf32>
    %38 = vector.extract_strided_slice %37 {offsets = [0, 0], sizes = [8, 32], strides = [1, 1]} : vector<8x96xf32> to vector<8x32xf32>
    %39 = vector.extract_strided_slice %37 {offsets = [0, 32], sizes = [8, 32], strides = [1, 1]} : vector<8x96xf32> to vector<8x32xf32>
    %40 = vector.extract_strided_slice %37 {offsets = [0, 64], sizes = [8, 32], strides = [1, 1]} : vector<8x96xf32> to vector<8x32xf32>
    %cst_20 = arith.constant 3.200000e+01 : f32
    %41 = math.sqrt %cst_20 : f32
    %cst_21 = arith.constant 1.000000e+00 : f32
    %42 = arith.divf %cst_21, %41 : f32
    %43 = vector.extract_strided_slice %38 {offsets = [0, 16], sizes = [8, 16], strides = [1, 1]} : vector<8x32xf32> to vector<8x16xf32>
    %44 = vector.extract_strided_slice %38 {offsets = [0, 0], sizes = [8, 16], strides = [1, 1]} : vector<8x32xf32> to vector<8x16xf32>
    %45 = tpu.concatenate %43, %44 in 1 : vector<8x16xf32>, vector<8x16xf32> -> vector<8x32xf32>
    %46 = arith.mulf %38, %3 : vector<8x32xf32>
    %47 = arith.mulf %45, %5 : vector<8x32xf32>
    %48 = arith.addf %46, %47 : vector<8x32xf32>
    %49 = vector.broadcast %42 : f32 to vector<8x32xf32>
    %50 = arith.mulf %48, %49 : vector<8x32xf32>
    %51 = arith.truncf %50 : vector<8x32xf32> to vector<8x32xbf16>
    %52 = vector.extract_strided_slice %39 {offsets = [0, 16], sizes = [8, 16], strides = [1, 1]} : vector<8x32xf32> to vector<8x16xf32>
    %53 = vector.extract_strided_slice %39 {offsets = [0, 0], sizes = [8, 16], strides = [1, 1]} : vector<8x32xf32> to vector<8x16xf32>
    %54 = tpu.concatenate %52, %53 in 1 : vector<8x16xf32>, vector<8x16xf32> -> vector<8x32xf32>
    %55 = arith.mulf %39, %3 : vector<8x32xf32>
    %56 = arith.mulf %54, %5 : vector<8x32xf32>
    %57 = arith.addf %55, %56 : vector<8x32xf32>
    %58 = arith.truncf %57 : vector<8x32xf32> to vector<8x32xbf16>
    %cst_22 = arith.constant dense<0.000000e+00> : vector<8x8xf32>
    %59 = tpu.matmul %51, %58, %cst_22 {dimension_numbers = #tpu.dot_dimension_numbers<[1], [1], [0], [0], [0, 0, 1, 0], [], []>} : vector<8x32xbf16>, vector<8x32xbf16>, vector<8x8xf32> -> vector<8x8xf32>
    %cst_23 = arith.constant dense<0xFF800000> : vector<8xf32>
    %60 = vector.multi_reduction <maximumf>, %59, %cst_23 [1] : vector<8x8xf32> to vector<8xf32>
    %61 = vector.shape_cast %60 : vector<8xf32> to vector<8x1xf32>
    %62 = vector.broadcast %61 : vector<8x1xf32> to vector<8x8xf32>
    %63 = arith.subf %59, %62 : vector<8x8xf32>
    %64 = math.exp %63 : vector<8x8xf32>
    %cst_24 = arith.constant dense<0.000000e+00> : vector<8xf32>
    %65 = vector.multi_reduction <add>, %64, %cst_24 [1] : vector<8x8xf32> to vector<8xf32>
    %66 = vector.shape_cast %65 : vector<8xf32> to vector<8x1xf32>
    %67 = tpu.reciprocal %66 {approx = true} : vector<8x1xf32> -> vector<8x1xf32>
    %68 = vector.broadcast %67 : vector<8x1xf32> to vector<8x8xf32>
    %69 = arith.mulf %64, %68 : vector<8x8xf32>
    %70 = arith.truncf %69 : vector<8x8xf32> to vector<8x8xbf16>
    %71 = arith.truncf %40 : vector<8x32xf32> to vector<8x32xbf16>
    %cst_25 = arith.constant dense<0.000000e+00> : vector<8x32xf32>
    %72 = tpu.matmul %70, %71, %cst_25 {dimension_numbers = #tpu.dot_dimension_numbers<[1], [0], [0], [1], [0, 0, 1, 1], [], []>} : vector<8x8xbf16>, vector<8x32xbf16>, vector<8x32xf32> -> vector<8x32xf32>
    %73 = arith.truncf %72 : vector<8x32xf32> to vector<8x32xbf16>
    %c0_26 = arith.constant 0 : index
    %c0_27 = arith.constant 0 : index
    %74 = vector.load %arg8[%c0_26, %c0_27] : memref<32x32xbf16, #tpu.memory_space<vmem>>, vector<32x32xbf16>
    %cst_28 = arith.constant dense<0.000000e+00> : vector<8x32xf32>
    %75 = tpu.matmul %73, %74, %cst_28 {dimension_numbers = #tpu.dot_dimension_numbers<[1], [0], [0], [1], [0, 0, 1, 1], [], []>} : vector<8x32xbf16>, vector<32x32xbf16>, vector<8x32xf32> -> vector<8x32xf32>
    %c0_29 = arith.constant 0 : index
    %c0_30 = arith.constant 0 : index
    %76 = vector.load %arg9[%c0_29, %c0_30] : memref<1x32xf32, #tpu.memory_space<vmem>>, vector<1x32xf32>
    %77 = vector.broadcast %76 : vector<1x32xf32> to vector<8x32xf32>
    %78 = arith.addf %75, %77 : vector<8x32xf32>
    %79 = arith.addf %1, %78 : vector<8x32xf32>
    %c0_31 = arith.constant 0 : index
    %c0_32 = arith.constant 0 : index
    %80 = vector.load %arg4[%c0_31, %c0_32] : memref<1x32xf32, #tpu.memory_space<vmem>>, vector<1x32xf32>
    %c0_33 = arith.constant 0 : index
    %c0_34 = arith.constant 0 : index
    %81 = vector.load %arg5[%c0_33, %c0_34] : memref<1x32xf32, #tpu.memory_space<vmem>>, vector<1x32xf32>
    %cst_35 = arith.constant dense<0.000000e+00> : vector<8xf32>
    %82 = vector.multi_reduction <add>, %79, %cst_35 [1] : vector<8x32xf32> to vector<8xf32>
    %83 = vector.shape_cast %82 : vector<8xf32> to vector<8x1xf32>
    %cst_36 = arith.constant 3.200000e+01 : f32
    %84 = vector.broadcast %cst_36 : f32 to vector<8x1xf32>
    %85 = arith.divf %83, %84 : vector<8x1xf32>
    %86 = arith.mulf %79, %79 : vector<8x32xf32>
    %cst_37 = arith.constant dense<0.000000e+00> : vector<8xf32>
    %87 = vector.multi_reduction <add>, %86, %cst_37 [1] : vector<8x32xf32> to vector<8xf32>
    %88 = vector.shape_cast %87 : vector<8xf32> to vector<8x1xf32>
    %cst_38 = arith.constant 3.200000e+01 : f32
    %89 = vector.broadcast %cst_38 : f32 to vector<8x1xf32>
    %90 = arith.divf %88, %89 : vector<8x1xf32>
    %91 = arith.mulf %85, %85 : vector<8x1xf32>
    %92 = arith.subf %90, %91 : vector<8x1xf32>
    %cst_39 = arith.constant 0.000000e+00 : f32
    %93 = vector.broadcast %cst_39 : f32 to vector<8x1xf32>
    %94 = arith.maximumf %92, %93 : vector<8x1xf32>
    %95 = vector.broadcast %85 : vector<8x1xf32> to vector<8x32xf32>
    %96 = arith.subf %79, %95 : vector<8x32xf32>
    %cst_40 = arith.constant 9.99999974E-6 : f32
    %97 = vector.broadcast %cst_40 : f32 to vector<8x1xf32>
    %98 = arith.addf %94, %97 : vector<8x1xf32>
    %99 = math.rsqrt %98 : vector<8x1xf32>
    %100 = vector.broadcast %99 : vector<8x1xf32> to vector<8x32xf32>
    %101 = arith.mulf %96, %100 : vector<8x32xf32>
    %102 = vector.broadcast %80 : vector<1x32xf32> to vector<8x32xf32>
    %103 = arith.mulf %101, %102 : vector<8x32xf32>
    %104 = vector.broadcast %81 : vector<1x32xf32> to vector<8x32xf32>
    %105 = arith.addf %103, %104 : vector<8x32xf32>
    %106 = arith.truncf %105 : vector<8x32xf32> to vector<8x32xbf16>
    %c0_41 = arith.constant 0 : index
    %c0_42 = arith.constant 0 : index
    %107 = vector.load %arg10[%c0_41, %c0_42] : memref<32x64xbf16, #tpu.memory_space<vmem>>, vector<32x64xbf16>
    %cst_43 = arith.constant dense<0.000000e+00> : vector<8x64xf32>
    %108 = tpu.matmul %106, %107, %cst_43 {dimension_numbers = #tpu.dot_dimension_numbers<[1], [0], [0], [1], [0, 0, 1, 1], [], []>} : vector<8x32xbf16>, vector<32x64xbf16>, vector<8x64xf32> -> vector<8x64xf32>
    %c0_44 = arith.constant 0 : index
    %c0_45 = arith.constant 0 : index
    %109 = vector.load %arg11[%c0_44, %c0_45] : memref<1x64xf32, #tpu.memory_space<vmem>>, vector<1x64xf32>
    %110 = vector.broadcast %109 : vector<1x64xf32> to vector<8x64xf32>
    %111 = arith.addf %108, %110 : vector<8x64xf32>
    %112 = arith.truncf %111 : vector<8x64xf32> to vector<8x64xbf16>
    %c0_46 = arith.constant 0 : index
    %c0_47 = arith.constant 0 : index
    %113 = vector.load %arg12[%c0_46, %c0_47] : memref<64x64xbf16, #tpu.memory_space<vmem>>, vector<64x64xbf16>
    %cst_48 = arith.constant dense<0.000000e+00> : vector<8x64xf32>
    %114 = tpu.matmul %112, %113, %cst_48 {dimension_numbers = #tpu.dot_dimension_numbers<[1], [0], [0], [1], [0, 0, 1, 1], [], []>} : vector<8x64xbf16>, vector<64x64xbf16>, vector<8x64xf32> -> vector<8x64xf32>
    %c0_49 = arith.constant 0 : index
    %c0_50 = arith.constant 0 : index
    %115 = vector.load %arg13[%c0_49, %c0_50] : memref<1x64xf32, #tpu.memory_space<vmem>>, vector<1x64xf32>
    %116 = vector.broadcast %115 : vector<1x64xf32> to vector<8x64xf32>
    %117 = arith.addf %114, %116 : vector<8x64xf32>
    %118 = vector.extract_strided_slice %117 {offsets = [0, 0], sizes = [8, 32], strides = [1, 1]} : vector<8x64xf32> to vector<8x32xf32>
    %119 = vector.extract_strided_slice %117 {offsets = [0, 32], sizes = [8, 32], strides = [1, 1]} : vector<8x64xf32> to vector<8x32xf32>
    %120 = arith.negf %118 : vector<8x32xf32>
    %121 = math.exp %120 : vector<8x32xf32>
    %cst_51 = arith.constant 1.000000e+00 : f32
    %122 = vector.broadcast %cst_51 : f32 to vector<8x32xf32>
    %123 = arith.addf %122, %121 : vector<8x32xf32>
    %124 = arith.divf %122, %123 : vector<8x32xf32>
    %125 = arith.mulf %118, %124 : vector<8x32xf32>
    %126 = arith.mulf %125, %119 : vector<8x32xf32>
    %127 = arith.addf %79, %126 : vector<8x32xf32>
    %c0_52 = arith.constant 0 : index
    %c0_53 = arith.constant 0 : index
    %c0_54 = arith.constant 0 : index
    %128 = vector.load %arg16[%c0_52, %c0_53, %c0_54] : memref<1x8x32xf32, #tpu.memory_space<vmem>>, vector<1x8x32xf32>
    %129 = vector.shape_cast %128 : vector<1x8x32xf32> to vector<8x32xf32>
    %130 = vector.shape_cast %127 : vector<8x32xf32> to vector<1x8x32xf32>
    tpu.vector_store %arg16[%c0_52, %c0_53, %c0_54], %130 {strides = array<i32>} : memref<1x8x32xf32, #tpu.memory_space<vmem>>, vector<1x8x32xf32>,
    return
  }
  func.func @transform_0(%arg0: i32) -> (i32, i32, i32) {
    %c0_i32 = arith.constant 0 : i32
    %c0_i32_0 = arith.constant 0 : i32
    %c0_i32_1 = arith.constant 0 : i32
    return %arg0, %c0_i32, %c0_i32_0 : i32, i32, i32
  }
  func.func @transform_1(%arg0: i32) -> (i32, i32) {
    %c0_i32 = arith.constant 0 : i32
    %c0_i32_0 = arith.constant 0 : i32
    %c0_i32_1 = arith.constant 0 : i32
    return %c0_i32, %c0_i32_0 : i32, i32
  }
  func.func @transform_2(%arg0: i32) -> (i32, i32) {
    %c0_i32 = arith.constant 0 : i32
    %c0_i32_0 = arith.constant 0 : i32
    %c0_i32_1 = arith.constant 0 : i32
    return %c0_i32, %c0_i32_0 : i32, i32
  }
  func.func @transform_3(%arg0: i32) -> (i32, i32) {
    %c0_i32 = arith.constant 0 : i32
    %c0_i32_0 = arith.constant 0 : i32
    %c0_i32_1 = arith.constant 0 : i32
    return %c0_i32, %c0_i32_0 : i32, i32
  }
  func.func @transform_4(%arg0: i32) -> (i32, i32) {
    %c0_i32 = arith.constant 0 : i32
    %c0_i32_0 = arith.constant 0 : i32
    %c0_i32_1 = arith.constant 0 : i32
    return %c0_i32, %c0_i32_0 : i32, i32
  }
  func.func @transform_5(%arg0: i32) -> (i32, i32) {
    %c0_i32 = arith.constant 0 : i32
    %c0_i32_0 = arith.constant 0 : i32
    %c0_i32_1 = arith.constant 0 : i32
    return %c0_i32, %c0_i32_0 : i32, i32
  }
  func.func @transform_6(%arg0: i32) -> (i32, i32) {
    %c0_i32 = arith.constant 0 : i32
    %c0_i32_0 = arith.constant 0 : i32
    %c0_i32_1 = arith.constant 0 : i32
    return %c0_i32, %c0_i32_0 : i32, i32
  }
  func.func @transform_7(%arg0: i32) -> (i32, i32) {
    %c0_i32 = arith.constant 0 : i32
    %c0_i32_0 = arith.constant 0 : i32
    %c0_i32_1 = arith.constant 0 : i32
    return %c0_i32, %c0_i32_0 : i32, i32
  }
  func.func @transform_8(%arg0: i32) -> (i32, i32) {
    %c0_i32 = arith.constant 0 : i32
    %c0_i32_0 = arith.constant 0 : i32
    %c0_i32_1 = arith.constant 0 : i32
    return %c0_i32, %c0_i32_0 : i32, i32
  }
  func.func @transform_9(%arg0: i32) -> (i32, i32) {
    %c0_i32 = arith.constant 0 : i32
    %c0_i32_0 = arith.constant 0 : i32
    %c0_i32_1 = arith.constant 0 : i32
    return %c0_i32, %c0_i32_0 : i32, i32
  }
  func.func @transform_10(%arg0: i32) -> (i32, i32) {
    %c0_i32 = arith.constant 0 : i32
    %c0_i32_0 = arith.constant 0 : i32
    %c0_i32_1 = arith.constant 0 : i32
    return %c0_i32, %c0_i32_0 : i32, i32
  }
  func.func @transform_11(%arg0: i32) -> (i32, i32) {
    %c0_i32 = arith.constant 0 : i32
    %c0_i32_0 = arith.constant 0 : i32
    %c0_i32_1 = arith.constant 0 : i32
    return %c0_i32, %c0_i32_0 : i32, i32
  }
  func.func @transform_12(%arg0: i32) -> (i32, i32) {
    %c0_i32 = arith.constant 0 : i32
    %c0_i32_0 = arith.constant 0 : i32
    %c0_i32_1 = arith.constant 0 : i32
    return %c0_i32, %c0_i32_0 : i32, i32
  }
  func.func @transform_13(%arg0: i32) -> (i32, i32) {
    %c0_i32 = arith.constant 0 : i32
    %c0_i32_0 = arith.constant 0 : i32
    %c0_i32_1 = arith.constant 0 : i32
    return %c0_i32, %c0_i32_0 : i32, i32
  }
  func.func @transform_14(%arg0: i32) -> (i32, i32) {
    %c0_i32 = arith.constant 0 : i32
    %c0_i32_0 = arith.constant 0 : i32
    %c0_i32_1 = arith.constant 0 : i32
    return %c0_i32, %c0_i32_0 : i32, i32
  }
  func.func @transform_15(%arg0: i32) -> (i32, i32, i32) {
    %c0_i32 = arith.constant 0 : i32
    %c0_i32_0 = arith.constant 0 : i32
    %c0_i32_1 = arith.constant 0 : i32
    return %arg0, %c0_i32, %c0_i32_0 : i32, i32, i32
  }
}

module attributes {stable_mosaic.version = 11 : i64} {
  func.func @mistral_block_kernel(%arg0: i32, %arg1: memref<1x8x32xf32, #tpu.memory_space<vmem>>, %arg2: memref<1x32xf32, #tpu.memory_space<vmem>>, %arg3: memref<1x32xf32, #tpu.memory_space<vmem>>, %arg4: memref<1x32xf32, #tpu.memory_space<vmem>>, %arg5: memref<1x32xf32, #tpu.memory_space<vmem>>, %arg6: memref<32x96xbf16, #tpu.memory_space<vmem>>, %arg7: memref<1x96xf32, #tpu.memory_space<vmem>>, %arg8: memref<32x32xbf16, #tpu.memory_space<vmem>>, %arg9: memref<1x32xf32, #tpu.memory_space<vmem>>, %arg10: memref<32x64xbf16, #tpu.memory_space<vmem>>, %arg11: memref<1x64xf32, #tpu.memory_space<vmem>>, %arg12: memref<64x64xbf16, #tpu.memory_space<vmem>>, %arg13: memref<1x64xf32, #tpu.memory_space<vmem>>, %arg14: memref<8x32xbf16, #tpu.memory_space<vmem>>, %arg15: memref<8x32xbf16, #tpu.memory_space<vmem>>, %arg16: memref<1x8x32xf32, #tpu.memory_space<vmem>>) attributes {dimension_semantics = [#tpu.dimension_semantics<parallel>], iteration_bounds = array<i64: 2>, scalar_prefetch = 0 : i64, scratch_operands = 0 : i64, tpu.core_type = #tpu.core_type<tc>, window_params = [{transform_indices = @transform_0, window_bounds = array<i64: 1, 8, 32>}, {pipeline_mode = #tpu.pipeline_mode<synchronous>, transform_indices = @transform_1, window_bounds = array<i64: 1, 32>}, {pipeline_mode = #tpu.pipeline_mode<synchronous>, transform_indices = @transform_2, window_bounds = array<i64: 1, 32>}, {pipeline_mode = #tpu.pipeline_mode<synchronous>, transform_indices = @transform_3, window_bounds = array<i64: 1, 32>}, {pipeline_mode = #tpu.pipeline_mode<synchronous>, transform_indices = @transform_4, window_bounds = array<i64: 1, 32>}, {pipeline_mode = #tpu.pipeline_mode<synchronous>, transform_indices = @transform_5, window_bounds = array<i64: 32, 96>}, {pipeline_mode = #tpu.pipeline_mode<synchronous>, transform_indices = @transform_6, window_bounds = array<i64: 1, 96>}, {pipeline_mode = #tpu.pipeline_mode<synchronous>, transform_indices = @transform_7, window_bounds = array<i64: 32, 32>}, {pipeline_mode = #tpu.pipeline_mode<synchronous>, transform_indices = @transform_8, window_bounds = array<i64: 1, 32>}, {pipeline_mode = #tpu.pipeline_mode<synchronous>, transform_indices = @transform_9, window_bounds = array<i64: 32, 64>}, {pipeline_mode = #tpu.pipeline_mode<synchronous>, transform_indices = @transform_10, window_bounds = array<i64: 1, 64>}, {pipeline_mode = #tpu.pipeline_mode<synchronous>, transform_indices = @transform_11, window_bounds = array<i64: 64, 64>}, {pipeline_mode = #tpu.pipeline_mode<synchronous>, transform_indices = @transform_12, window_bounds = array<i64: 1, 64>}, {pipeline_mode = #tpu.pipeline_mode<synchronous>, transform_indices = @transform_13, window_bounds = array<i64: 8, 32>}, {pipeline_mode = #tpu.pipeline_mode<synchronous>, transform_indices = @transform_14, window_bounds = array<i64: 8, 32>}, {transform_indices = @transform_15, window_bounds = array<i64: 1, 8, 32>}]} {
    %c0 = arith.constant 0 : index
    %c0_0 = arith.constant 0 : index
    %c0_1 = arith.constant 0 : index
    %0 = vector.load %arg1[%c0, %c0_0, %c0_1] : memref<1x8x32xf32, #tpu.memory_space<vmem>>, vector<1x8x32xf32>
    %1 = vector.shape_cast %0 : vector<1x8x32xf32> to vector<8x32xf32>
    %c0_2 = arith.constant 0 : index
    %c0_3 = arith.constant 0 : index
    %2 = vector.load %arg14[%c0_2, %c0_3] : memref<8x32xbf16, #tpu.memory_space<vmem>>, vector<8x32xbf16>
    %3 = arith.extf %2 : vector<8x32xbf16> to vector<8x32xf32>
    %c0_4 = arith.constant 0 : index
    %c0_5 = arith.constant 0 : index
    %4 = vector.load %arg15[%c0_4, %c0_5] : memref<8x32xbf16, #tpu.memory_space<vmem>>, vector<8x32xbf16>
    %5 = arith.extf %4 : vector<8x32xbf16> to vector<8x32xf32>
    %c0_6 = arith.constant 0 : index
    %c0_7 = arith.constant 0 : index
    %6 = vector.load %arg2[%c0_6, %c0_7] : memref<1x32xf32, #tpu.memory_space<vmem>>, vector<1x32xf32>
    %c0_8 = arith.constant 0 : index
    %c0_9 = arith.constant 0 : index
    %7 = vector.load %arg3[%c0_8, %c0_9] : memref<1x32xf32, #tpu.memory_space<vmem>>, vector<1x32xf32>
    %cst = arith.constant dense<0.000000e+00> : vector<8xf32>
    %8 = vector.multi_reduction <add>, %1, %cst [1] : vector<8x32xf32> to vector<8xf32>
    %9 = vector.shape_cast %8 : vector<8xf32> to vector<8x1xf32>
    %cst_10 = arith.constant 3.200000e+01 : f32
    %10 = vector.broadcast %cst_10 : f32 to vector<8x1xf32>
    %11 = arith.divf %9, %10 : vector<8x1xf32>
    %12 = arith.mulf %1, %1 : vector<8x32xf32>
    %cst_11 = arith.constant dense<0.000000e+00> : vector<8xf32>
    %13 = vector.multi_reduction <add>, %12, %cst_11 [1] : vector<8x32xf32> to vector<8xf32>
    %14 = vector.shape_cast %13 : vector<8xf32> to vector<8x1xf32>
    %cst_12 = arith.constant 3.200000e+01 : f32
    %15 = vector.broadcast %cst_12 : f32 to vector<8x1xf32>
    %16 = arith.divf %14, %15 : vector<8x1xf32>
    %17 = arith.mulf %11, %11 : vector<8x1xf32>
    %18 = arith.subf %16, %17 : vector<8x1xf32>
    %cst_13 = arith.constant 0.000000e+00 : f32
    %19 = vector.broadcast %cst_13 : f32 to vector<8x1xf32>
    %20 = arith.maximumf %18, %19 : vector<8x1xf32>
    %21 = vector.broadcast %11 : vector<8x1xf32> to vector<8x32xf32>
    %22 = arith.subf %1, %21 : vector<8x32xf32>
    %cst_14 = arith.constant 9.99999974E-6 : f32
    %23 = vector.broadcast %cst_14 : f32 to vector<8x1xf32>
    %24 = arith.addf %20, %23 : vector<8x1xf32>
    %25 = math.rsqrt %24 : vector<8x1xf32>
    %26 = vector.broadcast %25 : vector<8x1xf32> to vector<8x32xf32>
    %27 = arith.mulf %22, %26 : vector<8x32xf32>
    %28 = vector.broadcast %6 : vector<1x32xf32> to vector<8x32xf32>
    %29 = arith.mulf %27, %28 : vector<8x32xf32>
    %30 = vector.broadcast %7 : vector<1x32xf32> to vector<8x32xf32>
    %31 = arith.addf %29, %30 : vector<8x32xf32>
    %32 = arith.truncf %31 : vector<8x32xf32> to vector<8x32xbf16>
    %c0_15 = arith.constant 0 : index
    %c0_16 = arith.constant 0 : index
    %33 = vector.load %arg6[%c0_15, %c0_16] : memref<32x96xbf16, #tpu.memory_space<vmem>>, vector<32x96xbf16>
    %cst_17 = arith.constant dense<0.000000e+00> : vector<8x96xf32>
    %34 = tpu.matmul %32, %33, %cst_17 {dimension_numbers = #tpu.dot_dimension_numbers<[1], [0], [0], [1], [0, 0, 1, 1], [], []>} : vector<8x32xbf16>, vector<32x96xbf16>, vector<8x96xf32> -> vector<8x96xf32>
    %c0_18 = arith.constant 0 : index
    %c0_19 = arith.constant 0 : index
    %35 = vector.load %arg7[%c0_18, %c0_19] : memref<1x96xf32, #tpu.memory_space<vmem>>, vector<1x96xf32>
    %36 = vector.broadcast %35 : vector<1x96xf32> to vector<8x96xf32>
    %37 = arith.addf %34, %36 : vector<8x96xf32>
    %38 = vector.extract_strided_slice %37 {offsets = [0, 0], sizes = [8, 32], strides = [1, 1]} : vector<8x96xf32> to vector<8x32xf32>
    %39 = vector.extract_strided_slice %37 {offsets = [0, 32], sizes = [8, 32], strides = [1, 1]} : vector<8x96xf32> to vector<8x32xf32>
    %40 = vector.extract_strided_slice %37 {offsets = [0, 64], sizes = [8, 32], strides = [1, 1]} : vector<8x96xf32> to vector<8x32xf32>
    %cst_20 = arith.constant 3.200000e+01 : f32
    %41 = math.sqrt %cst_20 : f32
    %cst_21 = arith.constant 1.000000e+00 : f32
    %42 = arith.divf %cst_21, %41 : f32
    %43 = vector.extract_strided_slice %38 {offsets = [0, 16], sizes = [8, 16], strides = [1, 1]} : vector<8x32xf32> to vector<8x16xf32>
    %44 = vector.extract_strided_slice %38 {offsets = [0, 0], sizes = [8, 16], strides = [1, 1]} : vector<8x32xf32> to vector<8x16xf32>
    %45 = tpu.concatenate %43, %44 in 1 : vector<8x16xf32>, vector<8x16xf32> -> vector<8x32xf32>
    %46 = arith.mulf %38, %3 : vector<8x32xf32>
    %47 = arith.mulf %45, %5 : vector<8x32xf32>
    %48 = arith.addf %46, %47 : vector<8x32xf32>
    %49 = vector.broadcast %42 : f32 to vector<8x32xf32>
    %50 = arith.mulf %48, %49 : vector<8x32xf32>
    %51 = arith.truncf %50 : vector<8x32xf32> to vector<8x32xbf16>
    %52 = vector.extract_strided_slice %39 {offsets = [0, 16], sizes = [8, 16], strides = [1, 1]} : vector<8x32xf32> to vector<8x16xf32>
    %53 = vector.extract_strided_slice %39 {offsets = [0, 0], sizes = [8, 16], strides = [1, 1]} : vector<8x32xf32> to vector<8x16xf32>
    %54 = tpu.concatenate %52, %53 in 1 : vector<8x16xf32>, vector<8x16xf32> -> vector<8x32xf32>
    %55 = arith.mulf %39, %3 : vector<8x32xf32>
    %56 = arith.mulf %54, %5 : vector<8x32xf32>
    %57 = arith.addf %55, %56 : vector<8x32xf32>
    %58 = arith.truncf %57 : vector<8x32xf32> to vector<8x32xbf16>
    %cst_22 = arith.constant dense<0.000000e+00> : vector<8x8xf32>
    %59 = tpu.matmul %51, %58, %cst_22 {dimension_numbers = #tpu.dot_dimension_numbers<[1], [1], [0], [0], [0, 0, 1, 0], [], []>} : vector<8x32xbf16>, vector<8x32xbf16>, vector<8x8xf32> -> vector<8x8xf32>
    %cst_23 = arith.constant dense<0xFF800000> : vector<8xf32>
    %60 = vector.multi_reduction <maximumf>, %59, %cst_23 [1] : vector<8x8xf32> to vector<8xf32>
    %61 = vector.shape_cast %60 : vector<8xf32> to vector<8x1xf32>
    %62 = vector.broadcast %61 : vector<8x1xf32> to vector<8x8xf32>
    %63 = arith.subf %59, %62 : vector<8x8xf32>
    %64 = math.exp %63 : vector<8x8xf32>
    %cst_24 = arith.constant dense<0.000000e+00> : vector<8xf32>
    %65 = vector.multi_reduction <add>, %64, %cst_24 [1] : vector<8x8xf32> to vector<8xf32>
    %66 = vector.shape_cast %65 : vector<8xf32> to vector<8x1xf32>
    %67 = tpu.reciprocal %66 {approx = true} : vector<8x1xf32> -> vector<8x1xf32>
    %68 = vector.broadcast %67 : vector<8x1xf32> to vector<8x8xf32>
    %69 = arith.mulf %64, %68 : vector<8x8xf32>
    %70 = arith.truncf %69 : vector<8x8xf32> to vector<8x8xbf16>
    %71 = arith.truncf %40 : vector<8x32xf32> to vector<8x32xbf16>
    %cst_25 = arith.constant dense<0.000000e+00> : vector<8x32xf32>
    %72 = tpu.matmul %70, %71, %cst_25 {dimension_numbers = #tpu.dot_dimension_numbers<[1], [0], [0], [1], [0, 0, 1, 1], [], []>} : vector<8x8xbf16>, vector<8x32xbf16>, vector<8x32xf32> -> vector<8x32xf32>
    %73 = arith.truncf %72 : vector<8x32xf32> to vector<8x32xbf16>
    %c0_26 = arith.constant 0 : index
    %c0_27 = arith.constant 0 : index
    %74 = vector.load %arg8[%c0_26, %c0_27] : memref<32x32xbf16, #tpu.memory_space<vmem>>, vector<32x32xbf16>
    %cst_28 = arith.constant dense<0.000000e+00> : vector<8x32xf32>
    %75 = tpu.matmul %73, %74, %cst_28 {dimension_numbers = #tpu.dot_dimension_numbers<[1], [0], [0], [1], [0, 0, 1, 1], [], []>} : vector<8x32xbf16>, vector<32x32xbf16>, vector<8x32xf32> -> vector<8x32xf32>
    %c0_29 = arith.constant 0 : index
    %c0_30 = arith.constant 0 : index
    %76 = vector.load %arg9[%c0_29, %c0_30] : memref<1x32xf32, #tpu.memory_space<vmem>>, vector<1x32xf32>
    %77 = vector.broadcast %76 : vector<1x32xf32> to vector<8x32xf32>
    %78 = arith.addf %75, %77 : vector<8x32xf32>
    %79 = arith.addf %1, %78 : vector<8x32xf32>
    %c0_31 = arith.constant 0 : index
    %c0_32 = arith.constant 0 : index
    %80 = vector.load %arg4[%c0_31, %c0_32] : memref<1x32xf32, #tpu.memory_space<vmem>>, vector<1x32xf32>
    %c0_33 = arith.constant 0 : index
    %c0_34 = arith.constant 0 : index
    %81 = vector.load %arg5[%c0_33, %c0_34] : memref<1x32xf32, #tpu.memory_space<vmem>>, vector<1x32xf32>
    %cst_35 = arith.constant dense<0.000000e+00> : vector<8xf32>
    %82 = vector.multi_reduction <add>, %79, %cst_35 [1] : vector<8x32xf32> to vector<8xf32>
    %83 = vector.shape_cast %82 : vector<8xf32> to vector<8x1xf32>
    %cst_36 = arith.constant 3.200000e+01 : f32
    %84 = vector.broadcast %cst_36 : f32 to vector<8x1xf32>
    %85 = arith.divf %83, %84 : vector<8x1xf32>
    %86 = arith.mulf %79, %79 : vector<8x32xf32>
    %cst_37 = arith.constant dense<0.000000e+00> : vector<8xf32>
    %87 = vector.multi_reduction <add>, %86, %cst_37 [1] : vector<8x32xf32> to vector<8xf32>
    %88 = vector.shape_cast %87 : vector<8xf32> to vector<8x1xf32>
    %cst_38 = arith.constant 3.200000e+01 : f32
    %89 = vector.broadcast %cst_38 : f32 to vector<8x1xf32>
    %90 = arith.divf %88, %89 : vector<8x1xf32>
    %91 = arith.mulf %85, %85 : vector<8x1xf32>
    %92 = arith.subf %90, %91 : vector<8x1xf32>
    %cst_39 = arith.constant 0.000000e+00 : f32
    %93 = vector.broadcast %cst_39 : f32 to vector<8x1xf32>
    %94 = arith.maximumf %92, %93 : vector<8x1xf32>
    %95 = vector.broadcast %85 : vector<8x1xf32> to vector<8x32xf32>
    %96 = arith.subf %79, %95 : vector<8x32xf32>
    %cst_40 = arith.constant 9.99999974E-6 : f32
    %97 = vector.broadcast %cst_40 : f32 to vector<8x1xf32>
    %98 = arith.addf %94, %97 : vector<8x1xf32>
    %99 = math.rsqrt %98 : vector<8x1xf32>
    %100 = vector.broadcast %99 : vector<8x1xf32> to vector<8x32xf32>
    %101 = arith.mulf %96, %100 : vector<8x32xf32>
    %102 = vector.broadcast %80 : vector<1x32xf32> to vector<8x32xf32>
    %103 = arith.mulf %101, %102 : vector<8x32xf32>
    %104 = vector.broadcast %81 : vector<1x32xf32> to vector<8x32xf32>
    %105 = arith.addf %103, %104 : vector<8x32xf32>
    %106 = arith.truncf %105 : vector<8x32xf32> to vector<8x32xbf16>
    %c0_41 = arith.constant 0 : index
    %c0_42 = arith.constant 0 : index
    %107 = vector.load %arg10[%c0_41, %c0_42] : memref<32x64xbf16, #tpu.memory_space<vmem>>, vector<32x64xbf16>
    %cst_43 = arith.constant dense<0.000000e+00> : vector<8x64xf32>
    %108 = tpu.matmul %106, %107, %cst_43 {dimension_numbers = #tpu.dot_dimension_numbers<[1], [0], [0], [1], [0, 0, 1, 1], [], []>} : vector<8x32xbf16>, vector<32x64xbf16>, vector<8x64xf32> -> vector<8x64xf32>
    %c0_44 = arith.constant 0 : index
    %c0_45 = arith.constant 0 : index
    %109 = vector.load %arg11[%c0_44, %c0_45] : memref<1x64xf32, #tpu.memory_space<vmem>>, vector<1x64xf32>
    %110 = vector.broadcast %109 : vector<1x64xf32> to vector<8x64xf32>
    %111 = arith.addf %108, %110 : vector<8x64xf32>
    %112 = arith.truncf %111 : vector<8x64xf32> to vector<8x64xbf16>
    %c0_46 = arith.constant 0 : index
    %c0_47 = arith.constant 0 : index
    %113 = vector.load %arg12[%c0_46, %c0_47] : memref<64x64xbf16, #tpu.memory_space<vmem>>, vector<64x64xbf16>
    %cst_48 = arith.constant dense<0.000000e+00> : vector<8x64xf32>
    %114 = tpu.matmul %112, %113, %cst_48 {dimension_numbers = #tpu.dot_dimension_numbers<[1], [0], [0], [1], [0, 0, 1, 1], [], []>} : vector<8x64xbf16>, vector<64x64xbf16>, vector<8x64xf32> -> vector<8x64xf32>
    %c0_49 = arith.constant 0 : index
    %c0_50 = arith.constant 0 : index
    %115 = vector.load %arg13[%c0_49, %c0_50] : memref<1x64xf32, #tpu.memory_space<vmem>>, vector<1x64xf32>
    %116 = vector.broadcast %115 : vector<1x64xf32> to vector<8x64xf32>
    %117 = arith.addf %114, %116 : vector<8x64xf32>
    %118 = vector.extract_strided_slice %117 {offsets = [0, 0], sizes = [8, 32], strides = [1, 1]} : vector<8x64xf32> to vector<8x32xf32>
    %119 = vector.extract_strided_slice %117 {offsets = [0, 32], sizes = [8, 32], strides = [1, 1]} : vector<8x64xf32> to vector<8x32xf32>
    %120 = arith.negf %118 : vector<8x32xf32>
    %121 = math.exp %120 : vector<8x32xf32>
    %cst_51 = arith.constant 1.000000e+00 : f32
    %122 = vector.broadcast %cst_51 : f32 to vector<8x32xf32>
    %123 = arith.addf %122, %121 : vector<8x32xf32>
    %124 = arith.divf %122, %123 : vector<8x32xf32>
    %125 = arith.mulf %118, %124 : vector<8x32xf32>
    %126 = arith.mulf %125, %119 : vector<8x32xf32>
    %127 = arith.addf %79, %126 : vector<8x32xf32>
    %c0_52 = arith.constant 0 : index
    %c0_53 = arith.constant 0 : index
    %c0_54 = arith.constant 0 : index
    %128 = vector.load %arg16[%c0_52, %c0_53, %c0_54] : memref<1x8x32xf32, #tpu.memory_space<vmem>>, vector<1x8x32xf32>
    %129 = vector.shape_cast %128 : vector<1x8x32xf32> to vector<8x32xf32>
    %130 = vector.shape_cast %127 : vector<8x32xf32> to vector<1x8x32xf32>
    tpu.vector_store %arg16[%c0_52, %c0_53, %c0_54], %130 {strides = array<i32>} : memref<1x8x32xf32, #tpu.memory_space<vmem>>, vector<1x8x32xf32>,
    return
  }
  func.func @transform_0(%arg0: i32) -> (i32, i32, i32) {
    %c0_i32 = arith.constant 0 : i32
    %c0_i32_0 = arith.constant 0 : i32
    %c0_i32_1 = arith.constant 0 : i32
    return %arg0, %c0_i32, %c0_i32_0 : i32, i32, i32
  }
  func.func @transform_1(%arg0: i32) -> (i32, i32) {
    %c0_i32 = arith.constant 0 : i32
    %c0_i32_0 = arith.constant 0 : i32
    %c0_i32_1 = arith.constant 0 : i32
    return %c0_i32, %c0_i32_0 : i32, i32
  }
  func.func @transform_2(%arg0: i32) -> (i32, i32) {
    %c0_i32 = arith.constant 0 : i32
    %c0_i32_0 = arith.constant 0 : i32
    %c0_i32_1 = arith.constant 0 : i32
    return %c0_i32, %c0_i32_0 : i32, i32
  }
  func.func @transform_3(%arg0: i32) -> (i32, i32) {
    %c0_i32 = arith.constant 0 : i32
    %c0_i32_0 = arith.constant 0 : i32
    %c0_i32_1 = arith.constant 0 : i32
    return %c0_i32, %c0_i32_0 : i32, i32
  }
  func.func @transform_4(%arg0: i32) -> (i32, i32) {
    %c0_i32 = arith.constant 0 : i32
    %c0_i32_0 = arith.constant 0 : i32
    %c0_i32_1 = arith.constant 0 : i32
    return %c0_i32, %c0_i32_0 : i32, i32
  }
  func.func @transform_5(%arg0: i32) -> (i32, i32) {
    %c0_i32 = arith.constant 0 : i32
    %c0_i32_0 = arith.constant 0 : i32
    %c0_i32_1 = arith.constant 0 : i32
    return %c0_i32, %c0_i32_0 : i32, i32
  }
  func.func @transform_6(%arg0: i32) -> (i32, i32) {
    %c0_i32 = arith.constant 0 : i32
    %c0_i32_0 = arith.constant 0 : i32
    %c0_i32_1 = arith.constant 0 : i32
    return %c0_i32, %c0_i32_0 : i32, i32
  }
  func.func @transform_7(%arg0: i32) -> (i32, i32) {
    %c0_i32 = arith.constant 0 : i32
    %c0_i32_0 = arith.constant 0 : i32
    %c0_i32_1 = arith.constant 0 : i32
    return %c0_i32, %c0_i32_0 : i32, i32
  }
  func.func @transform_8(%arg0: i32) -> (i32, i32) {
    %c0_i32 = arith.constant 0 : i32
    %c0_i32_0 = arith.constant 0 : i32
    %c0_i32_1 = arith.constant 0 : i32
    return %c0_i32, %c0_i32_0 : i32, i32
  }
  func.func @transform_9(%arg0: i32) -> (i32, i32) {
    %c0_i32 = arith.constant 0 : i32
    %c0_i32_0 = arith.constant 0 : i32
    %c0_i32_1 = arith.constant 0 : i32
    return %c0_i32, %c0_i32_0 : i32, i32
  }
  func.func @transform_10(%arg0: i32) -> (i32, i32) {
    %c0_i32 = arith.constant 0 : i32
    %c0_i32_0 = arith.constant 0 : i32
    %c0_i32_1 = arith.constant 0 : i32
    return %c0_i32, %c0_i32_0 : i32, i32
  }
  func.func @transform_11(%arg0: i32) -> (i32, i32) {
    %c0_i32 = arith.constant 0 : i32
    %c0_i32_0 = arith.constant 0 : i32
    %c0_i32_1 = arith.constant 0 : i32
    return %c0_i32, %c0_i32_0 : i32, i32
  }
  func.func @transform_12(%arg0: i32) -> (i32, i32) {
    %c0_i32 = arith.constant 0 : i32
    %c0_i32_0 = arith.constant 0 : i32
    %c0_i32_1 = arith.constant 0 : i32
    return %c0_i32, %c0_i32_0 : i32, i32
  }
  func.func @transform_13(%arg0: i32) -> (i32, i32) {
    %c0_i32 = arith.constant 0 : i32
    %c0_i32_0 = arith.constant 0 : i32
    %c0_i32_1 = arith.constant 0 : i32
    return %c0_i32, %c0_i32_0 : i32, i32
  }
  func.func @transform_14(%arg0: i32) -> (i32, i32) {
    %c0_i32 = arith.constant 0 : i32
    %c0_i32_0 = arith.constant 0 : i32
    %c0_i32_1 = arith.constant 0 : i32
    return %c0_i32, %c0_i32_0 : i32, i32
  }
  func.func @transform_15(%arg0: i32) -> (i32, i32, i32) {
    %c0_i32 = arith.constant 0 : i32
    %c0_i32_0 = arith.constant 0 : i32
    %c0_i32_1 = arith.constant 0 : i32
    return %arg0, %c0_i32, %c0_i32_0 : i32, i32, i32
  }
}

</mosaic_0001>

<llo_original>
// kernel: tpu_custom_call.1
$region0: #{tpu_custom_call.1}
  #allocation0 [shape = 'u32[]', space=smem, size = 0x4, offset = 0x4, fixed_abs, tag = 'smem constant byte address 0x4 - core index']
  #allocation1 [shape = 'u32[144,128]{1,0:T(1,128)}', space=vmem, size = 0x12000, scoped, tag = 'internal scratch']
  %s0 = inlined_call_operand.hbm [shape: f32[2,8,32], index: 0, kind: input, shape index: {}]
  %s1 = inlined_call_operand.vmem [shape: f32[1,32], index: 1, kind: input, shape index: {}]
  %s2 = inlined_call_operand.hbm [shape: f32[1,32], index: 2, kind: input, shape index: {}]
  %s3 = inlined_call_operand.hbm [shape: f32[1,32], index: 3, kind: input, shape index: {}]
  %s4 = inlined_call_operand.hbm [shape: f32[1,32], index: 4, kind: input, shape index: {}]
  %s5 = inlined_call_operand.hbm [shape: bf16[32,96], index: 5, kind: input, shape index: {}]
  %s6 = inlined_call_operand.hbm [shape: f32[1,96], index: 6, kind: input, shape index: {}]
  %s7 = inlined_call_operand.hbm [shape: bf16[32,32], index: 7, kind: input, shape index: {}]
  %s8 = inlined_call_operand.hbm [shape: f32[1,32], index: 8, kind: input, shape index: {}]
  %s9 = inlined_call_operand.hbm [shape: bf16[32,64], index: 9, kind: input, shape index: {}]
  %s10 = inlined_call_operand.hbm [shape: f32[1,64], index: 10, kind: input, shape index: {}]
  %s11 = inlined_call_operand.vmem [shape: bf16[64,64], index: 11, kind: input, shape index: {}]
  %s12 = inlined_call_operand.vmem [shape: f32[1,64], index: 12, kind: input, shape index: {}]
  %s13 = inlined_call_operand.vmem [shape: bf16[8,32], index: 13, kind: input, shape index: {}]
  %s14 = inlined_call_operand.vmem [shape: bf16[8,32], index: 14, kind: input, shape index: {}]
  %s15 = inlined_call_operand.hbm [shape: f32[2,8,32], index: 15, kind: output, shape index: {}]
  %s16 = sld [smem:[#allocation0]]
  $region133: #{tpu_custom_call.1} parent=0
    _
  %s18 = ssub.s32 1, %s16
  %s19 = scalar_select 0, %s18, %s16
  $region1: #{tpu_custom_call.1} parent=0
    #allocation2 [shape = 'u8[8192]{0}', space=vmem, size = 0x2000, scoped, tag = 'input window, operand 0']
    #allocation3 [shape = 's32[2]{0}', space=sflag, size = 0x8, scoped, tag = 'scoped memory for tpu_custom_call.1']
    #allocation4 [shape = 's32[2]{0}', space=sflag, size = 0x8, scoped, tag = 'scoped memory for tpu_custom_call.1']
    #allocation5 [shape = 'u8[512]{0}', space=vmem, size = 0x400, scoped, tag = 'input window, operand 2, single buffered']
    #allocation6 [shape = 's32[1]{0}', space=sflag, size = 0x4, scoped, tag = 'scoped memory for tpu_custom_call.1']
    #allocation7 [shape = 'u8[512]{0}', space=vmem, size = 0x400, scoped, tag = 'input window, operand 3, single buffered']
    #allocation8 [shape = 'u8[512]{0}', space=vmem, size = 0x400, scoped, tag = 'input window, operand 4, single buffered']
    #allocation9 [shape = 's32[1]{0}', space=sflag, size = 0x4, scoped, tag = 'scoped memory for tpu_custom_call.1']
    #allocation10 [shape = 'u8[8192]{0}', space=vmem, size = 0x2000, scoped, tag = 'input window, operand 5, single buffered']
    #allocation11 [shape = 'u8[512]{0}', space=vmem, size = 0x400, scoped, tag = 'input window, operand 6, single buffered']
    #allocation12 [shape = 's32[1]{0}', space=sflag, size = 0x4, scoped, tag = 'scoped memory for tpu_custom_call.1']
    #allocation13 [shape = 'u8[8192]{0}', space=vmem, size = 0x2000, scoped, tag = 'input window, operand 7, single buffered']
    #allocation14 [shape = 'u8[512]{0}', space=vmem, size = 0x400, scoped, tag = 'input window, operand 8, single buffered']
    #allocation15 [shape = 's32[1]{0}', space=sflag, size = 0x4, scoped, tag = 'scoped memory for tpu_custom_call.1']
    #allocation16 [shape = 'u8[8192]{0}', space=vmem, size = 0x2000, scoped, tag = 'input window, operand 9, single buffered']
    #allocation17 [shape = 'u8[512]{0}', space=vmem, size = 0x400, scoped, tag = 'input window, operand 10, single buffered']
    #allocation18 [shape = 's32[1]{0}', space=sflag, size = 0x4, scoped, tag = 'scoped memory for tpu_custom_call.1']
    #allocation19 [shape = 'u8[8192]{0}', space=vmem, size = 0x2000, scoped, tag = 'output window, operand 0']
    %20 = vsyncpa [#allocation3], 0
    %s21 = scalar_lea.sflag [#allocation3], 1
    %22 = vsyncpa %s21, 0
    %23 = vsyncpa [#allocation6], 0
    %24 = vsyncpa [#allocation9], 0
    %25 = vsyncpa [#allocation12], 0
    %26 = vsyncpa [#allocation15], 0
    %27 = vsyncpa [#allocation18], 0
    %28 = vsyncpa [#allocation4], 0
    %s29 = scalar_lea.sflag [#allocation4], 1
    %30 = vsyncpa %s29, 0
    loop: start=0, step=1, limit=4
    $region2: #{tpu_custom_call.1} parent=1 // loop_pre_header
      _
    $region3: #{tpu_custom_call.1} parent=1 // loop_header
      %s32 = sphi 0, %s36
      %p33 = scmp.ge.s32.totalorder %s32, 4
      %s42 = sphi 0, %s44
      %s45 = sphi 0, %s42
      %s46 = sphi 0, %s45
      %s62 = sphi 0, %s46
      %s66 = sphi 0, %s66
      %s68 = sphi 0, %s66
      %s69 = sphi 0, %s68
      %s83 = sphi 0, %s69
      %s87 = sphi 0, %s87
      %s89 = sphi 0, %s87
      %s90 = sphi 0, %s89
      %s104 = sphi 0, %s90
      %s108 = sphi 0, %s108
      %s110 = sphi 0, %s108
      %s111 = sphi 0, %s110
      %s125 = sphi 0, %s111
      %s129 = sphi 0, %s129
      %s131 = sphi 0, %s129
      %s132 = sphi 0, %s131
      %s146 = sphi 0, %s132
      %s150 = sphi 0, %s150
      %s152 = sphi 0, %s150
      %s153 = sphi 0, %s152
      %s167 = sphi 0, %s153
      %s171 = sphi 0, %s171
      %s173 = sphi 0, %s171
      %s174 = sphi 0, %s173
      %s188 = sphi 0, %s174
      %s192 = sphi 0, %s192
      %s194 = sphi 0, %s192
      %s195 = sphi 0, %s194
      %s209 = sphi 0, %s195
      %s213 = sphi 0, %s213
      %s215 = sphi 0, %s213
      %s216 = sphi 0, %s215
      %s230 = sphi 0, %s216
      %s234 = sphi 0, %s234
      %s236 = sphi 0, %s234
      %s237 = sphi 0, %s236
      %s251 = sphi 0, %s237
      %s255 = sphi 0, %s255
      %s257 = sphi 0, %s255
      %s258 = sphi 0, %s257
      %s272 = sphi 0, %s258
      %s276 = sphi 0, %s276
      %s278 = sphi 0, %s276
      %s279 = sphi 0, %s278
      %s293 = sphi 0, %s279
      %s297 = sphi 0, %s297
      %s299 = sphi 0, %s297
      %s300 = sphi 0, %s299
      %s314 = sphi 0, %s300
      %s318 = sphi 0, %s318
      %s320 = sphi 0, %s318
      %s321 = sphi 0, %s320
      %s335 = sphi 0, %s321
      %s339 = sphi 0, %s339
      %s341 = sphi 0, %s339
      %s342 = sphi 0, %s341
      %s356 = sphi 0, %s342
      %s362 = sphi 0, %s364
      %s365 = sphi 0, %s362
      %s366 = sphi 0, %s365
      %s382 = sphi 0, %s366
    $region4: #{tpu_custom_call.1} parent=1 // loop_header_branch
      %35 = sbr.rel (%p33) target = $region8
    $region5: #{tpu_custom_call.1} parent=1 // loop_body
      %s37 = ssub.s32 %s32, 1
      %s38 = ssub.s32 %s32, 2
      %s39 = sadd.s32 %s32, 1
      %s40 = ssub.s32 %s32, %s39
      %p41 = scmp.eq.s32.totalorder %s40, 0
      %s43 = sadd.s32 %s42, 1
      %s44 = scalar_select %p41, %s42, %s43
      %p47 = pneg %p41
      %p48 = scmp.eq.s32.totalorder %s32, 1
      %p49 = por %p47, %p48
      %p50 = scmp.ne.s32.totalorder %s42, %s45
      %p51 = scmp.eq.s32.totalorder %s32, 0
      %p52 = por %p50, %p51
      %p53 = scmp.ne.s32.totalorder %s42, %s45
      %p54 = scmp.eq.s32.totalorder %s37, 1
      %p55 = por %p53, %p54
      %p56 = scmp.ne.s32.totalorder %s45, %s46
      %p57 = scmp.eq.s32.totalorder %s37, 0
      %p58 = por %p56, %p57
      %p59 = scmp.ne.s32.totalorder %s45, %s46
      %p60 = scmp.eq.s32.totalorder %s38, 1
      %p61 = por %p59, %p60
      %p63 = scmp.ne.s32.totalorder %s46, %s62
      %p64 = scmp.eq.s32.totalorder %s38, 0
      %p65 = por %p63, %p64
      %s67 = sadd.s32 %s66, 1
      %p70 = scmp.eq.s32.totalorder %s32, 1
      %p71 = scmp.ne.s32.totalorder %s66, %s68
      %p72 = scmp.eq.s32.totalorder %s32, 0
      %p73 = por %p71, %p72
      %p74 = scmp.ne.s32.totalorder %s66, %s68
      %p75 = scmp.eq.s32.totalorder %s37, 1
      %p76 = por %p74, %p75
      %p77 = scmp.ne.s32.totalorder %s68, %s69
      %p78 = scmp.eq.s32.totalorder %s37, 0
      %p79 = por %p77, %p78
      %p80 = scmp.ne.s32.totalorder %s68, %s69
      %p81 = scmp.eq.s32.totalorder %s38, 1
      %p82 = por %p80, %p81
      %p84 = scmp.ne.s32.totalorder %s69, %s83
      %p85 = scmp.eq.s32.totalorder %s38, 0
      %p86 = por %p84, %p85
      %s88 = sadd.s32 %s87, 1
      %p91 = scmp.eq.s32.totalorder %s32, 1
      %p92 = scmp.ne.s32.totalorder %s87, %s89
      %p93 = scmp.eq.s32.totalorder %s32, 0
      %p94 = por %p92, %p93
      %p95 = scmp.ne.s32.totalorder %s87, %s89
      %p96 = scmp.eq.s32.totalorder %s37, 1
      %p97 = por %p95, %p96
      %p98 = scmp.ne.s32.totalorder %s89, %s90
      %p99 = scmp.eq.s32.totalorder %s37, 0
      %p100 = por %p98, %p99
      %p101 = scmp.ne.s32.totalorder %s89, %s90
      %p102 = scmp.eq.s32.totalorder %s38, 1
      %p103 = por %p101, %p102
      %p105 = scmp.ne.s32.totalorder %s90, %s104
      %p106 = scmp.eq.s32.totalorder %s38, 0
      %p107 = por %p105, %p106
      %s109 = sadd.s32 %s108, 1
      %p112 = scmp.eq.s32.totalorder %s32, 1
      %p113 = scmp.ne.s32.totalorder %s108, %s110
      %p114 = scmp.eq.s32.totalorder %s32, 0
      %p115 = por %p113, %p114
      %p116 = scmp.ne.s32.totalorder %s108, %s110
      %p117 = scmp.eq.s32.totalorder %s37, 1
      %p118 = por %p116, %p117
      %p119 = scmp.ne.s32.totalorder %s110, %s111
      %p120 = scmp.eq.s32.totalorder %s37, 0
      %p121 = por %p119, %p120
      %p122 = scmp.ne.s32.totalorder %s110, %s111
      %p123 = scmp.eq.s32.totalorder %s38, 1
      %p124 = por %p122, %p123
      %p126 = scmp.ne.s32.totalorder %s111, %s125
      %p127 = scmp.eq.s32.totalorder %s38, 0
      %p128 = por %p126, %p127
      %s130 = sadd.s32 %s129, 1
      %p133 = scmp.eq.s32.totalorder %s32, 1
      %p134 = scmp.ne.s32.totalorder %s129, %s131
      %p135 = scmp.eq.s32.totalorder %s32, 0
      %p136 = por %p134, %p135
      %p137 = scmp.ne.s32.totalorder %s129, %s131
      %p138 = scmp.eq.s32.totalorder %s37, 1
      %p139 = por %p137, %p138
      %p140 = scmp.ne.s32.totalorder %s131, %s132
      %p141 = scmp.eq.s32.totalorder %s37, 0
      %p142 = por %p140, %p141
      %p143 = scmp.ne.s32.totalorder %s131, %s132
      %p144 = scmp.eq.s32.totalorder %s38, 1
      %p145 = por %p143, %p144
      %p147 = scmp.ne.s32.totalorder %s132, %s146
      %p148 = scmp.eq.s32.totalorder %s38, 0
      %p149 = por %p147, %p148
      %s151 = sadd.s32 %s150, 1
      %p154 = scmp.eq.s32.totalorder %s32, 1
      %p155 = scmp.ne.s32.totalorder %s150, %s152
      %p156 = scmp.eq.s32.totalorder %s32, 0
      %p157 = por %p155, %p156
      %p158 = scmp.ne.s32.totalorder %s150, %s152
      %p159 = scmp.eq.s32.totalorder %s37, 1
      %p160 = por %p158, %p159
      %p161 = scmp.ne.s32.totalorder %s152, %s153
      %p162 = scmp.eq.s32.totalorder %s37, 0
      %p163 = por %p161, %p162
      %p164 = scmp.ne.s32.totalorder %s152, %s153
      %p165 = scmp.eq.s32.totalorder %s38, 1
      %p166 = por %p164, %p165
      %p168 = scmp.ne.s32.totalorder %s153, %s167
      %p169 = scmp.eq.s32.totalorder %s38, 0
      %p170 = por %p168, %p169
      %s172 = sadd.s32 %s171, 1
      %p175 = scmp.eq.s32.totalorder %s32, 1
      %p176 = scmp.ne.s32.totalorder %s171, %s173
      %p177 = scmp.eq.s32.totalorder %s32, 0
      %p178 = por %p176, %p177
      %p179 = scmp.ne.s32.totalorder %s171, %s173
      %p180 = scmp.eq.s32.totalorder %s37, 1
      %p181 = por %p179, %p180
      %p182 = scmp.ne.s32.totalorder %s173, %s174
      %p183 = scmp.eq.s32.totalorder %s37, 0
      %p184 = por %p182, %p183
      %p185 = scmp.ne.s32.totalorder %s173, %s174
      %p186 = scmp.eq.s32.totalorder %s38, 1
      %p187 = por %p185, %p186
      %p189 = scmp.ne.s32.totalorder %s174, %s188
      %p190 = scmp.eq.s32.totalorder %s38, 0
      %p191 = por %p189, %p190
      %s193 = sadd.s32 %s192, 1
      %p196 = scmp.eq.s32.totalorder %s32, 1
      %p197 = scmp.ne.s32.totalorder %s192, %s194
      %p198 = scmp.eq.s32.totalorder %s32, 0
      %p199 = por %p197, %p198
      %p200 = scmp.ne.s32.totalorder %s192, %s194
      %p201 = scmp.eq.s32.totalorder %s37, 1
      %p202 = por %p200, %p201
      %p203 = scmp.ne.s32.totalorder %s194, %s195
      %p204 = scmp.eq.s32.totalorder %s37, 0
      %p205 = por %p203, %p204
      %p206 = scmp.ne.s32.totalorder %s194, %s195
      %p207 = scmp.eq.s32.totalorder %s38, 1
      %p208 = por %p206, %p207
      %p210 = scmp.ne.s32.totalorder %s195, %s209
      %p211 = scmp.eq.s32.totalorder %s38, 0
      %p212 = por %p210, %p211
      %s214 = sadd.s32 %s213, 1
      %p217 = scmp.eq.s32.totalorder %s32, 1
      %p218 = scmp.ne.s32.totalorder %s213, %s215
      %p219 = scmp.eq.s32.totalorder %s32, 0
      %p220 = por %p218, %p219
      %p221 = scmp.ne.s32.totalorder %s213, %s215
      %p222 = scmp.eq.s32.totalorder %s37, 1
      %p223 = por %p221, %p222
      %p224 = scmp.ne.s32.totalorder %s215, %s216
      %p225 = scmp.eq.s32.totalorder %s37, 0
      %p226 = por %p224, %p225
      %p227 = scmp.ne.s32.totalorder %s215, %s216
      %p228 = scmp.eq.s32.totalorder %s38, 1
      %p229 = por %p227, %p228
      %p231 = scmp.ne.s32.totalorder %s216, %s230
      %p232 = scmp.eq.s32.totalorder %s38, 0
      %p233 = por %p231, %p232
      %s235 = sadd.s32 %s234, 1
      %p238 = scmp.eq.s32.totalorder %s32, 1
      %p239 = scmp.ne.s32.totalorder %s234, %s236
      %p240 = scmp.eq.s32.totalorder %s32, 0
      %p241 = por %p239, %p240
      %p242 = scmp.ne.s32.totalorder %s234, %s236
      %p243 = scmp.eq.s32.totalorder %s37, 1
      %p244 = por %p242, %p243
      %p245 = scmp.ne.s32.totalorder %s236, %s237
      %p246 = scmp.eq.s32.totalorder %s37, 0
      %p247 = por %p245, %p246
      %p248 = scmp.ne.s32.totalorder %s236, %s237
      %p249 = scmp.eq.s32.totalorder %s38, 1
      %p250 = por %p248, %p249
      %p252 = scmp.ne.s32.totalorder %s237, %s251
      %p253 = scmp.eq.s32.totalorder %s38, 0
      %p254 = por %p252, %p253
      %s256 = sadd.s32 %s255, 1
      %p259 = scmp.eq.s32.totalorder %s32, 1
      %p260 = scmp.ne.s32.totalorder %s255, %s257
      %p261 = scmp.eq.s32.totalorder %s32, 0
      %p262 = por %p260, %p261
      %p263 = scmp.ne.s32.totalorder %s255, %s257
      %p264 = scmp.eq.s32.totalorder %s37, 1
      %p265 = por %p263, %p264
      %p266 = scmp.ne.s32.totalorder %s257, %s258
      %p267 = scmp.eq.s32.totalorder %s37, 0
      %p268 = por %p266, %p267
      %p269 = scmp.ne.s32.totalorder %s257, %s258
      %p270 = scmp.eq.s32.totalorder %s38, 1
      %p271 = por %p269, %p270
      %p273 = scmp.ne.s32.totalorder %s258, %s272
      %p274 = scmp.eq.s32.totalorder %s38, 0
      %p275 = por %p273, %p274
      %s277 = sadd.s32 %s276, 1
      %p280 = scmp.eq.s32.totalorder %s32, 1
      %p281 = scmp.ne.s32.totalorder %s276, %s278
      %p282 = scmp.eq.s32.totalorder %s32, 0
      %p283 = por %p281, %p282
      %p284 = scmp.ne.s32.totalorder %s276, %s278
      %p285 = scmp.eq.s32.totalorder %s37, 1
      %p286 = por %p284, %p285
      %p287 = scmp.ne.s32.totalorder %s278, %s279
      %p288 = scmp.eq.s32.totalorder %s37, 0
      %p289 = por %p287, %p288
      %p290 = scmp.ne.s32.totalorder %s278, %s279
      %p291 = scmp.eq.s32.totalorder %s38, 1
      %p292 = por %p290, %p291
      %p294 = scmp.ne.s32.totalorder %s279, %s293
      %p295 = scmp.eq.s32.totalorder %s38, 0
      %p296 = por %p294, %p295
      %s298 = sadd.s32 %s297, 1
      %p301 = scmp.eq.s32.totalorder %s32, 1
      %p302 = scmp.ne.s32.totalorder %s297, %s299
      %p303 = scmp.eq.s32.totalorder %s32, 0
      %p304 = por %p302, %p303
      %p305 = scmp.ne.s32.totalorder %s297, %s299
      %p306 = scmp.eq.s32.totalorder %s37, 1
      %p307 = por %p305, %p306
      %p308 = scmp.ne.s32.totalorder %s299, %s300
      %p309 = scmp.eq.s32.totalorder %s37, 0
      %p310 = por %p308, %p309
      %p311 = scmp.ne.s32.totalorder %s299, %s300
      %p312 = scmp.eq.s32.totalorder %s38, 1
      %p313 = por %p311, %p312
      %p315 = scmp.ne.s32.totalorder %s300, %s314
      %p316 = scmp.eq.s32.totalorder %s38, 0
      %p317 = por %p315, %p316
      %s319 = sadd.s32 %s318, 1
      %p322 = scmp.eq.s32.totalorder %s32, 1
      %p323 = scmp.ne.s32.totalorder %s318, %s320
      %p324 = scmp.eq.s32.totalorder %s32, 0
      %p325 = por %p323, %p324
      %p326 = scmp.ne.s32.totalorder %s318, %s320
      %p327 = scmp.eq.s32.totalorder %s37, 1
      %p328 = por %p326, %p327
      %p329 = scmp.ne.s32.totalorder %s320, %s321
      %p330 = scmp.eq.s32.totalorder %s37, 0
      %p331 = por %p329, %p330
      %p332 = scmp.ne.s32.totalorder %s320, %s321
      %p333 = scmp.eq.s32.totalorder %s38, 1
      %p334 = por %p332, %p333
      %p336 = scmp.ne.s32.totalorder %s321, %s335
      %p337 = scmp.eq.s32.totalorder %s38, 0
      %p338 = por %p336, %p337
      %s340 = sadd.s32 %s339, 1
      %p343 = scmp.eq.s32.totalorder %s32, 1
      %p344 = scmp.ne.s32.totalorder %s339, %s341
      %p345 = scmp.eq.s32.totalorder %s32, 0
      %p346 = por %p344, %p345
      %p347 = scmp.ne.s32.totalorder %s339, %s341
      %p348 = scmp.eq.s32.totalorder %s37, 1
      %p349 = por %p347, %p348
      %p350 = scmp.ne.s32.totalorder %s341, %s342
      %p351 = scmp.eq.s32.totalorder %s37, 0
      %p352 = por %p350, %p351
      %p353 = scmp.ne.s32.totalorder %s341, %s342
      %p354 = scmp.eq.s32.totalorder %s38, 1
      %p355 = por %p353, %p354
      %p357 = scmp.ne.s32.totalorder %s342, %s356
      %p358 = scmp.eq.s32.totalorder %s38, 0
      %p359 = por %p357, %p358
      %s360 = ssub.s32 %s32, %s39
      %p361 = scmp.eq.s32.totalorder %s360, 0
      %s363 = sadd.s32 %s362, 1
      %s364 = scalar_select %p361, %s362, %s363
      %p367 = pneg %p361
      %p368 = scmp.eq.s32.totalorder %s32, 1
      %p369 = por %p367, %p368
      %p370 = scmp.ne.s32.totalorder %s362, %s365
      %p371 = scmp.eq.s32.totalorder %s32, 0
      %p372 = por %p370, %p371
      %p373 = scmp.ne.s32.totalorder %s362, %s365
      %p374 = scmp.eq.s32.totalorder %s37, 1
      %p375 = por %p373, %p374
      %p376 = scmp.ne.s32.totalorder %s365, %s366
      %p377 = scmp.eq.s32.totalorder %s37, 0
      %p378 = por %p376, %p377
      %p379 = scmp.ne.s32.totalorder %s365, %s366
      %p380 = scmp.eq.s32.totalorder %s38, 1
      %p381 = por %p379, %p380
      %p383 = scmp.ne.s32.totalorder %s366, %s382
      %p384 = scmp.eq.s32.totalorder %s38, 0
      %p385 = por %p383, %p384
      %p386 = scmp.le.s32.totalorder 1, %s32
      %p387 = scmp.lt.s32.totalorder %s32, 3
      %p388 = pnand %p386, %p387
      %p389 = pneg %p388
      // Predicated region
      $region9: #{tpu_custom_call.1} parent=5 // pred_check
        _
      $region10: #{tpu_custom_call.1} parent=5 // pred_check_branch
        %391 = sbr.rel (%p388) target = $region12
      $region11: #{tpu_custom_call.1} parent=5 // pred_region
        %s392 = ssub.s32 %s32, 1
        // Predicated region
        $region13: #{tpu_custom_call.1} parent=11 // pred_check
          %p393 = pneg %p79
        $region14: #{tpu_custom_call.1} parent=11 // pred_check_branch
          %395 = sbr.rel (%p393) target = $region16
        $region15: #{tpu_custom_call.1} parent=11 // pred_region
          _
        $region16: #{tpu_custom_call.1} parent=11 // pred_fallthru
          _
        // Predicated region
        $region17: #{tpu_custom_call.1} parent=11 // pred_check
          %p396 = pneg %p100
        $region18: #{tpu_custom_call.1} parent=11 // pred_check_branch
          %398 = sbr.rel (%p396) target = $region20
        $region19: #{tpu_custom_call.1} parent=11 // pred_region
          %s400 = ssub.s32 16, 16
          %401 = vsyncadd [#allocation6], %s400
          %s403 = sshll.u32 [#allocation5], 4
          %s404 = int_to_ptr.vmem [resolvable:$true] %s403
          %406 = dma.hbm_to_vmem [thread:$0]  %s2, 16, %s404, [#allocation6]
        $region20: #{tpu_custom_call.1} parent=11 // pred_fallthru
          _
        // Predicated region
        $region21: #{tpu_custom_call.1} parent=11 // pred_check
          %p407 = pneg %p121
        $region22: #{tpu_custom_call.1} parent=11 // pred_check_branch
          %409 = sbr.rel (%p407) target = $region24
        $region23: #{tpu_custom_call.1} parent=11 // pred_region
          %s411 = ssub.s32 16, 16
          %412 = vsyncadd [#allocation6], %s411
          %s414 = sshll.u32 [#allocation7], 4
          %s415 = int_to_ptr.vmem [resolvable:$true] %s414
          %417 = dma.hbm_to_vmem [thread:$0]  %s3, 16, %s415, [#allocation6]
        $region24: #{tpu_custom_call.1} parent=11 // pred_fallthru
          _
        // Predicated region
        $region25: #{tpu_custom_call.1} parent=11 // pred_check
          %p418 = pneg %p142
        $region26: #{tpu_custom_call.1} parent=11 // pred_check_branch
          %420 = sbr.rel (%p418) target = $region28
        $region27: #{tpu_custom_call.1} parent=11 // pred_region
          %s422 = ssub.s32 16, 16
          %423 = vsyncadd [#allocation9], %s422
          %s425 = sshll.u32 [#allocation8], 4
          %s426 = int_to_ptr.vmem [resolvable:$true] %s425
          %428 = dma.hbm_to_vmem [thread:$0]  %s4, 16, %s426, [#allocation9]
        $region28: #{tpu_custom_call.1} parent=11 // pred_fallthru
          _
        // Predicated region
        $region29: #{tpu_custom_call.1} parent=11 // pred_check
          %p429 = pneg %p163
        $region30: #{tpu_custom_call.1} parent=11 // pred_check_branch
          %431 = sbr.rel (%p429) target = $region32
        $region31: #{tpu_custom_call.1} parent=11 // pred_region
          %s433 = ssub.s32 256, 256
          %434 = vsyncadd [#allocation9], %s433
          %s435 = sshll.u32 [#allocation10], 4
          %s436 = int_to_ptr.vmem [resolvable:$true] %s435
          %441 = dma.hbm_to_vmem [thread:$0]  %s5, 256, %s436, [#allocation9], 64, 64, 4
        $region32: #{tpu_custom_call.1} parent=11 // pred_fallthru
          _
        // Predicated region
        $region33: #{tpu_custom_call.1} parent=11 // pred_check
          %p442 = pneg %p184
        $region34: #{tpu_custom_call.1} parent=11 // pred_check_branch
          %444 = sbr.rel (%p442) target = $region36
        $region35: #{tpu_custom_call.1} parent=11 // pred_region
          %s446 = ssub.s32 16, 16
          %447 = vsyncadd [#allocation12], %s446
          %s449 = sshll.u32 [#allocation11], 4
          %s450 = int_to_ptr.vmem [resolvable:$true] %s449
          %452 = dma.hbm_to_vmem [thread:$0]  %s6, 16, %s450, [#allocation12]
        $region36: #{tpu_custom_call.1} parent=11 // pred_fallthru
          _
        // Predicated region
        $region37: #{tpu_custom_call.1} parent=11 // pred_check
          %p453 = pneg %p205
        $region38: #{tpu_custom_call.1} parent=11 // pred_check_branch
          %455 = sbr.rel (%p453) target = $region40
        $region39: #{tpu_custom_call.1} parent=11 // pred_region
          %s457 = ssub.s32 256, 256
          %458 = vsyncadd [#allocation12], %s457
          %s459 = sshll.u32 [#allocation13], 4
          %s460 = int_to_ptr.vmem [resolvable:$true] %s459
          %465 = dma.hbm_to_vmem [thread:$0]  %s7, 256, %s460, [#allocation12], 64, 64, 4
        $region40: #{tpu_custom_call.1} parent=11 // pred_fallthru
          _
        // Predicated region
        $region41: #{tpu_custom_call.1} parent=11 // pred_check
          %p466 = pneg %p226
        $region42: #{tpu_custom_call.1} parent=11 // pred_check_branch
          %468 = sbr.rel (%p466) target = $region44
        $region43: #{tpu_custom_call.1} parent=11 // pred_region
          %s470 = ssub.s32 16, 16
          %471 = vsyncadd [#allocation15], %s470
          %s473 = sshll.u32 [#allocation14], 4
          %s474 = int_to_ptr.vmem [resolvable:$true] %s473
          %476 = dma.hbm_to_vmem [thread:$0]  %s8, 16, %s474, [#allocation15]
        $region44: #{tpu_custom_call.1} parent=11 // pred_fallthru
          _
        // Predicated region
        $region45: #{tpu_custom_call.1} parent=11 // pred_check
          %p477 = pneg %p247
        $region46: #{tpu_custom_call.1} parent=11 // pred_check_branch
          %479 = sbr.rel (%p477) target = $region48
        $region47: #{tpu_custom_call.1} parent=11 // pred_region
          %s481 = ssub.s32 256, 256
          %482 = vsyncadd [#allocation15], %s481
          %s483 = sshll.u32 [#allocation16], 4
          %s484 = int_to_ptr.vmem [resolvable:$true] %s483
          %489 = dma.hbm_to_vmem [thread:$0]  %s9, 256, %s484, [#allocation15], 64, 64, 4
        $region48: #{tpu_custom_call.1} parent=11 // pred_fallthru
          _
        // Predicated region
        $region49: #{tpu_custom_call.1} parent=11 // pred_check
          %p490 = pneg %p268
        $region50: #{tpu_custom_call.1} parent=11 // pred_check_branch
          %492 = sbr.rel (%p490) target = $region52
        $region51: #{tpu_custom_call.1} parent=11 // pred_region
          %s494 = ssub.s32 16, 16
          %495 = vsyncadd [#allocation18], %s494
          %s497 = sshll.u32 [#allocation17], 4
          %s498 = int_to_ptr.vmem [resolvable:$true] %s497
          %500 = dma.hbm_to_vmem [thread:$0]  %s10, 16, %s498, [#allocation18]
        $region52: #{tpu_custom_call.1} parent=11 // pred_fallthru
          _
        // Predicated region
        $region53: #{tpu_custom_call.1} parent=11 // pred_check
          %p501 = pneg %p289
        $region54: #{tpu_custom_call.1} parent=11 // pred_check_branch
          %503 = sbr.rel (%p501) target = $region56
        $region55: #{tpu_custom_call.1} parent=11 // pred_region
          _
        $region56: #{tpu_custom_call.1} parent=11 // pred_fallthru
          _
        // Predicated region
        $region57: #{tpu_custom_call.1} parent=11 // pred_check
          %p504 = pneg %p310
        $region58: #{tpu_custom_call.1} parent=11 // pred_check_branch
          %506 = sbr.rel (%p504) target = $region60
        $region59: #{tpu_custom_call.1} parent=11 // pred_region
          _
        $region60: #{tpu_custom_call.1} parent=11 // pred_fallthru
          _
        // Predicated region
        $region61: #{tpu_custom_call.1} parent=11 // pred_check
          %p507 = pneg %p331
        $region62: #{tpu_custom_call.1} parent=11 // pred_check_branch
          %509 = sbr.rel (%p507) target = $region64
        $region63: #{tpu_custom_call.1} parent=11 // pred_region
          _
        $region64: #{tpu_custom_call.1} parent=11 // pred_fallthru
          _
        // Predicated region
        $region65: #{tpu_custom_call.1} parent=11 // pred_check
          %p510 = pneg %p352
        $region66: #{tpu_custom_call.1} parent=11 // pred_check_branch
          %512 = sbr.rel (%p510) target = $region68
        $region67: #{tpu_custom_call.1} parent=11 // pred_region
          _
        $region68: #{tpu_custom_call.1} parent=11 // pred_fallthru
          _
      $region12: #{tpu_custom_call.1} parent=5 // pred_fallthru
        _
      %p513 = scmp.lt.s32.totalorder %s32, 2
      // Predicated region
      $region69: #{tpu_custom_call.1} parent=5 // pred_check
        %p514 = pneg %p513
      $region70: #{tpu_custom_call.1} parent=5 // pred_check_branch
        %516 = sbr.rel (%p514) target = $region72
      $region71: #{tpu_custom_call.1} parent=5 // pred_region
        // Predicated region
        $region73: #{tpu_custom_call.1} parent=71 // pred_check
          %p517 = pneg %p52
        $region74: #{tpu_custom_call.1} parent=71 // pred_check_branch
          %519 = sbr.rel (%p517) target = $region76
        $region75: #{tpu_custom_call.1} parent=71 // pred_region
          %s520 = sand.u32 %s42, 1
          %s521 = scalar_lea.sflag [#allocation3], %s520
          %s522 = sand.u32 %s42, 1
          %s523 = smul.addr %s522, 8
          %s524 = scalar_lea.vmem [#allocation2], %s523
          %s526 = ssub.s32 128, 128
          %527 = vsyncadd %s521, %s526
          %s528 = smul.addr %s32, 128
          %s529 = scalar_lea.hbm %s0, %s528
          %s531 = sshll.u32 %s524, 4
          %s532 = int_to_ptr.vmem [resolvable:$true] %s531
          %534 = dma.hbm_to_vmem [thread:$0]  %s529, 128, %s532, %s521
        $region76: #{tpu_custom_call.1} parent=71 // pred_fallthru
          _
      $region72: #{tpu_custom_call.1} parent=5 // pred_fallthru
        _
      %p535 = scmp.le.s32.totalorder 1, %s32
      %p536 = scmp.lt.s32.totalorder %s32, 3
      %p537 = pnand %p535, %p536
      %p538 = pneg %p537
      // Predicated region
      $region77: #{tpu_custom_call.1} parent=5 // pred_check
        _
      $region78: #{tpu_custom_call.1} parent=5 // pred_check_branch
        %540 = sbr.rel (%p537) target = $region80
      $region79: #{tpu_custom_call.1} parent=5 // pred_region
        %s541 = ssub.s32 %s32, 1
        %s542 = sand.u32 %s45, 1
        %s543 = scalar_lea.sflag [#allocation3], %s542
        %s544 = sand.u32 %s45, 1
        %s545 = smul.addr %s544, 8
        %s546 = scalar_lea.vmem [#allocation2], %s545
        // Predicated region
        $region81: #{tpu_custom_call.1} parent=79 // pred_check
          %p547 = pneg %p58
        $region82: #{tpu_custom_call.1} parent=79 // pred_check_branch
          %549 = sbr.rel (%p547) target = $region84
        $region83: #{tpu_custom_call.1} parent=79 // pred_region
          %550 = dma.done %s543, 128
        $region84: #{tpu_custom_call.1} parent=79 // pred_fallthru
          _
        // Predicated region
        $region85: #{tpu_custom_call.1} parent=79 // pred_check
          %p551 = pneg %p100
        $region86: #{tpu_custom_call.1} parent=79 // pred_check_branch
          %553 = sbr.rel (%p551) target = $region88
        $region87: #{tpu_custom_call.1} parent=79 // pred_region
          %554 = dma.done [#allocation6], 16
        $region88: #{tpu_custom_call.1} parent=79 // pred_fallthru
          _
        // Predicated region
        $region89: #{tpu_custom_call.1} parent=79 // pred_check
          %p555 = pneg %p121
        $region90: #{tpu_custom_call.1} parent=79 // pred_check_branch
          %557 = sbr.rel (%p555) target = $region92
        $region91: #{tpu_custom_call.1} parent=79 // pred_region
          %558 = dma.done [#allocation6], 16
        $region92: #{tpu_custom_call.1} parent=79 // pred_fallthru
          _
        // Predicated region
        $region93: #{tpu_custom_call.1} parent=79 // pred_check
          %p559 = pneg %p142
        $region94: #{tpu_custom_call.1} parent=79 // pred_check_branch
          %561 = sbr.rel (%p559) target = $region96
        $region95: #{tpu_custom_call.1} parent=79 // pred_region
          %562 = dma.done [#allocation9], 16
        $region96: #{tpu_custom_call.1} parent=79 // pred_fallthru
          _
        // Predicated region
        $region97: #{tpu_custom_call.1} parent=79 // pred_check
          %p563 = pneg %p163
        $region98: #{tpu_custom_call.1} parent=79 // pred_check_branch
          %565 = sbr.rel (%p563) target = $region100
        $region99: #{tpu_custom_call.1} parent=79 // pred_region
          %566 = dma.done [#allocation9], 256
        $region100: #{tpu_custom_call.1} parent=79 // pred_fallthru
          _
        // Predicated region
        $region101: #{tpu_custom_call.1} parent=79 // pred_check
          %p567 = pneg %p184
        $region102: #{tpu_custom_call.1} parent=79 // pred_check_branch
          %569 = sbr.rel (%p567) target = $region104
        $region103: #{tpu_custom_call.1} parent=79 // pred_region
          %570 = dma.done [#allocation12], 16
        $region104: #{tpu_custom_call.1} parent=79 // pred_fallthru
          _
        // Predicated region
        $region105: #{tpu_custom_call.1} parent=79 // pred_check
          %p571 = pneg %p205
        $region106: #{tpu_custom_call.1} parent=79 // pred_check_branch
          %573 = sbr.rel (%p571) target = $region108
        $region107: #{tpu_custom_call.1} parent=79 // pred_region
          %574 = dma.done [#allocation12], 256
        $region108: #{tpu_custom_call.1} parent=79 // pred_fallthru
          _
        // Predicated region
        $region109: #{tpu_custom_call.1} parent=79 // pred_check
          %p575 = pneg %p226
        $region110: #{tpu_custom_call.1} parent=79 // pred_check_branch
          %577 = sbr.rel (%p575) target = $region112
        $region111: #{tpu_custom_call.1} parent=79 // pred_region
          %578 = dma.done [#allocation15], 16
        $region112: #{tpu_custom_call.1} parent=79 // pred_fallthru
          _
        // Predicated region
        $region113: #{tpu_custom_call.1} parent=79 // pred_check
          %p579 = pneg %p247
        $region114: #{tpu_custom_call.1} parent=79 // pred_check_branch
          %581 = sbr.rel (%p579) target = $region116
        $region115: #{tpu_custom_call.1} parent=79 // pred_region
          %582 = dma.done [#allocation15], 256
        $region116: #{tpu_custom_call.1} parent=79 // pred_fallthru
          _
        // Predicated region
        $region117: #{tpu_custom_call.1} parent=79 // pred_check
          %p583 = pneg %p268
        $region118: #{tpu_custom_call.1} parent=79 // pred_check_branch
          %585 = sbr.rel (%p583) target = $region120
        $region119: #{tpu_custom_call.1} parent=79 // pred_region
          %586 = dma.done [#allocation18], 16
        $region120: #{tpu_custom_call.1} parent=79 // pred_fallthru
          _
        %s587 = sand.u32 %s45, 1
        %s588 = scalar_lea.sflag [#allocation3], %s587
        %s589 = sand.u32 %s45, 1
        %s590 = smul.addr %s589, 8
        %s591 = scalar_lea.vmem [#allocation2], %s590
        %p592 = pneg %p58
        %p593 = pneg %p55
        %p594 = pneg %p79
        %p595 = pneg %p76
        %p596 = pneg %p100
        %p597 = pneg %p97
        %p598 = pneg %p121
        %p599 = pneg %p118
        %p600 = pneg %p142
        %p601 = pneg %p139
        %p602 = pneg %p163
        %p603 = pneg %p160
        %p604 = pneg %p184
        %p605 = pneg %p181
        %p606 = pneg %p205
        %p607 = pneg %p202
        %p608 = pneg %p226
        %p609 = pneg %p223
        %p610 = pneg %p247
        %p611 = pneg %p244
        %p612 = pneg %p268
        %p613 = pneg %p265
        %p614 = pneg %p289
        %p615 = pneg %p286
        %p616 = pneg %p310
        %p617 = pneg %p307
        %p618 = pneg %p331
        %p619 = pneg %p328
        %p620 = pneg %p352
        %p621 = pneg %p349
        %p622 = pneg %p378
        %p623 = pneg %p375
        %s624 = sand.u32 %s365, 1
        %s625 = scalar_lea.sflag [#allocation4], %s624
        %s626 = sand.u32 %s365, 1
        %s627 = smul.addr %s626, 8
        %s628 = scalar_lea.vmem [#allocation19], %s627
        %v630 = vld [vmem:[%s546] sm:$0xff]
        %v631 = vld [vmem:[%s13] sm:$0xf]
        %v632 = vunpack.c.l.bf16 %v631
        %v633 = vld [vmem:[%s14] sm:$0xf]
        %v634 = vunpack.c.l.bf16 %v633
        %v635 = vld [vmem:[%s1] sm:$0x1]
        %v636 = vld [vmem:[#allocation5] sm:$0x1]
        %vm637 = vcmask 261120
        %v638 = vsel %vm637, %v630, 0.0
        %639 = vadd.xlane.f32.xlu0 %v638
        %v640 = vpop.xlane.xlu0 %639
        %v641 = vrcp.pop 32.0
        %v642 = vmul.f32 %v640, %v641
        %v643 = vmul.f32 %v630, %v630
        %v644 = vsel %vm637, %v643, 0.0
        %645 = vadd.xlane.f32.xlu0 %v644
        %v646 = vpop.xlane.xlu0 %645
        %v647 = vmul.f32 %v646, %v641
        %v648 = vmul.f32 %v642, %v642
        %v649 = vsub.f32 %v647, %v648
        %v650 = vmax.f32 %v649, 0.0
        %v651 = vsub.f32 %v630, %v642
        %v652 = vadd.f32 %v650, 1e-05
        %v653 = vrsqrt.pop %v652
        %v654 = vmul.f32 %v651, %v653
        %v656 = vlaneseq
        %v657 = vshrl.u32 %v656, 7
        %v658 = vsub.s32 0, %v657
        %v659 = vrot.slane %v635, %v658
        %v661 = vmul.f32 %v654, %v659
        %v663 = vlaneseq
        %v664 = vshrl.u32 %v663, 7
        %v665 = vsub.s32 0, %v664
        %v666 = vrot.slane %v636, %v665
        %v668 = vadd.f32 %v661, %v666
        %v669 = vpack.c.bf16 %v668, %v668
        %v670 = vld [vmem:[#allocation10] sm:$0xf]
        %v671 = vld [vmem:[#allocation10 + $0x4] sm:$0xf]
        %v672 = vld [vmem:[#allocation10 + $0x8] sm:$0xf]
        %v673 = vld [vmem:[#allocation10 + $0xc] sm:$0xf]
        %v674 = vld [vmem:[#allocation11] sm:$0x1]
        %v676 = vlaneseq
        %v677 = vshrl.u32 %v676, 7
        %v678 = vsub.s32 0, %v677
        %v679 = vrot.slane %v674, %v678
        %v685 = vunpack.c.l.b16 %v670
        %v686 = vunpack.c.l.b16 %v671
        %v687 = vunpack.c.l.b16 %v672
        %v688 = vunpack.c.l.b16 %v673
        %v689 = vpack.c.b16 %v686, %v685
        %v690 = vpack.c.b16 %v688, %v687
        %v694 = vsel %vm637, %v669, 0
        %696 = vmatprep.subr.bf16.mxu0 0
        %697 = vmatpush1.bf16.msra.mxu0 %v689
        %698 = vmatprep.subr.bf16.mxu0 0
        %699 = vmatpush1.bf16.msra.mxu0 %v690
        %700 = vmatprep.subr.bf16.mxu0 0
        %701 = vmatpush1.bf16.msra.mxu0 0
        %702 = vmatprep.subr.bf16.mxu0 0
        %703 = vmatpush1.bf16.msra.mxu0 0
        %704 = vmatprep.subr.bf16.mxu0 0
        %705 = vmatpush1.bf16.msra.mxu0 0
        %706 = vmatprep.subr.bf16.mxu0 0
        %707 = vmatpush1.bf16.msra.mxu0 0
        %708 = vmatprep.subr.bf16.mxu0 0
        %709 = vmatpush1.bf16.msra.mxu0 0
        %710 = vmatprep.subr.bf16.mxu0 0
        %711 = vmatpush1.bf16.msra.mxu0 0
        %712 = vmatprep.subr.bf16.mxu0 0
        %713 = vmatpush1.bf16.msra.mxu0 0
        %714 = vmatprep.subr.bf16.mxu0 0
        %715 = vmatpush1.bf16.msra.mxu0 0
        %716 = vmatprep.subr.bf16.mxu0 0
        %717 = vmatpush1.bf16.msra.mxu0 0
        %718 = vmatprep.subr.bf16.mxu0 0
        %719 = vmatpush1.bf16.msra.mxu0 0
        %720 = vmatprep.subr.bf16.mxu0 0
        %721 = vmatpush1.bf16.msra.mxu0 0
        %722 = vmatprep.subr.bf16.mxu0 0
        %723 = vmatpush1.bf16.msra.mxu0 0
        %724 = vmatprep.subr.bf16.mxu0 0
        %725 = vmatpush1.bf16.msra.mxu0 0
        %726 = vmatprep.subr.bf16.mxu0 0
        %727 = vmatpush1.bf16.msra.mxu0 0
        %728 = vmatprep.mubr.bf16.mxu0 0
        %729 = vmatmul.mubr.bf16.gmra.mrb[0].mxu0 %v694
        %v730 = vpop.f32.mrb[0].mxu0
        %v731 = vadd.f32 %v679, %v730
        %v732 = vpop.f32.mrb[0].mxu0
        %v733 = vpop.f32.mrb[0].mxu0
        %v734 = vpop.f32.mrb[0].mxu0
        %735 = vdwg.mxu0
        %737 = vrot.lane.b32.xlu0 %v731, 112
        %v738 = vpop.permute.xlu0 %737
        %740 = vrot.lane.b32.xlu0 %v731, 16
        %v741 = vpop.permute.xlu0 %740
        %vm743 = vcmask 130048
        %v744 = vsel %vm743, %v738, %v741
        %v745 = vmul.f32 %v731, %v632
        %v746 = vmul.f32 %v744, %v634
        %v747 = vadd.f32 %v745, %v746
        %v748 = vmul.f32 %v747, 0.17677669
        %v749 = vpack.c.bf16 %v748, %v748
        %750 = vrot.lane.b32.xlu0 %v731, 80
        %v751 = vpop.permute.xlu0 %750
        %v753 = vsel %vm743, %v751, %v738
        %755 = vrot.lane.b32.xlu0 %v632, 32
        %v756 = vpop.permute.xlu0 %755
        %v758 = vmul.f32 %v731, %v756
        %v759 = vmul.f32 %v753, %v634
        %761 = vrot.lane.b32.xlu0 %v759, 32
        %v762 = vpop.permute.xlu0 %761
        %v764 = vadd.f32 %v758, %v762
        %v765 = vpack.c.bf16 %v764, %v764
        %767 = vrot.lane.b32.xlu0 %v765, 96
        %v768 = vpop.permute.xlu0 %767
        %v770 = vsel %vm637, %v749, 0
        %v773 = vsel %vm637, %v768, 0
        %775 = vmatprep.subr.bf16.mxu0 0
        %776 = vmatpush1.bf16.xpose.msra.mxu0 %v773
        %777 = vmatprep.subr.bf16.mxu0 0
        %778 = vmatpush1.bf16.xpose.msra.mxu0 0
        %779 = vmatprep.subr.bf16.mxu0 0
        %780 = vmatpush1.bf16.xpose.msra.mxu0 0
        %781 = vmatprep.subr.bf16.mxu0 0
        %782 = vmatpush1.bf16.xpose.msra.mxu0 0
        %783 = vmatprep.subr.bf16.mxu0 0
        %784 = vmatpush1.bf16.xpose.msra.mxu0 0
        %785 = vmatprep.subr.bf16.mxu0 0
        %786 = vmatpush1.bf16.xpose.msra.mxu0 0
        %787 = vmatprep.subr.bf16.mxu0 0
        %788 = vmatpush1.bf16.xpose.msra.mxu0 0
        %789 = vmatprep.subr.bf16.mxu0 0
        %790 = vmatpush1.bf16.xpose.msra.mxu0 0
        %791 = vmatprep.subr.bf16.mxu0 0
        %792 = vmatpush1.bf16.xpose.msra.mxu0 0
        %793 = vmatprep.subr.bf16.mxu0 0
        %794 = vmatpush1.bf16.xpose.msra.mxu0 0
        %795 = vmatprep.subr.bf16.mxu0 0
        %796 = vmatpush1.bf16.xpose.msra.mxu0 0
        %797 = vmatprep.subr.bf16.mxu0 0
        %798 = vmatpush1.bf16.xpose.msra.mxu0 0
        %799 = vmatprep.subr.bf16.mxu0 0
        %800 = vmatpush1.bf16.xpose.msra.mxu0 0
        %801 = vmatprep.subr.bf16.mxu0 0
        %802 = vmatpush1.bf16.xpose.msra.mxu0 0
        %803 = vmatprep.subr.bf16.mxu0 0
        %804 = vmatpush1.bf16.xpose.msra.mxu0 0
        %805 = vmatprep.subr.bf16.mxu0 0
        %806 = vmatpush1.bf16.xpose.msra.mxu0 0
        %807 = vmatprep.mubr.bf16.mxu0 0
        %808 = vmatmul.mubr.bf16.gmra.mrb[0].mxu0 %v770
        %v809 = vpop.f32.mrb[0].mxu0
        %v810 = vadd.f32 0.0, %v809
        %v811 = vpop.f32.mrb[0].mxu0
        %v812 = vpop.f32.mrb[0].mxu0
        %v813 = vpop.f32.mrb[0].mxu0
        %814 = vdwg.mxu0
        %vm815 = vcmask 64512
        %v816 = vsel %vm815, %v810, -inf
        %817 = vmax.xlane.f32.xlu0 %v816
        %v818 = vpop.xlane.xlu0 %817
        %v819 = vsub.f32 %v810, %v818
        %v820 = vmul.f32 %v819, 1.442695
        %v821 = vpow.pop %v820
        %v822 = vsel %vm815, %v821, 0.0
        %823 = vadd.xlane.f32.xlu0 %v822
        %v824 = vpop.xlane.xlu0 %823
        %v825 = vrcp.pop %v824
        %v826 = vmul.f32 %v821, %v825
        %v827 = vpack.c.bf16 %v826, %v826
        %v828 = vpack.c.bf16 %v731, %v731
        %830 = vrot.lane.b32.xlu0 %v828, 64
        %v831 = vpop.permute.xlu0 %830
        %v833 = vsel %vm815, %v827, 0
        %vm835 = vcmask 1043456
        %v837 = vsel %vm835, %v831, 0
        %839 = vmatprep.subr.bf16.mxu0 0
        %840 = vmatpush1.bf16.msra.mxu0 %v837
        %841 = vmatprep.subr.bf16.mxu0 0
        %842 = vmatpush1.bf16.msra.mxu0 0
        %843 = vmatprep.subr.bf16.mxu0 0
        %844 = vmatpush1.bf16.msra.mxu0 0
        %845 = vmatprep.subr.bf16.mxu0 0
        %846 = vmatpush1.bf16.msra.mxu0 0
        %847 = vmatprep.subr.bf16.mxu0 0
        %848 = vmatpush1.bf16.msra.mxu0 0
        %849 = vmatprep.subr.bf16.mxu0 0
        %850 = vmatpush1.bf16.msra.mxu0 0
        %851 = vmatprep.subr.bf16.mxu0 0
        %852 = vmatpush1.bf16.msra.mxu0 0
        %853 = vmatprep.subr.bf16.mxu0 0
        %854 = vmatpush1.bf16.msra.mxu0 0
        %855 = vmatprep.subr.bf16.mxu0 0
        %856 = vmatpush1.bf16.msra.mxu0 0
        %857 = vmatprep.subr.bf16.mxu0 0
        %858 = vmatpush1.bf16.msra.mxu0 0
        %859 = vmatprep.subr.bf16.mxu0 0
        %860 = vmatpush1.bf16.msra.mxu0 0
        %861 = vmatprep.subr.bf16.mxu0 0
        %862 = vmatpush1.bf16.msra.mxu0 0
        %863 = vmatprep.subr.bf16.mxu0 0
        %864 = vmatpush1.bf16.msra.mxu0 0
        %865 = vmatprep.subr.bf16.mxu0 0
        %866 = vmatpush1.bf16.msra.mxu0 0
        %867 = vmatprep.subr.bf16.mxu0 0
        %868 = vmatpush1.bf16.msra.mxu0 0
        %869 = vmatprep.subr.bf16.mxu0 0
        %870 = vmatpush1.bf16.msra.mxu0 0
        %871 = vmatprep.mubr.bf16.mxu0 0
        %872 = vmatmul.mubr.bf16.gmra.mrb[0].mxu0 %v833
        %v873 = vpop.f32.mrb[0].mxu0
        %v874 = vadd.f32 0.0, %v873
        %v875 = vpop.f32.mrb[0].mxu0
        %v876 = vpop.f32.mrb[0].mxu0
        %v877 = vpop.f32.mrb[0].mxu0
        %878 = vdwg.mxu0
        %v879 = vpack.c.bf16 %v874, %v874
        %v880 = vld [vmem:[#allocation13] sm:$0xf]
        %v881 = vld [vmem:[#allocation13 + $0x4] sm:$0xf]
        %v882 = vld [vmem:[#allocation13 + $0x8] sm:$0xf]
        %v883 = vld [vmem:[#allocation13 + $0xc] sm:$0xf]
        %v884 = vld [vmem:[#allocation14] sm:$0x1]
        %v886 = vlaneseq
        %v887 = vshrl.u32 %v886, 7
        %v888 = vsub.s32 0, %v887
        %v889 = vrot.slane %v884, %v888
        %v895 = vunpack.c.l.b16 %v880
        %v896 = vunpack.c.l.b16 %v881
        %v897 = vunpack.c.l.b16 %v882
        %v898 = vunpack.c.l.b16 %v883
        %v899 = vpack.c.b16 %v896, %v895
        %v900 = vpack.c.b16 %v898, %v897
        %v904 = vsel %vm637, %v879, 0
        %906 = vmatprep.subr.bf16.mxu0 0
        %907 = vmatpush1.bf16.msra.mxu0 %v899
        %908 = vmatprep.subr.bf16.mxu0 0
        %909 = vmatpush1.bf16.msra.mxu0 %v900
        %910 = vmatprep.subr.bf16.mxu0 0
        %911 = vmatpush1.bf16.msra.mxu0 0
        %912 = vmatprep.subr.bf16.mxu0 0
        %913 = vmatpush1.bf16.msra.mxu0 0
        %914 = vmatprep.subr.bf16.mxu0 0
        %915 = vmatpush1.bf16.msra.mxu0 0
        %916 = vmatprep.subr.bf16.mxu0 0
        %917 = vmatpush1.bf16.msra.mxu0 0
        %918 = vmatprep.subr.bf16.mxu0 0
        %919 = vmatpush1.bf16.msra.mxu0 0
        %920 = vmatprep.subr.bf16.mxu0 0
        %921 = vmatpush1.bf16.msra.mxu0 0
        %922 = vmatprep.subr.bf16.mxu0 0
        %923 = vmatpush1.bf16.msra.mxu0 0
        %924 = vmatprep.subr.bf16.mxu0 0
        %925 = vmatpush1.bf16.msra.mxu0 0
        %926 = vmatprep.subr.bf16.mxu0 0
        %927 = vmatpush1.bf16.msra.mxu0 0
        %928 = vmatprep.subr.bf16.mxu0 0
        %929 = vmatpush1.bf16.msra.mxu0 0
        %930 = vmatprep.subr.bf16.mxu0 0
        %931 = vmatpush1.bf16.msra.mxu0 0
        %932 = vmatprep.subr.bf16.mxu0 0
        %933 = vmatpush1.bf16.msra.mxu0 0
        %934 = vmatprep.subr.bf16.mxu0 0
        %935 = vmatpush1.bf16.msra.mxu0 0
        %936 = vmatprep.subr.bf16.mxu0 0
        %937 = vmatpush1.bf16.msra.mxu0 0
        %938 = vmatprep.mubr.bf16.mxu0 0
        %939 = vmatmul.mubr.bf16.gmra.mrb[0].mxu0 %v904
        %v940 = vpop.f32.mrb[0].mxu0
        %v941 = vadd.f32 %v889, %v940
        %v942 = vpop.f32.mrb[0].mxu0
        %v943 = vpop.f32.mrb[0].mxu0
        %v944 = vpop.f32.mrb[0].mxu0
        %945 = vdwg.mxu0
        %v946 = vadd.f32 %v630, %v941
        %v947 = vld [vmem:[#allocation7] sm:$0x1]
        %v948 = vld [vmem:[#allocation8] sm:$0x1]
        %v949 = vsel %vm637, %v946, 0.0
        %950 = vadd.xlane.f32.xlu0 %v949
        %v951 = vpop.xlane.xlu0 %950
        %v952 = vmul.f32 %v951, %v641
        %v953 = vmul.f32 %v946, %v946
        %v954 = vsel %vm637, %v953, 0.0
        %955 = vadd.xlane.f32.xlu0 %v954
        %v956 = vpop.xlane.xlu0 %955
        %v957 = vmul.f32 %v956, %v641
        %v958 = vmul.f32 %v952, %v952
        %v959 = vsub.f32 %v957, %v958
        %v960 = vmax.f32 %v959, 0.0
        %v961 = vsub.f32 %v946, %v952
        %v962 = vadd.f32 %v960, 1e-05
        %v963 = vrsqrt.pop %v962
        %v964 = vmul.f32 %v961, %v963
        %v966 = vlaneseq
        %v967 = vshrl.u32 %v966, 7
        %v968 = vsub.s32 0, %v967
        %v969 = vrot.slane %v947, %v968
        %v971 = vmul.f32 %v964, %v969
        %v973 = vlaneseq
        %v974 = vshrl.u32 %v973, 7
        %v975 = vsub.s32 0, %v974
        %v976 = vrot.slane %v948, %v975
        %v978 = vadd.f32 %v971, %v976
        %v979 = vpack.c.bf16 %v978, %v978
        %v980 = vld [vmem:[#allocation16] sm:$0xf]
        %v981 = vld [vmem:[#allocation16 + $0x4] sm:$0xf]
        %v982 = vld [vmem:[#allocation16 + $0x8] sm:$0xf]
        %v983 = vld [vmem:[#allocation16 + $0xc] sm:$0xf]
        %v984 = vld [vmem:[#allocation17] sm:$0x1]
        %v986 = vlaneseq
        %v987 = vshrl.u32 %v986, 7
        %v988 = vsub.s32 0, %v987
        %v989 = vrot.slane %v984, %v988
        %v995 = vunpack.c.l.b16 %v980
        %v996 = vunpack.c.l.b16 %v981
        %v997 = vunpack.c.l.b16 %v982
        %v998 = vunpack.c.l.b16 %v983
        %v999 = vpack.c.b16 %v996, %v995
        %v1000 = vpack.c.b16 %v998, %v997
        %v1004 = vsel %vm637, %v979, 0
        %1006 = vmatprep.subr.bf16.mxu0 0
        %1007 = vmatpush1.bf16.msra.mxu0 %v999
        %1008 = vmatprep.subr.bf16.mxu0 0
        %1009 = vmatpush1.bf16.msra.mxu0 %v1000
        %1010 = vmatprep.subr.bf16.mxu0 0
        %1011 = vmatpush1.bf16.msra.mxu0 0
        %1012 = vmatprep.subr.bf16.mxu0 0
        %1013 = vmatpush1.bf16.msra.mxu0 0
        %1014 = vmatprep.subr.bf16.mxu0 0
        %1015 = vmatpush1.bf16.msra.mxu0 0
        %1016 = vmatprep.subr.bf16.mxu0 0
        %1017 = vmatpush1.bf16.msra.mxu0 0
        %1018 = vmatprep.subr.bf16.mxu0 0
        %1019 = vmatpush1.bf16.msra.mxu0 0
        %1020 = vmatprep.subr.bf16.mxu0 0
        %1021 = vmatpush1.bf16.msra.mxu0 0
        %1022 = vmatprep.subr.bf16.mxu0 0
        %1023 = vmatpush1.bf16.msra.mxu0 0
        %1024 = vmatprep.subr.bf16.mxu0 0
        %1025 = vmatpush1.bf16.msra.mxu0 0
        %1026 = vmatprep.subr.bf16.mxu0 0
        %1027 = vmatpush1.bf16.msra.mxu0 0
        %1028 = vmatprep.subr.bf16.mxu0 0
        %1029 = vmatpush1.bf16.msra.mxu0 0
        %1030 = vmatprep.subr.bf16.mxu0 0
        %1031 = vmatpush1.bf16.msra.mxu0 0
        %1032 = vmatprep.subr.bf16.mxu0 0
        %1033 = vmatpush1.bf16.msra.mxu0 0
        %1034 = vmatprep.subr.bf16.mxu0 0
        %1035 = vmatpush1.bf16.msra.mxu0 0
        %1036 = vmatprep.subr.bf16.mxu0 0
        %1037 = vmatpush1.bf16.msra.mxu0 0
        %1038 = vmatprep.mubr.bf16.mxu0 0
        %1039 = vmatmul.mubr.bf16.gmra.mrb[0].mxu0 %v1004
        %v1040 = vpop.f32.mrb[0].mxu0
        %v1041 = vadd.f32 %v989, %v1040
        %v1042 = vpop.f32.mrb[0].mxu0
        %v1043 = vpop.f32.mrb[0].mxu0
        %v1044 = vpop.f32.mrb[0].mxu0
        %1045 = vdwg.mxu0
        %v1046 = vpack.c.bf16 %v1041, %v1041
        %v1047 = vld [vmem:[%s11] sm:$0xf]
        %v1048 = vld [vmem:[%s11 + $0x4] sm:$0xf]
        %v1049 = vld [vmem:[%s11 + $0x8] sm:$0xf]
        %v1050 = vld [vmem:[%s11 + $0xc] sm:$0xf]
        %v1051 = vld [vmem:[%s11 + $0x10] sm:$0xf]
        %v1052 = vld [vmem:[%s11 + $0x14] sm:$0xf]
        %v1053 = vld [vmem:[%s11 + $0x18] sm:$0xf]
        %v1054 = vld [vmem:[%s11 + $0x1c] sm:$0xf]
        %v1055 = vld [vmem:[%s12] sm:$0x1]
        %v1057 = vlaneseq
        %v1058 = vshrl.u32 %v1057, 7
        %v1059 = vsub.s32 0, %v1058
        %v1060 = vrot.slane %v1055, %v1059
        %v1070 = vunpack.c.l.b16 %v1047
        %v1071 = vunpack.c.l.b16 %v1048
        %v1072 = vunpack.c.l.b16 %v1049
        %v1073 = vunpack.c.l.b16 %v1050
        %v1074 = vunpack.c.l.b16 %v1051
        %v1075 = vunpack.c.l.b16 %v1052
        %v1076 = vunpack.c.l.b16 %v1053
        %v1077 = vunpack.c.l.b16 %v1054
        %v1078 = vpack.c.b16 %v1071, %v1070
        %v1079 = vpack.c.b16 %v1073, %v1072
        %v1080 = vpack.c.b16 %v1075, %v1074
        %v1081 = vpack.c.b16 %v1077, %v1076
        %vm1086 = vcmask 523264
        %v1088 = vsel %vm1086, %v1046, 0
        %1090 = vmatprep.subr.bf16.mxu0 0
        %1091 = vmatpush1.bf16.msra.mxu0 %v1078
        %1092 = vmatprep.subr.bf16.mxu0 0
        %1093 = vmatpush1.bf16.msra.mxu0 %v1079
        %1094 = vmatprep.subr.bf16.mxu0 0
        %1095 = vmatpush1.bf16.msra.mxu0 %v1080
        %1096 = vmatprep.subr.bf16.mxu0 0
        %1097 = vmatpush1.bf16.msra.mxu0 %v1081
        %1098 = vmatprep.subr.bf16.mxu0 0
        %1099 = vmatpush1.bf16.msra.mxu0 0
        %1100 = vmatprep.subr.bf16.mxu0 0
        %1101 = vmatpush1.bf16.msra.mxu0 0
        %1102 = vmatprep.subr.bf16.mxu0 0
        %1103 = vmatpush1.bf16.msra.mxu0 0
        %1104 = vmatprep.subr.bf16.mxu0 0
        %1105 = vmatpush1.bf16.msra.mxu0 0
        %1106 = vmatprep.subr.bf16.mxu0 0
        %1107 = vmatpush1.bf16.msra.mxu0 0
        %1108 = vmatprep.subr.bf16.mxu0 0
        %1109 = vmatpush1.bf16.msra.mxu0 0
        %1110 = vmatprep.subr.bf16.mxu0 0
        %1111 = vmatpush1.bf16.msra.mxu0 0
        %1112 = vmatprep.subr.bf16.mxu0 0
        %1113 = vmatpush1.bf16.msra.mxu0 0
        %1114 = vmatprep.subr.bf16.mxu0 0
        %1115 = vmatpush1.bf16.msra.mxu0 0
        %1116 = vmatprep.subr.bf16.mxu0 0
        %1117 = vmatpush1.bf16.msra.mxu0 0
        %1118 = vmatprep.subr.bf16.mxu0 0
        %1119 = vmatpush1.bf16.msra.mxu0 0
        %1120 = vmatprep.subr.bf16.mxu0 0
        %1121 = vmatpush1.bf16.msra.mxu0 0
        %1122 = vmatprep.mubr.bf16.mxu0 0
        %1123 = vmatmul.mubr.bf16.gmra.mrb[0].mxu0 %v1088
        %v1124 = vpop.f32.mrb[0].mxu0
        %v1125 = vadd.f32 %v1060, %v1124
        %v1126 = vpop.f32.mrb[0].mxu0
        %v1127 = vpop.f32.mrb[0].mxu0
        %v1128 = vpop.f32.mrb[0].mxu0
        %1129 = vdwg.mxu0
        %v1130 = vxor.u32 %v1125, 2147483648
        %v1131 = vmul.f32 %v1130, 1.442695
        %v1132 = vpow.pop %v1131
        %v1133 = vadd.f32 %v1132, 1.0
        %v1134 = vrcp.pop %v1133
        %v1135 = vmul.f32 1.0, %v1134
        %v1136 = vmul.f32 %v1125, %v1135
        %1138 = vrot.lane.b32.xlu0 %v1125, 96
        %v1139 = vpop.permute.xlu0 %1138
        %v1141 = vmul.f32 %v1136, %v1139
        %v1142 = vadd.f32 %v946, %v1141
        %1143 = vst.msk [vmem:[%s628] sm:$0xff] %vm637, %v1142
        %s1144 = sand.u32 %s365, 1
        %s1145 = scalar_lea.sflag [#allocation4], %s1144
        %s1146 = sand.u32 %s365, 1
        %s1147 = smul.addr %s1146, 8
        %s1148 = scalar_lea.vmem [#allocation19], %s1147
        // Predicated region
        $region121: #{tpu_custom_call.1} parent=79 // pred_check
          %p1149 = pneg %p375
        $region122: #{tpu_custom_call.1} parent=79 // pred_check_branch
          %1151 = sbr.rel (%p1149) target = $region124
        $region123: #{tpu_custom_call.1} parent=79 // pred_region
          %s1153 = ssub.s32 128, 128
          %1154 = vsyncadd %s1145, %s1153
          %s1155 = smul.addr %s37, 128
          %s1156 = scalar_lea.hbm %s15, %s1155
          %s1158 = sshll.u32 %s1148, 4
          %s1159 = int_to_ptr.vmem [resolvable:$true] %s1158
          %1161 = dma.vmem_to_hbm [thread:$0]  %s1159, 128, %s1156, %s1145
        $region124: #{tpu_custom_call.1} parent=79 // pred_fallthru
          _
      $region80: #{tpu_custom_call.1} parent=5 // pred_fallthru
        _
      %p1162 = scmp.le.s32.totalorder 2, %s32
      // Predicated region
      $region125: #{tpu_custom_call.1} parent=5 // pred_check
        %p1163 = pneg %p1162
      $region126: #{tpu_custom_call.1} parent=5 // pred_check_branch
        %1165 = sbr.rel (%p1163) target = $region128
      $region127: #{tpu_custom_call.1} parent=5 // pred_region
        %s1166 = ssub.s32 %s32, 2
        // Predicated region
        $region129: #{tpu_custom_call.1} parent=127 // pred_check
          %p1167 = pneg %p381
        $region130: #{tpu_custom_call.1} parent=127 // pred_check_branch
          %1169 = sbr.rel (%p1167) target = $region132
        $region131: #{tpu_custom_call.1} parent=127 // pred_region
          %s1170 = sand.u32 %s366, 1
          %s1171 = scalar_lea.sflag [#allocation4], %s1170
          %s1172 = sand.u32 %s366, 1
          %s1173 = smul.addr %s1172, 8
          %s1174 = scalar_lea.vmem [#allocation19], %s1173
          %1175 = dma.done %s1171, 128
        $region132: #{tpu_custom_call.1} parent=127 // pred_fallthru
          _
      $region128: #{tpu_custom_call.1} parent=5 // pred_fallthru
        _
    $region6: #{tpu_custom_call.1} parent=1 // loop_footer
      %s36 = sadd.s32 1, %s32
    $region7: #{tpu_custom_call.1} parent=1 // loop_footer_branch
      %31 = sbr.rel target = $region3
    $region8: #{tpu_custom_call.1} parent=1 // loop_exit
      _
    %1176 = vsyncpa [#allocation3], 1
    %s1177 = scalar_lea.sflag [#allocation3], 1
    %1178 = vsyncpa %s1177, 1
    %1179 = vsyncpa [#allocation6], 1
    %1180 = vsyncpa [#allocation9], 1
    %1181 = vsyncpa [#allocation12], 1
    %1182 = vsyncpa [#allocation15], 1
    %1183 = vsyncpa [#allocation18], 1
    %1184 = vsyncpa [#allocation4], 1
    %s1185 = scalar_lea.sflag [#allocation4], 1
    %1186 = vsyncpa %s1185, 1

// kernel: tpu_custom_call.1
$region0: #{tpu_custom_call.1}
  #allocation0 [shape = 'u32[]', space=smem, size = 0x4, offset = 0x4, fixed_abs, tag = 'smem constant byte address 0x4 - core index']
  #allocation1 [shape = 'u32[144,128]{1,0:T(1,128)}', space=vmem, size = 0x12000, scoped, tag = 'internal scratch']
  %s0 = inlined_call_operand.hbm [shape: f32[2,8,32], index: 0, kind: input, shape index: {}]
  %s1 = inlined_call_operand.vmem [shape: f32[1,32], index: 1, kind: input, shape index: {}]
  %s2 = inlined_call_operand.hbm [shape: f32[1,32], index: 2, kind: input, shape index: {}]
  %s3 = inlined_call_operand.hbm [shape: f32[1,32], index: 3, kind: input, shape index: {}]
  %s4 = inlined_call_operand.hbm [shape: f32[1,32], index: 4, kind: input, shape index: {}]
  %s5 = inlined_call_operand.hbm [shape: bf16[32,96], index: 5, kind: input, shape index: {}]
  %s6 = inlined_call_operand.hbm [shape: f32[1,96], index: 6, kind: input, shape index: {}]
  %s7 = inlined_call_operand.hbm [shape: bf16[32,32], index: 7, kind: input, shape index: {}]
  %s8 = inlined_call_operand.hbm [shape: f32[1,32], index: 8, kind: input, shape index: {}]
  %s9 = inlined_call_operand.hbm [shape: bf16[32,64], index: 9, kind: input, shape index: {}]
  %s10 = inlined_call_operand.hbm [shape: f32[1,64], index: 10, kind: input, shape index: {}]
  %s11 = inlined_call_operand.vmem [shape: bf16[64,64], index: 11, kind: input, shape index: {}]
  %s12 = inlined_call_operand.vmem [shape: f32[1,64], index: 12, kind: input, shape index: {}]
  %s13 = inlined_call_operand.vmem [shape: bf16[8,32], index: 13, kind: input, shape index: {}]
  %s14 = inlined_call_operand.vmem [shape: bf16[8,32], index: 14, kind: input, shape index: {}]
  %s15 = inlined_call_operand.hbm [shape: f32[2,8,32], index: 15, kind: output, shape index: {}]
  %s16 = sld [smem:[#allocation0]]
  $region133: #{tpu_custom_call.1} parent=0
    _
  %s18 = ssub.s32 1, %s16
  %s19 = scalar_select 0, %s18, %s16
  $region1: #{tpu_custom_call.1} parent=0
    #allocation2 [shape = 'u8[8192]{0}', space=vmem, size = 0x2000, scoped, tag = 'input window, operand 0']
    #allocation3 [shape = 's32[2]{0}', space=sflag, size = 0x8, scoped, tag = 'scoped memory for tpu_custom_call.1']
    #allocation4 [shape = 's32[2]{0}', space=sflag, size = 0x8, scoped, tag = 'scoped memory for tpu_custom_call.1']
    #allocation5 [shape = 'u8[512]{0}', space=vmem, size = 0x400, scoped, tag = 'input window, operand 2, single buffered']
    #allocation6 [shape = 's32[1]{0}', space=sflag, size = 0x4, scoped, tag = 'scoped memory for tpu_custom_call.1']
    #allocation7 [shape = 'u8[512]{0}', space=vmem, size = 0x400, scoped, tag = 'input window, operand 3, single buffered']
    #allocation8 [shape = 'u8[512]{0}', space=vmem, size = 0x400, scoped, tag = 'input window, operand 4, single buffered']
    #allocation9 [shape = 's32[1]{0}', space=sflag, size = 0x4, scoped, tag = 'scoped memory for tpu_custom_call.1']
    #allocation10 [shape = 'u8[8192]{0}', space=vmem, size = 0x2000, scoped, tag = 'input window, operand 5, single buffered']
    #allocation11 [shape = 'u8[512]{0}', space=vmem, size = 0x400, scoped, tag = 'input window, operand 6, single buffered']
    #allocation12 [shape = 's32[1]{0}', space=sflag, size = 0x4, scoped, tag = 'scoped memory for tpu_custom_call.1']
    #allocation13 [shape = 'u8[8192]{0}', space=vmem, size = 0x2000, scoped, tag = 'input window, operand 7, single buffered']
    #allocation14 [shape = 'u8[512]{0}', space=vmem, size = 0x400, scoped, tag = 'input window, operand 8, single buffered']
    #allocation15 [shape = 's32[1]{0}', space=sflag, size = 0x4, scoped, tag = 'scoped memory for tpu_custom_call.1']
    #allocation16 [shape = 'u8[8192]{0}', space=vmem, size = 0x2000, scoped, tag = 'input window, operand 9, single buffered']
    #allocation17 [shape = 'u8[512]{0}', space=vmem, size = 0x400, scoped, tag = 'input window, operand 10, single buffered']
    #allocation18 [shape = 's32[1]{0}', space=sflag, size = 0x4, scoped, tag = 'scoped memory for tpu_custom_call.1']
    #allocation19 [shape = 'u8[8192]{0}', space=vmem, size = 0x2000, scoped, tag = 'output window, operand 0']
    %20 = vsyncpa [#allocation3], 0
    %s21 = scalar_lea.sflag [#allocation3], 1
    %22 = vsyncpa %s21, 0
    %23 = vsyncpa [#allocation6], 0
    %24 = vsyncpa [#allocation9], 0
    %25 = vsyncpa [#allocation12], 0
    %26 = vsyncpa [#allocation15], 0
    %27 = vsyncpa [#allocation18], 0
    %28 = vsyncpa [#allocation4], 0
    %s29 = scalar_lea.sflag [#allocation4], 1
    %30 = vsyncpa %s29, 0
    loop: start=0, step=1, limit=4
    $region2: #{tpu_custom_call.1} parent=1 // loop_pre_header
      _
    $region3: #{tpu_custom_call.1} parent=1 // loop_header
      %s32 = sphi 0, %s36
      %p33 = scmp.ge.s32.totalorder %s32, 4
      %s42 = sphi 0, %s44
      %s45 = sphi 0, %s42
      %s46 = sphi 0, %s45
      %s62 = sphi 0, %s46
      %s66 = sphi 0, %s66
      %s68 = sphi 0, %s66
      %s69 = sphi 0, %s68
      %s83 = sphi 0, %s69
      %s87 = sphi 0, %s87
      %s89 = sphi 0, %s87
      %s90 = sphi 0, %s89
      %s104 = sphi 0, %s90
      %s108 = sphi 0, %s108
      %s110 = sphi 0, %s108
      %s111 = sphi 0, %s110
      %s125 = sphi 0, %s111
      %s129 = sphi 0, %s129
      %s131 = sphi 0, %s129
      %s132 = sphi 0, %s131
      %s146 = sphi 0, %s132
      %s150 = sphi 0, %s150
      %s152 = sphi 0, %s150
      %s153 = sphi 0, %s152
      %s167 = sphi 0, %s153
      %s171 = sphi 0, %s171
      %s173 = sphi 0, %s171
      %s174 = sphi 0, %s173
      %s188 = sphi 0, %s174
      %s192 = sphi 0, %s192
      %s194 = sphi 0, %s192
      %s195 = sphi 0, %s194
      %s209 = sphi 0, %s195
      %s213 = sphi 0, %s213
      %s215 = sphi 0, %s213
      %s216 = sphi 0, %s215
      %s230 = sphi 0, %s216
      %s234 = sphi 0, %s234
      %s236 = sphi 0, %s234
      %s237 = sphi 0, %s236
      %s251 = sphi 0, %s237
      %s255 = sphi 0, %s255
      %s257 = sphi 0, %s255
      %s258 = sphi 0, %s257
      %s272 = sphi 0, %s258
      %s276 = sphi 0, %s276
      %s278 = sphi 0, %s276
      %s279 = sphi 0, %s278
      %s293 = sphi 0, %s279
      %s297 = sphi 0, %s297
      %s299 = sphi 0, %s297
      %s300 = sphi 0, %s299
      %s314 = sphi 0, %s300
      %s318 = sphi 0, %s318
      %s320 = sphi 0, %s318
      %s321 = sphi 0, %s320
      %s335 = sphi 0, %s321
      %s339 = sphi 0, %s339
      %s341 = sphi 0, %s339
      %s342 = sphi 0, %s341
      %s356 = sphi 0, %s342
      %s362 = sphi 0, %s364
      %s365 = sphi 0, %s362
      %s366 = sphi 0, %s365
      %s382 = sphi 0, %s366
    $region4: #{tpu_custom_call.1} parent=1 // loop_header_branch
      %35 = sbr.rel (%p33) target = $region8
    $region5: #{tpu_custom_call.1} parent=1 // loop_body
      %s37 = ssub.s32 %s32, 1
      %s38 = ssub.s32 %s32, 2
      %s39 = sadd.s32 %s32, 1
      %s40 = ssub.s32 %s32, %s39
      %p41 = scmp.eq.s32.totalorder %s40, 0
      %s43 = sadd.s32 %s42, 1
      %s44 = scalar_select %p41, %s42, %s43
      %p47 = pneg %p41
      %p48 = scmp.eq.s32.totalorder %s32, 1
      %p49 = por %p47, %p48
      %p50 = scmp.ne.s32.totalorder %s42, %s45
      %p51 = scmp.eq.s32.totalorder %s32, 0
      %p52 = por %p50, %p51
      %p53 = scmp.ne.s32.totalorder %s42, %s45
      %p54 = scmp.eq.s32.totalorder %s37, 1
      %p55 = por %p53, %p54
      %p56 = scmp.ne.s32.totalorder %s45, %s46
      %p57 = scmp.eq.s32.totalorder %s37, 0
      %p58 = por %p56, %p57
      %p59 = scmp.ne.s32.totalorder %s45, %s46
      %p60 = scmp.eq.s32.totalorder %s38, 1
      %p61 = por %p59, %p60
      %p63 = scmp.ne.s32.totalorder %s46, %s62
      %p64 = scmp.eq.s32.totalorder %s38, 0
      %p65 = por %p63, %p64
      %s67 = sadd.s32 %s66, 1
      %p70 = scmp.eq.s32.totalorder %s32, 1
      %p71 = scmp.ne.s32.totalorder %s66, %s68
      %p72 = scmp.eq.s32.totalorder %s32, 0
      %p73 = por %p71, %p72
      %p74 = scmp.ne.s32.totalorder %s66, %s68
      %p75 = scmp.eq.s32.totalorder %s37, 1
      %p76 = por %p74, %p75
      %p77 = scmp.ne.s32.totalorder %s68, %s69
      %p78 = scmp.eq.s32.totalorder %s37, 0
      %p79 = por %p77, %p78
      %p80 = scmp.ne.s32.totalorder %s68, %s69
      %p81 = scmp.eq.s32.totalorder %s38, 1
      %p82 = por %p80, %p81
      %p84 = scmp.ne.s32.totalorder %s69, %s83
      %p85 = scmp.eq.s32.totalorder %s38, 0
      %p86 = por %p84, %p85
      %s88 = sadd.s32 %s87, 1
      %p91 = scmp.eq.s32.totalorder %s32, 1
      %p92 = scmp.ne.s32.totalorder %s87, %s89
      %p93 = scmp.eq.s32.totalorder %s32, 0
      %p94 = por %p92, %p93
      %p95 = scmp.ne.s32.totalorder %s87, %s89
      %p96 = scmp.eq.s32.totalorder %s37, 1
      %p97 = por %p95, %p96
      %p98 = scmp.ne.s32.totalorder %s89, %s90
      %p99 = scmp.eq.s32.totalorder %s37, 0
      %p100 = por %p98, %p99
      %p101 = scmp.ne.s32.totalorder %s89, %s90
      %p102 = scmp.eq.s32.totalorder %s38, 1
      %p103 = por %p101, %p102
      %p105 = scmp.ne.s32.totalorder %s90, %s104
      %p106 = scmp.eq.s32.totalorder %s38, 0
      %p107 = por %p105, %p106
      %s109 = sadd.s32 %s108, 1
      %p112 = scmp.eq.s32.totalorder %s32, 1
      %p113 = scmp.ne.s32.totalorder %s108, %s110
      %p114 = scmp.eq.s32.totalorder %s32, 0
      %p115 = por %p113, %p114
      %p116 = scmp.ne.s32.totalorder %s108, %s110
      %p117 = scmp.eq.s32.totalorder %s37, 1
      %p118 = por %p116, %p117
      %p119 = scmp.ne.s32.totalorder %s110, %s111
      %p120 = scmp.eq.s32.totalorder %s37, 0
      %p121 = por %p119, %p120
      %p122 = scmp.ne.s32.totalorder %s110, %s111
      %p123 = scmp.eq.s32.totalorder %s38, 1
      %p124 = por %p122, %p123
      %p126 = scmp.ne.s32.totalorder %s111, %s125
      %p127 = scmp.eq.s32.totalorder %s38, 0
      %p128 = por %p126, %p127
      %s130 = sadd.s32 %s129, 1
      %p133 = scmp.eq.s32.totalorder %s32, 1
      %p134 = scmp.ne.s32.totalorder %s129, %s131
      %p135 = scmp.eq.s32.totalorder %s32, 0
      %p136 = por %p134, %p135
      %p137 = scmp.ne.s32.totalorder %s129, %s131
      %p138 = scmp.eq.s32.totalorder %s37, 1
      %p139 = por %p137, %p138
      %p140 = scmp.ne.s32.totalorder %s131, %s132
      %p141 = scmp.eq.s32.totalorder %s37, 0
      %p142 = por %p140, %p141
      %p143 = scmp.ne.s32.totalorder %s131, %s132
      %p144 = scmp.eq.s32.totalorder %s38, 1
      %p145 = por %p143, %p144
      %p147 = scmp.ne.s32.totalorder %s132, %s146
      %p148 = scmp.eq.s32.totalorder %s38, 0
      %p149 = por %p147, %p148
      %s151 = sadd.s32 %s150, 1
      %p154 = scmp.eq.s32.totalorder %s32, 1
      %p155 = scmp.ne.s32.totalorder %s150, %s152
      %p156 = scmp.eq.s32.totalorder %s32, 0
      %p157 = por %p155, %p156
      %p158 = scmp.ne.s32.totalorder %s150, %s152
      %p159 = scmp.eq.s32.totalorder %s37, 1
      %p160 = por %p158, %p159
      %p161 = scmp.ne.s32.totalorder %s152, %s153
      %p162 = scmp.eq.s32.totalorder %s37, 0
      %p163 = por %p161, %p162
      %p164 = scmp.ne.s32.totalorder %s152, %s153
      %p165 = scmp.eq.s32.totalorder %s38, 1
      %p166 = por %p164, %p165
      %p168 = scmp.ne.s32.totalorder %s153, %s167
      %p169 = scmp.eq.s32.totalorder %s38, 0
      %p170 = por %p168, %p169
      %s172 = sadd.s32 %s171, 1
      %p175 = scmp.eq.s32.totalorder %s32, 1
      %p176 = scmp.ne.s32.totalorder %s171, %s173
      %p177 = scmp.eq.s32.totalorder %s32, 0
      %p178 = por %p176, %p177
      %p179 = scmp.ne.s32.totalorder %s171, %s173
      %p180 = scmp.eq.s32.totalorder %s37, 1
      %p181 = por %p179, %p180
      %p182 = scmp.ne.s32.totalorder %s173, %s174
      %p183 = scmp.eq.s32.totalorder %s37, 0
      %p184 = por %p182, %p183
      %p185 = scmp.ne.s32.totalorder %s173, %s174
      %p186 = scmp.eq.s32.totalorder %s38, 1
      %p187 = por %p185, %p186
      %p189 = scmp.ne.s32.totalorder %s174, %s188
      %p190 = scmp.eq.s32.totalorder %s38, 0
      %p191 = por %p189, %p190
      %s193 = sadd.s32 %s192, 1
      %p196 = scmp.eq.s32.totalorder %s32, 1
      %p197 = scmp.ne.s32.totalorder %s192, %s194
      %p198 = scmp.eq.s32.totalorder %s32, 0
      %p199 = por %p197, %p198
      %p200 = scmp.ne.s32.totalorder %s192, %s194
      %p201 = scmp.eq.s32.totalorder %s37, 1
      %p202 = por %p200, %p201
      %p203 = scmp.ne.s32.totalorder %s194, %s195
      %p204 = scmp.eq.s32.totalorder %s37, 0
      %p205 = por %p203, %p204
      %p206 = scmp.ne.s32.totalorder %s194, %s195
      %p207 = scmp.eq.s32.totalorder %s38, 1
      %p208 = por %p206, %p207
      %p210 = scmp.ne.s32.totalorder %s195, %s209
      %p211 = scmp.eq.s32.totalorder %s38, 0
      %p212 = por %p210, %p211
      %s214 = sadd.s32 %s213, 1
      %p217 = scmp.eq.s32.totalorder %s32, 1
      %p218 = scmp.ne.s32.totalorder %s213, %s215
      %p219 = scmp.eq.s32.totalorder %s32, 0
      %p220 = por %p218, %p219
      %p221 = scmp.ne.s32.totalorder %s213, %s215
      %p222 = scmp.eq.s32.totalorder %s37, 1
      %p223 = por %p221, %p222
      %p224 = scmp.ne.s32.totalorder %s215, %s216
      %p225 = scmp.eq.s32.totalorder %s37, 0
      %p226 = por %p224, %p225
      %p227 = scmp.ne.s32.totalorder %s215, %s216
      %p228 = scmp.eq.s32.totalorder %s38, 1
      %p229 = por %p227, %p228
      %p231 = scmp.ne.s32.totalorder %s216, %s230
      %p232 = scmp.eq.s32.totalorder %s38, 0
      %p233 = por %p231, %p232
      %s235 = sadd.s32 %s234, 1
      %p238 = scmp.eq.s32.totalorder %s32, 1
      %p239 = scmp.ne.s32.totalorder %s234, %s236
      %p240 = scmp.eq.s32.totalorder %s32, 0
      %p241 = por %p239, %p240
      %p242 = scmp.ne.s32.totalorder %s234, %s236
      %p243 = scmp.eq.s32.totalorder %s37, 1
      %p244 = por %p242, %p243
      %p245 = scmp.ne.s32.totalorder %s236, %s237
      %p246 = scmp.eq.s32.totalorder %s37, 0
      %p247 = por %p245, %p246
      %p248 = scmp.ne.s32.totalorder %s236, %s237
      %p249 = scmp.eq.s32.totalorder %s38, 1
      %p250 = por %p248, %p249
      %p252 = scmp.ne.s32.totalorder %s237, %s251
      %p253 = scmp.eq.s32.totalorder %s38, 0
      %p254 = por %p252, %p253
      %s256 = sadd.s32 %s255, 1
      %p259 = scmp.eq.s32.totalorder %s32, 1
      %p260 = scmp.ne.s32.totalorder %s255, %s257
      %p261 = scmp.eq.s32.totalorder %s32, 0
      %p262 = por %p260, %p261
      %p263 = scmp.ne.s32.totalorder %s255, %s257
      %p264 = scmp.eq.s32.totalorder %s37, 1
      %p265 = por %p263, %p264
      %p266 = scmp.ne.s32.totalorder %s257, %s258
      %p267 = scmp.eq.s32.totalorder %s37, 0
      %p268 = por %p266, %p267
      %p269 = scmp.ne.s32.totalorder %s257, %s258
      %p270 = scmp.eq.s32.totalorder %s38, 1
      %p271 = por %p269, %p270
      %p273 = scmp.ne.s32.totalorder %s258, %s272
      %p274 = scmp.eq.s32.totalorder %s38, 0
      %p275 = por %p273, %p274
      %s277 = sadd.s32 %s276, 1
      %p280 = scmp.eq.s32.totalorder %s32, 1
      %p281 = scmp.ne.s32.totalorder %s276, %s278
      %p282 = scmp.eq.s32.totalorder %s32, 0
      %p283 = por %p281, %p282
      %p284 = scmp.ne.s32.totalorder %s276, %s278
      %p285 = scmp.eq.s32.totalorder %s37, 1
      %p286 = por %p284, %p285
      %p287 = scmp.ne.s32.totalorder %s278, %s279
      %p288 = scmp.eq.s32.totalorder %s37, 0
      %p289 = por %p287, %p288
      %p290 = scmp.ne.s32.totalorder %s278, %s279
      %p291 = scmp.eq.s32.totalorder %s38, 1
      %p292 = por %p290, %p291
      %p294 = scmp.ne.s32.totalorder %s279, %s293
      %p295 = scmp.eq.s32.totalorder %s38, 0
      %p296 = por %p294, %p295
      %s298 = sadd.s32 %s297, 1
      %p301 = scmp.eq.s32.totalorder %s32, 1
      %p302 = scmp.ne.s32.totalorder %s297, %s299
      %p303 = scmp.eq.s32.totalorder %s32, 0
      %p304 = por %p302, %p303
      %p305 = scmp.ne.s32.totalorder %s297, %s299
      %p306 = scmp.eq.s32.totalorder %s37, 1
      %p307 = por %p305, %p306
      %p308 = scmp.ne.s32.totalorder %s299, %s300
      %p309 = scmp.eq.s32.totalorder %s37, 0
      %p310 = por %p308, %p309
      %p311 = scmp.ne.s32.totalorder %s299, %s300
      %p312 = scmp.eq.s32.totalorder %s38, 1
      %p313 = por %p311, %p312
      %p315 = scmp.ne.s32.totalorder %s300, %s314
      %p316 = scmp.eq.s32.totalorder %s38, 0
      %p317 = por %p315, %p316
      %s319 = sadd.s32 %s318, 1
      %p322 = scmp.eq.s32.totalorder %s32, 1
      %p323 = scmp.ne.s32.totalorder %s318, %s320
      %p324 = scmp.eq.s32.totalorder %s32, 0
      %p325 = por %p323, %p324
      %p326 = scmp.ne.s32.totalorder %s318, %s320
      %p327 = scmp.eq.s32.totalorder %s37, 1
      %p328 = por %p326, %p327
      %p329 = scmp.ne.s32.totalorder %s320, %s321
      %p330 = scmp.eq.s32.totalorder %s37, 0
      %p331 = por %p329, %p330
      %p332 = scmp.ne.s32.totalorder %s320, %s321
      %p333 = scmp.eq.s32.totalorder %s38, 1
      %p334 = por %p332, %p333
      %p336 = scmp.ne.s32.totalorder %s321, %s335
      %p337 = scmp.eq.s32.totalorder %s38, 0
      %p338 = por %p336, %p337
      %s340 = sadd.s32 %s339, 1
      %p343 = scmp.eq.s32.totalorder %s32, 1
      %p344 = scmp.ne.s32.totalorder %s339, %s341
      %p345 = scmp.eq.s32.totalorder %s32, 0
      %p346 = por %p344, %p345
      %p347 = scmp.ne.s32.totalorder %s339, %s341
      %p348 = scmp.eq.s32.totalorder %s37, 1
      %p349 = por %p347, %p348
      %p350 = scmp.ne.s32.totalorder %s341, %s342
      %p351 = scmp.eq.s32.totalorder %s37, 0
      %p352 = por %p350, %p351
      %p353 = scmp.ne.s32.totalorder %s341, %s342
      %p354 = scmp.eq.s32.totalorder %s38, 1
      %p355 = por %p353, %p354
      %p357 = scmp.ne.s32.totalorder %s342, %s356
      %p358 = scmp.eq.s32.totalorder %s38, 0
      %p359 = por %p357, %p358
      %s360 = ssub.s32 %s32, %s39
      %p361 = scmp.eq.s32.totalorder %s360, 0
      %s363 = sadd.s32 %s362, 1
      %s364 = scalar_select %p361, %s362, %s363
      %p367 = pneg %p361
      %p368 = scmp.eq.s32.totalorder %s32, 1
      %p369 = por %p367, %p368
      %p370 = scmp.ne.s32.totalorder %s362, %s365
      %p371 = scmp.eq.s32.totalorder %s32, 0
      %p372 = por %p370, %p371
      %p373 = scmp.ne.s32.totalorder %s362, %s365
      %p374 = scmp.eq.s32.totalorder %s37, 1
      %p375 = por %p373, %p374
      %p376 = scmp.ne.s32.totalorder %s365, %s366
      %p377 = scmp.eq.s32.totalorder %s37, 0
      %p378 = por %p376, %p377
      %p379 = scmp.ne.s32.totalorder %s365, %s366
      %p380 = scmp.eq.s32.totalorder %s38, 1
      %p381 = por %p379, %p380
      %p383 = scmp.ne.s32.totalorder %s366, %s382
      %p384 = scmp.eq.s32.totalorder %s38, 0
      %p385 = por %p383, %p384
      %p386 = scmp.le.s32.totalorder 1, %s32
      %p387 = scmp.lt.s32.totalorder %s32, 3
      %p388 = pnand %p386, %p387
      %p389 = pneg %p388
      // Predicated region
      $region9: #{tpu_custom_call.1} parent=5 // pred_check
        _
      $region10: #{tpu_custom_call.1} parent=5 // pred_check_branch
        %391 = sbr.rel (%p388) target = $region12
      $region11: #{tpu_custom_call.1} parent=5 // pred_region
        %s392 = ssub.s32 %s32, 1
        // Predicated region
        $region13: #{tpu_custom_call.1} parent=11 // pred_check
          %p393 = pneg %p79
        $region14: #{tpu_custom_call.1} parent=11 // pred_check_branch
          %395 = sbr.rel (%p393) target = $region16
        $region15: #{tpu_custom_call.1} parent=11 // pred_region
          _
        $region16: #{tpu_custom_call.1} parent=11 // pred_fallthru
          _
        // Predicated region
        $region17: #{tpu_custom_call.1} parent=11 // pred_check
          %p396 = pneg %p100
        $region18: #{tpu_custom_call.1} parent=11 // pred_check_branch
          %398 = sbr.rel (%p396) target = $region20
        $region19: #{tpu_custom_call.1} parent=11 // pred_region
          %s400 = ssub.s32 16, 16
          %401 = vsyncadd [#allocation6], %s400
          %s403 = sshll.u32 [#allocation5], 4
          %s404 = int_to_ptr.vmem [resolvable:$true] %s403
          %406 = dma.hbm_to_vmem [thread:$0]  %s2, 16, %s404, [#allocation6]
        $region20: #{tpu_custom_call.1} parent=11 // pred_fallthru
          _
        // Predicated region
        $region21: #{tpu_custom_call.1} parent=11 // pred_check
          %p407 = pneg %p121
        $region22: #{tpu_custom_call.1} parent=11 // pred_check_branch
          %409 = sbr.rel (%p407) target = $region24
        $region23: #{tpu_custom_call.1} parent=11 // pred_region
          %s411 = ssub.s32 16, 16
          %412 = vsyncadd [#allocation6], %s411
          %s414 = sshll.u32 [#allocation7], 4
          %s415 = int_to_ptr.vmem [resolvable:$true] %s414
          %417 = dma.hbm_to_vmem [thread:$0]  %s3, 16, %s415, [#allocation6]
        $region24: #{tpu_custom_call.1} parent=11 // pred_fallthru
          _
        // Predicated region
        $region25: #{tpu_custom_call.1} parent=11 // pred_check
          %p418 = pneg %p142
        $region26: #{tpu_custom_call.1} parent=11 // pred_check_branch
          %420 = sbr.rel (%p418) target = $region28
        $region27: #{tpu_custom_call.1} parent=11 // pred_region
          %s422 = ssub.s32 16, 16
          %423 = vsyncadd [#allocation9], %s422
          %s425 = sshll.u32 [#allocation8], 4
          %s426 = int_to_ptr.vmem [resolvable:$true] %s425
          %428 = dma.hbm_to_vmem [thread:$0]  %s4, 16, %s426, [#allocation9]
        $region28: #{tpu_custom_call.1} parent=11 // pred_fallthru
          _
        // Predicated region
        $region29: #{tpu_custom_call.1} parent=11 // pred_check
          %p429 = pneg %p163
        $region30: #{tpu_custom_call.1} parent=11 // pred_check_branch
          %431 = sbr.rel (%p429) target = $region32
        $region31: #{tpu_custom_call.1} parent=11 // pred_region
          %s433 = ssub.s32 256, 256
          %434 = vsyncadd [#allocation9], %s433
          %s435 = sshll.u32 [#allocation10], 4
          %s436 = int_to_ptr.vmem [resolvable:$true] %s435
          %441 = dma.hbm_to_vmem [thread:$0]  %s5, 256, %s436, [#allocation9], 64, 64, 4
        $region32: #{tpu_custom_call.1} parent=11 // pred_fallthru
          _
        // Predicated region
        $region33: #{tpu_custom_call.1} parent=11 // pred_check
          %p442 = pneg %p184
        $region34: #{tpu_custom_call.1} parent=11 // pred_check_branch
          %444 = sbr.rel (%p442) target = $region36
        $region35: #{tpu_custom_call.1} parent=11 // pred_region
          %s446 = ssub.s32 16, 16
          %447 = vsyncadd [#allocation12], %s446
          %s449 = sshll.u32 [#allocation11], 4
          %s450 = int_to_ptr.vmem [resolvable:$true] %s449
          %452 = dma.hbm_to_vmem [thread:$0]  %s6, 16, %s450, [#allocation12]
        $region36: #{tpu_custom_call.1} parent=11 // pred_fallthru
          _
        // Predicated region
        $region37: #{tpu_custom_call.1} parent=11 // pred_check
          %p453 = pneg %p205
        $region38: #{tpu_custom_call.1} parent=11 // pred_check_branch
          %455 = sbr.rel (%p453) target = $region40
        $region39: #{tpu_custom_call.1} parent=11 // pred_region
          %s457 = ssub.s32 256, 256
          %458 = vsyncadd [#allocation12], %s457
          %s459 = sshll.u32 [#allocation13], 4
          %s460 = int_to_ptr.vmem [resolvable:$true] %s459
          %465 = dma.hbm_to_vmem [thread:$0]  %s7, 256, %s460, [#allocation12], 64, 64, 4
        $region40: #{tpu_custom_call.1} parent=11 // pred_fallthru
          _
        // Predicated region
        $region41: #{tpu_custom_call.1} parent=11 // pred_check
          %p466 = pneg %p226
        $region42: #{tpu_custom_call.1} parent=11 // pred_check_branch
          %468 = sbr.rel (%p466) target = $region44
        $region43: #{tpu_custom_call.1} parent=11 // pred_region
          %s470 = ssub.s32 16, 16
          %471 = vsyncadd [#allocation15], %s470
          %s473 = sshll.u32 [#allocation14], 4
          %s474 = int_to_ptr.vmem [resolvable:$true] %s473
          %476 = dma.hbm_to_vmem [thread:$0]  %s8, 16, %s474, [#allocation15]
        $region44: #{tpu_custom_call.1} parent=11 // pred_fallthru
          _
        // Predicated region
        $region45: #{tpu_custom_call.1} parent=11 // pred_check
          %p477 = pneg %p247
        $region46: #{tpu_custom_call.1} parent=11 // pred_check_branch
          %479 = sbr.rel (%p477) target = $region48
        $region47: #{tpu_custom_call.1} parent=11 // pred_region
          %s481 = ssub.s32 256, 256
          %482 = vsyncadd [#allocation15], %s481
          %s483 = sshll.u32 [#allocation16], 4
          %s484 = int_to_ptr.vmem [resolvable:$true] %s483
          %489 = dma.hbm_to_vmem [thread:$0]  %s9, 256, %s484, [#allocation15], 64, 64, 4
        $region48: #{tpu_custom_call.1} parent=11 // pred_fallthru
          _
        // Predicated region
        $region49: #{tpu_custom_call.1} parent=11 // pred_check
          %p490 = pneg %p268
        $region50: #{tpu_custom_call.1} parent=11 // pred_check_branch
          %492 = sbr.rel (%p490) target = $region52
        $region51: #{tpu_custom_call.1} parent=11 // pred_region
          %s494 = ssub.s32 16, 16
          %495 = vsyncadd [#allocation18], %s494
          %s497 = sshll.u32 [#allocation17], 4
          %s498 = int_to_ptr.vmem [resolvable:$true] %s497
          %500 = dma.hbm_to_vmem [thread:$0]  %s10, 16, %s498, [#allocation18]
        $region52: #{tpu_custom_call.1} parent=11 // pred_fallthru
          _
        // Predicated region
        $region53: #{tpu_custom_call.1} parent=11 // pred_check
          %p501 = pneg %p289
        $region54: #{tpu_custom_call.1} parent=11 // pred_check_branch
          %503 = sbr.rel (%p501) target = $region56
        $region55: #{tpu_custom_call.1} parent=11 // pred_region
          _
        $region56: #{tpu_custom_call.1} parent=11 // pred_fallthru
          _
        // Predicated region
        $region57: #{tpu_custom_call.1} parent=11 // pred_check
          %p504 = pneg %p310
        $region58: #{tpu_custom_call.1} parent=11 // pred_check_branch
          %506 = sbr.rel (%p504) target = $region60
        $region59: #{tpu_custom_call.1} parent=11 // pred_region
          _
        $region60: #{tpu_custom_call.1} parent=11 // pred_fallthru
          _
        // Predicated region
        $region61: #{tpu_custom_call.1} parent=11 // pred_check
          %p507 = pneg %p331
        $region62: #{tpu_custom_call.1} parent=11 // pred_check_branch
          %509 = sbr.rel (%p507) target = $region64
        $region63: #{tpu_custom_call.1} parent=11 // pred_region
          _
        $region64: #{tpu_custom_call.1} parent=11 // pred_fallthru
          _
        // Predicated region
        $region65: #{tpu_custom_call.1} parent=11 // pred_check
          %p510 = pneg %p352
        $region66: #{tpu_custom_call.1} parent=11 // pred_check_branch
          %512 = sbr.rel (%p510) target = $region68
        $region67: #{tpu_custom_call.1} parent=11 // pred_region
          _
        $region68: #{tpu_custom_call.1} parent=11 // pred_fallthru
          _
      $region12: #{tpu_custom_call.1} parent=5 // pred_fallthru
        _
      %p513 = scmp.lt.s32.totalorder %s32, 2
      // Predicated region
      $region69: #{tpu_custom_call.1} parent=5 // pred_check
        %p514 = pneg %p513
      $region70: #{tpu_custom_call.1} parent=5 // pred_check_branch
        %516 = sbr.rel (%p514) target = $region72
      $region71: #{tpu_custom_call.1} parent=5 // pred_region
        // Predicated region
        $region73: #{tpu_custom_call.1} parent=71 // pred_check
          %p517 = pneg %p52
        $region74: #{tpu_custom_call.1} parent=71 // pred_check_branch
          %519 = sbr.rel (%p517) target = $region76
        $region75: #{tpu_custom_call.1} parent=71 // pred_region
          %s520 = sand.u32 %s42, 1
          %s521 = scalar_lea.sflag [#allocation3], %s520
          %s522 = sand.u32 %s42, 1
          %s523 = smul.addr %s522, 8
          %s524 = scalar_lea.vmem [#allocation2], %s523
          %s526 = ssub.s32 128, 128
          %527 = vsyncadd %s521, %s526
          %s528 = smul.addr %s32, 128
          %s529 = scalar_lea.hbm %s0, %s528
          %s531 = sshll.u32 %s524, 4
          %s532 = int_to_ptr.vmem [resolvable:$true] %s531
          %534 = dma.hbm_to_vmem [thread:$0]  %s529, 128, %s532, %s521
        $region76: #{tpu_custom_call.1} parent=71 // pred_fallthru
          _
      $region72: #{tpu_custom_call.1} parent=5 // pred_fallthru
        _
      %p535 = scmp.le.s32.totalorder 1, %s32
      %p536 = scmp.lt.s32.totalorder %s32, 3
      %p537 = pnand %p535, %p536
      %p538 = pneg %p537
      // Predicated region
      $region77: #{tpu_custom_call.1} parent=5 // pred_check
        _
      $region78: #{tpu_custom_call.1} parent=5 // pred_check_branch
        %540 = sbr.rel (%p537) target = $region80
      $region79: #{tpu_custom_call.1} parent=5 // pred_region
        %s541 = ssub.s32 %s32, 1
        %s542 = sand.u32 %s45, 1
        %s543 = scalar_lea.sflag [#allocation3], %s542
        %s544 = sand.u32 %s45, 1
        %s545 = smul.addr %s544, 8
        %s546 = scalar_lea.vmem [#allocation2], %s545
        // Predicated region
        $region81: #{tpu_custom_call.1} parent=79 // pred_check
          %p547 = pneg %p58
        $region82: #{tpu_custom_call.1} parent=79 // pred_check_branch
          %549 = sbr.rel (%p547) target = $region84
        $region83: #{tpu_custom_call.1} parent=79 // pred_region
          %550 = dma.done %s543, 128
        $region84: #{tpu_custom_call.1} parent=79 // pred_fallthru
          _
        // Predicated region
        $region85: #{tpu_custom_call.1} parent=79 // pred_check
          %p551 = pneg %p100
        $region86: #{tpu_custom_call.1} parent=79 // pred_check_branch
          %553 = sbr.rel (%p551) target = $region88
        $region87: #{tpu_custom_call.1} parent=79 // pred_region
          %554 = dma.done [#allocation6], 16
        $region88: #{tpu_custom_call.1} parent=79 // pred_fallthru
          _
        // Predicated region
        $region89: #{tpu_custom_call.1} parent=79 // pred_check
          %p555 = pneg %p121
        $region90: #{tpu_custom_call.1} parent=79 // pred_check_branch
          %557 = sbr.rel (%p555) target = $region92
        $region91: #{tpu_custom_call.1} parent=79 // pred_region
          %558 = dma.done [#allocation6], 16
        $region92: #{tpu_custom_call.1} parent=79 // pred_fallthru
          _
        // Predicated region
        $region93: #{tpu_custom_call.1} parent=79 // pred_check
          %p559 = pneg %p142
        $region94: #{tpu_custom_call.1} parent=79 // pred_check_branch
          %561 = sbr.rel (%p559) target = $region96
        $region95: #{tpu_custom_call.1} parent=79 // pred_region
          %562 = dma.done [#allocation9], 16
        $region96: #{tpu_custom_call.1} parent=79 // pred_fallthru
          _
        // Predicated region
        $region97: #{tpu_custom_call.1} parent=79 // pred_check
          %p563 = pneg %p163
        $region98: #{tpu_custom_call.1} parent=79 // pred_check_branch
          %565 = sbr.rel (%p563) target = $region100
        $region99: #{tpu_custom_call.1} parent=79 // pred_region
          %566 = dma.done [#allocation9], 256
        $region100: #{tpu_custom_call.1} parent=79 // pred_fallthru
          _
        // Predicated region
        $region101: #{tpu_custom_call.1} parent=79 // pred_check
          %p567 = pneg %p184
        $region102: #{tpu_custom_call.1} parent=79 // pred_check_branch
          %569 = sbr.rel (%p567) target = $region104
        $region103: #{tpu_custom_call.1} parent=79 // pred_region
          %570 = dma.done [#allocation12], 16
        $region104: #{tpu_custom_call.1} parent=79 // pred_fallthru
          _
        // Predicated region
        $region105: #{tpu_custom_call.1} parent=79 // pred_check
          %p571 = pneg %p205
        $region106: #{tpu_custom_call.1} parent=79 // pred_check_branch
          %573 = sbr.rel (%p571) target = $region108
        $region107: #{tpu_custom_call.1} parent=79 // pred_region
          %574 = dma.done [#allocation12], 256
        $region108: #{tpu_custom_call.1} parent=79 // pred_fallthru
          _
        // Predicated region
        $region109: #{tpu_custom_call.1} parent=79 // pred_check
          %p575 = pneg %p226
        $region110: #{tpu_custom_call.1} parent=79 // pred_check_branch
          %577 = sbr.rel (%p575) target = $region112
        $region111: #{tpu_custom_call.1} parent=79 // pred_region
          %578 = dma.done [#allocation15], 16
        $region112: #{tpu_custom_call.1} parent=79 // pred_fallthru
          _
        // Predicated region
        $region113: #{tpu_custom_call.1} parent=79 // pred_check
          %p579 = pneg %p247
        $region114: #{tpu_custom_call.1} parent=79 // pred_check_branch
          %581 = sbr.rel (%p579) target = $region116
        $region115: #{tpu_custom_call.1} parent=79 // pred_region
          %582 = dma.done [#allocation15], 256
        $region116: #{tpu_custom_call.1} parent=79 // pred_fallthru
          _
        // Predicated region
        $region117: #{tpu_custom_call.1} parent=79 // pred_check
          %p583 = pneg %p268
        $region118: #{tpu_custom_call.1} parent=79 // pred_check_branch
          %585 = sbr.rel (%p583) target = $region120
        $region119: #{tpu_custom_call.1} parent=79 // pred_region
          %586 = dma.done [#allocation18], 16
        $region120: #{tpu_custom_call.1} parent=79 // pred_fallthru
          _
        %s587 = sand.u32 %s45, 1
        %s588 = scalar_lea.sflag [#allocation3], %s587
        %s589 = sand.u32 %s45, 1
        %s590 = smul.addr %s589, 8
        %s591 = scalar_lea.vmem [#allocation2], %s590
        %p592 = pneg %p58
        %p593 = pneg %p55
        %p594 = pneg %p79
        %p595 = pneg %p76
        %p596 = pneg %p100
        %p597 = pneg %p97
        %p598 = pneg %p121
        %p599 = pneg %p118
        %p600 = pneg %p142
        %p601 = pneg %p139
        %p602 = pneg %p163
        %p603 = pneg %p160
        %p604 = pneg %p184
        %p605 = pneg %p181
        %p606 = pneg %p205
        %p607 = pneg %p202
        %p608 = pneg %p226
        %p609 = pneg %p223
        %p610 = pneg %p247
        %p611 = pneg %p244
        %p612 = pneg %p268
        %p613 = pneg %p265
        %p614 = pneg %p289
        %p615 = pneg %p286
        %p616 = pneg %p310
        %p617 = pneg %p307
        %p618 = pneg %p331
        %p619 = pneg %p328
        %p620 = pneg %p352
        %p621 = pneg %p349
        %p622 = pneg %p378
        %p623 = pneg %p375
        %s624 = sand.u32 %s365, 1
        %s625 = scalar_lea.sflag [#allocation4], %s624
        %s626 = sand.u32 %s365, 1
        %s627 = smul.addr %s626, 8
        %s628 = scalar_lea.vmem [#allocation19], %s627
        %v630 = vld [vmem:[%s546] sm:$0xff]
        %v631 = vld [vmem:[%s13] sm:$0xf]
        %v632 = vunpack.c.l.bf16 %v631
        %v633 = vld [vmem:[%s14] sm:$0xf]
        %v634 = vunpack.c.l.bf16 %v633
        %v635 = vld [vmem:[%s1] sm:$0x1]
        %v636 = vld [vmem:[#allocation5] sm:$0x1]
        %vm637 = vcmask 261120
        %v638 = vsel %vm637, %v630, 0.0
        %639 = vadd.xlane.f32.xlu0 %v638
        %v640 = vpop.xlane.xlu0 %639
        %v641 = vrcp.pop 32.0
        %v642 = vmul.f32 %v640, %v641
        %v643 = vmul.f32 %v630, %v630
        %v644 = vsel %vm637, %v643, 0.0
        %645 = vadd.xlane.f32.xlu0 %v644
        %v646 = vpop.xlane.xlu0 %645
        %v647 = vmul.f32 %v646, %v641
        %v648 = vmul.f32 %v642, %v642
        %v649 = vsub.f32 %v647, %v648
        %v650 = vmax.f32 %v649, 0.0
        %v651 = vsub.f32 %v630, %v642
        %v652 = vadd.f32 %v650, 1e-05
        %v653 = vrsqrt.pop %v652
        %v654 = vmul.f32 %v651, %v653
        %v656 = vlaneseq
        %v657 = vshrl.u32 %v656, 7
        %v658 = vsub.s32 0, %v657
        %v659 = vrot.slane %v635, %v658
        %v661 = vmul.f32 %v654, %v659
        %v663 = vlaneseq
        %v664 = vshrl.u32 %v663, 7
        %v665 = vsub.s32 0, %v664
        %v666 = vrot.slane %v636, %v665
        %v668 = vadd.f32 %v661, %v666
        %v669 = vpack.c.bf16 %v668, %v668
        %v670 = vld [vmem:[#allocation10] sm:$0xf]
        %v671 = vld [vmem:[#allocation10 + $0x4] sm:$0xf]
        %v672 = vld [vmem:[#allocation10 + $0x8] sm:$0xf]
        %v673 = vld [vmem:[#allocation10 + $0xc] sm:$0xf]
        %v674 = vld [vmem:[#allocation11] sm:$0x1]
        %v676 = vlaneseq
        %v677 = vshrl.u32 %v676, 7
        %v678 = vsub.s32 0, %v677
        %v679 = vrot.slane %v674, %v678
        %v685 = vunpack.c.l.b16 %v670
        %v686 = vunpack.c.l.b16 %v671
        %v687 = vunpack.c.l.b16 %v672
        %v688 = vunpack.c.l.b16 %v673
        %v689 = vpack.c.b16 %v686, %v685
        %v690 = vpack.c.b16 %v688, %v687
        %v694 = vsel %vm637, %v669, 0
        %696 = vmatprep.subr.bf16.mxu0 0
        %697 = vmatpush1.bf16.msra.mxu0 %v689
        %698 = vmatprep.subr.bf16.mxu0 0
        %699 = vmatpush1.bf16.msra.mxu0 %v690
        %700 = vmatprep.subr.bf16.mxu0 0
        %701 = vmatpush1.bf16.msra.mxu0 0
        %702 = vmatprep.subr.bf16.mxu0 0
        %703 = vmatpush1.bf16.msra.mxu0 0
        %704 = vmatprep.subr.bf16.mxu0 0
        %705 = vmatpush1.bf16.msra.mxu0 0
        %706 = vmatprep.subr.bf16.mxu0 0
        %707 = vmatpush1.bf16.msra.mxu0 0
        %708 = vmatprep.subr.bf16.mxu0 0
        %709 = vmatpush1.bf16.msra.mxu0 0
        %710 = vmatprep.subr.bf16.mxu0 0
        %711 = vmatpush1.bf16.msra.mxu0 0
        %712 = vmatprep.subr.bf16.mxu0 0
        %713 = vmatpush1.bf16.msra.mxu0 0
        %714 = vmatprep.subr.bf16.mxu0 0
        %715 = vmatpush1.bf16.msra.mxu0 0
        %716 = vmatprep.subr.bf16.mxu0 0
        %717 = vmatpush1.bf16.msra.mxu0 0
        %718 = vmatprep.subr.bf16.mxu0 0
        %719 = vmatpush1.bf16.msra.mxu0 0
        %720 = vmatprep.subr.bf16.mxu0 0
        %721 = vmatpush1.bf16.msra.mxu0 0
        %722 = vmatprep.subr.bf16.mxu0 0
        %723 = vmatpush1.bf16.msra.mxu0 0
        %724 = vmatprep.subr.bf16.mxu0 0
        %725 = vmatpush1.bf16.msra.mxu0 0
        %726 = vmatprep.subr.bf16.mxu0 0
        %727 = vmatpush1.bf16.msra.mxu0 0
        %728 = vmatprep.mubr.bf16.mxu0 0
        %729 = vmatmul.mubr.bf16.gmra.mrb[0].mxu0 %v694
        %v730 = vpop.f32.mrb[0].mxu0
        %v731 = vadd.f32 %v679, %v730
        %v732 = vpop.f32.mrb[0].mxu0
        %v733 = vpop.f32.mrb[0].mxu0
        %v734 = vpop.f32.mrb[0].mxu0
        %735 = vdwg.mxu0
        %737 = vrot.lane.b32.xlu0 %v731, 112
        %v738 = vpop.permute.xlu0 %737
        %740 = vrot.lane.b32.xlu0 %v731, 16
        %v741 = vpop.permute.xlu0 %740
        %vm743 = vcmask 130048
        %v744 = vsel %vm743, %v738, %v741
        %v745 = vmul.f32 %v731, %v632
        %v746 = vmul.f32 %v744, %v634
        %v747 = vadd.f32 %v745, %v746
        %v748 = vmul.f32 %v747, 0.17677669
        %v749 = vpack.c.bf16 %v748, %v748
        %750 = vrot.lane.b32.xlu0 %v731, 80
        %v751 = vpop.permute.xlu0 %750
        %v753 = vsel %vm743, %v751, %v738
        %755 = vrot.lane.b32.xlu0 %v632, 32
        %v756 = vpop.permute.xlu0 %755
        %v758 = vmul.f32 %v731, %v756
        %v759 = vmul.f32 %v753, %v634
        %761 = vrot.lane.b32.xlu0 %v759, 32
        %v762 = vpop.permute.xlu0 %761
        %v764 = vadd.f32 %v758, %v762
        %v765 = vpack.c.bf16 %v764, %v764
        %767 = vrot.lane.b32.xlu0 %v765, 96
        %v768 = vpop.permute.xlu0 %767
        %v770 = vsel %vm637, %v749, 0
        %v773 = vsel %vm637, %v768, 0
        %775 = vmatprep.subr.bf16.mxu0 0
        %776 = vmatpush1.bf16.xpose.msra.mxu0 %v773
        %777 = vmatprep.subr.bf16.mxu0 0
        %778 = vmatpush1.bf16.xpose.msra.mxu0 0
        %779 = vmatprep.subr.bf16.mxu0 0
        %780 = vmatpush1.bf16.xpose.msra.mxu0 0
        %781 = vmatprep.subr.bf16.mxu0 0
        %782 = vmatpush1.bf16.xpose.msra.mxu0 0
        %783 = vmatprep.subr.bf16.mxu0 0
        %784 = vmatpush1.bf16.xpose.msra.mxu0 0
        %785 = vmatprep.subr.bf16.mxu0 0
        %786 = vmatpush1.bf16.xpose.msra.mxu0 0
        %787 = vmatprep.subr.bf16.mxu0 0
        %788 = vmatpush1.bf16.xpose.msra.mxu0 0
        %789 = vmatprep.subr.bf16.mxu0 0
        %790 = vmatpush1.bf16.xpose.msra.mxu0 0
        %791 = vmatprep.subr.bf16.mxu0 0
        %792 = vmatpush1.bf16.xpose.msra.mxu0 0
        %793 = vmatprep.subr.bf16.mxu0 0
        %794 = vmatpush1.bf16.xpose.msra.mxu0 0
        %795 = vmatprep.subr.bf16.mxu0 0
        %796 = vmatpush1.bf16.xpose.msra.mxu0 0
        %797 = vmatprep.subr.bf16.mxu0 0
        %798 = vmatpush1.bf16.xpose.msra.mxu0 0
        %799 = vmatprep.subr.bf16.mxu0 0
        %800 = vmatpush1.bf16.xpose.msra.mxu0 0
        %801 = vmatprep.subr.bf16.mxu0 0
        %802 = vmatpush1.bf16.xpose.msra.mxu0 0
        %803 = vmatprep.subr.bf16.mxu0 0
        %804 = vmatpush1.bf16.xpose.msra.mxu0 0
        %805 = vmatprep.subr.bf16.mxu0 0
        %806 = vmatpush1.bf16.xpose.msra.mxu0 0
        %807 = vmatprep.mubr.bf16.mxu0 0
        %808 = vmatmul.mubr.bf16.gmra.mrb[0].mxu0 %v770
        %v809 = vpop.f32.mrb[0].mxu0
        %v810 = vadd.f32 0.0, %v809
        %v811 = vpop.f32.mrb[0].mxu0
        %v812 = vpop.f32.mrb[0].mxu0
        %v813 = vpop.f32.mrb[0].mxu0
        %814 = vdwg.mxu0
        %vm815 = vcmask 64512
        %v816 = vsel %vm815, %v810, -inf
        %817 = vmax.xlane.f32.xlu0 %v816
        %v818 = vpop.xlane.xlu0 %817
        %v819 = vsub.f32 %v810, %v818
        %v820 = vmul.f32 %v819, 1.442695
        %v821 = vpow.pop %v820
        %v822 = vsel %vm815, %v821, 0.0
        %823 = vadd.xlane.f32.xlu0 %v822
        %v824 = vpop.xlane.xlu0 %823
        %v825 = vrcp.pop %v824
        %v826 = vmul.f32 %v821, %v825
        %v827 = vpack.c.bf16 %v826, %v826
        %v828 = vpack.c.bf16 %v731, %v731
        %830 = vrot.lane.b32.xlu0 %v828, 64
        %v831 = vpop.permute.xlu0 %830
        %v833 = vsel %vm815, %v827, 0
        %vm835 = vcmask 1043456
        %v837 = vsel %vm835, %v831, 0
        %839 = vmatprep.subr.bf16.mxu0 0
        %840 = vmatpush1.bf16.msra.mxu0 %v837
        %841 = vmatprep.subr.bf16.mxu0 0
        %842 = vmatpush1.bf16.msra.mxu0 0
        %843 = vmatprep.subr.bf16.mxu0 0
        %844 = vmatpush1.bf16.msra.mxu0 0
        %845 = vmatprep.subr.bf16.mxu0 0
        %846 = vmatpush1.bf16.msra.mxu0 0
        %847 = vmatprep.subr.bf16.mxu0 0
        %848 = vmatpush1.bf16.msra.mxu0 0
        %849 = vmatprep.subr.bf16.mxu0 0
        %850 = vmatpush1.bf16.msra.mxu0 0
        %851 = vmatprep.subr.bf16.mxu0 0
        %852 = vmatpush1.bf16.msra.mxu0 0
        %853 = vmatprep.subr.bf16.mxu0 0
        %854 = vmatpush1.bf16.msra.mxu0 0
        %855 = vmatprep.subr.bf16.mxu0 0
        %856 = vmatpush1.bf16.msra.mxu0 0
        %857 = vmatprep.subr.bf16.mxu0 0
        %858 = vmatpush1.bf16.msra.mxu0 0
        %859 = vmatprep.subr.bf16.mxu0 0
        %860 = vmatpush1.bf16.msra.mxu0 0
        %861 = vmatprep.subr.bf16.mxu0 0
        %862 = vmatpush1.bf16.msra.mxu0 0
        %863 = vmatprep.subr.bf16.mxu0 0
        %864 = vmatpush1.bf16.msra.mxu0 0
        %865 = vmatprep.subr.bf16.mxu0 0
        %866 = vmatpush1.bf16.msra.mxu0 0
        %867 = vmatprep.subr.bf16.mxu0 0
        %868 = vmatpush1.bf16.msra.mxu0 0
        %869 = vmatprep.subr.bf16.mxu0 0
        %870 = vmatpush1.bf16.msra.mxu0 0
        %871 = vmatprep.mubr.bf16.mxu0 0
        %872 = vmatmul.mubr.bf16.gmra.mrb[0].mxu0 %v833
        %v873 = vpop.f32.mrb[0].mxu0
        %v874 = vadd.f32 0.0, %v873
        %v875 = vpop.f32.mrb[0].mxu0
        %v876 = vpop.f32.mrb[0].mxu0
        %v877 = vpop.f32.mrb[0].mxu0
        %878 = vdwg.mxu0
        %v879 = vpack.c.bf16 %v874, %v874
        %v880 = vld [vmem:[#allocation13] sm:$0xf]
        %v881 = vld [vmem:[#allocation13 + $0x4] sm:$0xf]
        %v882 = vld [vmem:[#allocation13 + $0x8] sm:$0xf]
        %v883 = vld [vmem:[#allocation13 + $0xc] sm:$0xf]
        %v884 = vld [vmem:[#allocation14] sm:$0x1]
        %v886 = vlaneseq
        %v887 = vshrl.u32 %v886, 7
        %v888 = vsub.s32 0, %v887
        %v889 = vrot.slane %v884, %v888
        %v895 = vunpack.c.l.b16 %v880
        %v896 = vunpack.c.l.b16 %v881
        %v897 = vunpack.c.l.b16 %v882
        %v898 = vunpack.c.l.b16 %v883
        %v899 = vpack.c.b16 %v896, %v895
        %v900 = vpack.c.b16 %v898, %v897
        %v904 = vsel %vm637, %v879, 0
        %906 = vmatprep.subr.bf16.mxu0 0
        %907 = vmatpush1.bf16.msra.mxu0 %v899
        %908 = vmatprep.subr.bf16.mxu0 0
        %909 = vmatpush1.bf16.msra.mxu0 %v900
        %910 = vmatprep.subr.bf16.mxu0 0
        %911 = vmatpush1.bf16.msra.mxu0 0
        %912 = vmatprep.subr.bf16.mxu0 0
        %913 = vmatpush1.bf16.msra.mxu0 0
        %914 = vmatprep.subr.bf16.mxu0 0
        %915 = vmatpush1.bf16.msra.mxu0 0
        %916 = vmatprep.subr.bf16.mxu0 0
        %917 = vmatpush1.bf16.msra.mxu0 0
        %918 = vmatprep.subr.bf16.mxu0 0
        %919 = vmatpush1.bf16.msra.mxu0 0
        %920 = vmatprep.subr.bf16.mxu0 0
        %921 = vmatpush1.bf16.msra.mxu0 0
        %922 = vmatprep.subr.bf16.mxu0 0
        %923 = vmatpush1.bf16.msra.mxu0 0
        %924 = vmatprep.subr.bf16.mxu0 0
        %925 = vmatpush1.bf16.msra.mxu0 0
        %926 = vmatprep.subr.bf16.mxu0 0
        %927 = vmatpush1.bf16.msra.mxu0 0
        %928 = vmatprep.subr.bf16.mxu0 0
        %929 = vmatpush1.bf16.msra.mxu0 0
        %930 = vmatprep.subr.bf16.mxu0 0
        %931 = vmatpush1.bf16.msra.mxu0 0
        %932 = vmatprep.subr.bf16.mxu0 0
        %933 = vmatpush1.bf16.msra.mxu0 0
        %934 = vmatprep.subr.bf16.mxu0 0
        %935 = vmatpush1.bf16.msra.mxu0 0
        %936 = vmatprep.subr.bf16.mxu0 0
        %937 = vmatpush1.bf16.msra.mxu0 0
        %938 = vmatprep.mubr.bf16.mxu0 0
        %939 = vmatmul.mubr.bf16.gmra.mrb[0].mxu0 %v904
        %v940 = vpop.f32.mrb[0].mxu0
        %v941 = vadd.f32 %v889, %v940
        %v942 = vpop.f32.mrb[0].mxu0
        %v943 = vpop.f32.mrb[0].mxu0
        %v944 = vpop.f32.mrb[0].mxu0
        %945 = vdwg.mxu0
        %v946 = vadd.f32 %v630, %v941
        %v947 = vld [vmem:[#allocation7] sm:$0x1]
        %v948 = vld [vmem:[#allocation8] sm:$0x1]
        %v949 = vsel %vm637, %v946, 0.0
        %950 = vadd.xlane.f32.xlu0 %v949
        %v951 = vpop.xlane.xlu0 %950
        %v952 = vmul.f32 %v951, %v641
        %v953 = vmul.f32 %v946, %v946
        %v954 = vsel %vm637, %v953, 0.0
        %955 = vadd.xlane.f32.xlu0 %v954
        %v956 = vpop.xlane.xlu0 %955
        %v957 = vmul.f32 %v956, %v641
        %v958 = vmul.f32 %v952, %v952
        %v959 = vsub.f32 %v957, %v958
        %v960 = vmax.f32 %v959, 0.0
        %v961 = vsub.f32 %v946, %v952
        %v962 = vadd.f32 %v960, 1e-05
        %v963 = vrsqrt.pop %v962
        %v964 = vmul.f32 %v961, %v963
        %v966 = vlaneseq
        %v967 = vshrl.u32 %v966, 7
        %v968 = vsub.s32 0, %v967
        %v969 = vrot.slane %v947, %v968
        %v971 = vmul.f32 %v964, %v969
        %v973 = vlaneseq
        %v974 = vshrl.u32 %v973, 7
        %v975 = vsub.s32 0, %v974
        %v976 = vrot.slane %v948, %v975
        %v978 = vadd.f32 %v971, %v976
        %v979 = vpack.c.bf16 %v978, %v978
        %v980 = vld [vmem:[#allocation16] sm:$0xf]
        %v981 = vld [vmem:[#allocation16 + $0x4] sm:$0xf]
        %v982 = vld [vmem:[#allocation16 + $0x8] sm:$0xf]
        %v983 = vld [vmem:[#allocation16 + $0xc] sm:$0xf]
        %v984 = vld [vmem:[#allocation17] sm:$0x1]
        %v986 = vlaneseq
        %v987 = vshrl.u32 %v986, 7
        %v988 = vsub.s32 0, %v987
        %v989 = vrot.slane %v984, %v988
        %v995 = vunpack.c.l.b16 %v980
        %v996 = vunpack.c.l.b16 %v981
        %v997 = vunpack.c.l.b16 %v982
        %v998 = vunpack.c.l.b16 %v983
        %v999 = vpack.c.b16 %v996, %v995
        %v1000 = vpack.c.b16 %v998, %v997
        %v1004 = vsel %vm637, %v979, 0
        %1006 = vmatprep.subr.bf16.mxu0 0
        %1007 = vmatpush1.bf16.msra.mxu0 %v999
        %1008 = vmatprep.subr.bf16.mxu0 0
        %1009 = vmatpush1.bf16.msra.mxu0 %v1000
        %1010 = vmatprep.subr.bf16.mxu0 0
        %1011 = vmatpush1.bf16.msra.mxu0 0
        %1012 = vmatprep.subr.bf16.mxu0 0
        %1013 = vmatpush1.bf16.msra.mxu0 0
        %1014 = vmatprep.subr.bf16.mxu0 0
        %1015 = vmatpush1.bf16.msra.mxu0 0
        %1016 = vmatprep.subr.bf16.mxu0 0
        %1017 = vmatpush1.bf16.msra.mxu0 0
        %1018 = vmatprep.subr.bf16.mxu0 0
        %1019 = vmatpush1.bf16.msra.mxu0 0
        %1020 = vmatprep.subr.bf16.mxu0 0
        %1021 = vmatpush1.bf16.msra.mxu0 0
        %1022 = vmatprep.subr.bf16.mxu0 0
        %1023 = vmatpush1.bf16.msra.mxu0 0
        %1024 = vmatprep.subr.bf16.mxu0 0
        %1025 = vmatpush1.bf16.msra.mxu0 0
        %1026 = vmatprep.subr.bf16.mxu0 0
        %1027 = vmatpush1.bf16.msra.mxu0 0
        %1028 = vmatprep.subr.bf16.mxu0 0
        %1029 = vmatpush1.bf16.msra.mxu0 0
        %1030 = vmatprep.subr.bf16.mxu0 0
        %1031 = vmatpush1.bf16.msra.mxu0 0
        %1032 = vmatprep.subr.bf16.mxu0 0
        %1033 = vmatpush1.bf16.msra.mxu0 0
        %1034 = vmatprep.subr.bf16.mxu0 0
        %1035 = vmatpush1.bf16.msra.mxu0 0
        %1036 = vmatprep.subr.bf16.mxu0 0
        %1037 = vmatpush1.bf16.msra.mxu0 0
        %1038 = vmatprep.mubr.bf16.mxu0 0
        %1039 = vmatmul.mubr.bf16.gmra.mrb[0].mxu0 %v1004
        %v1040 = vpop.f32.mrb[0].mxu0
        %v1041 = vadd.f32 %v989, %v1040
        %v1042 = vpop.f32.mrb[0].mxu0
        %v1043 = vpop.f32.mrb[0].mxu0
        %v1044 = vpop.f32.mrb[0].mxu0
        %1045 = vdwg.mxu0
        %v1046 = vpack.c.bf16 %v1041, %v1041
        %v1047 = vld [vmem:[%s11] sm:$0xf]
        %v1048 = vld [vmem:[%s11 + $0x4] sm:$0xf]
        %v1049 = vld [vmem:[%s11 + $0x8] sm:$0xf]
        %v1050 = vld [vmem:[%s11 + $0xc] sm:$0xf]
        %v1051 = vld [vmem:[%s11 + $0x10] sm:$0xf]
        %v1052 = vld [vmem:[%s11 + $0x14] sm:$0xf]
        %v1053 = vld [vmem:[%s11 + $0x18] sm:$0xf]
        %v1054 = vld [vmem:[%s11 + $0x1c] sm:$0xf]
        %v1055 = vld [vmem:[%s12] sm:$0x1]
        %v1057 = vlaneseq
        %v1058 = vshrl.u32 %v1057, 7
        %v1059 = vsub.s32 0, %v1058
        %v1060 = vrot.slane %v1055, %v1059
        %v1070 = vunpack.c.l.b16 %v1047
        %v1071 = vunpack.c.l.b16 %v1048
        %v1072 = vunpack.c.l.b16 %v1049
        %v1073 = vunpack.c.l.b16 %v1050
        %v1074 = vunpack.c.l.b16 %v1051
        %v1075 = vunpack.c.l.b16 %v1052
        %v1076 = vunpack.c.l.b16 %v1053
        %v1077 = vunpack.c.l.b16 %v1054
        %v1078 = vpack.c.b16 %v1071, %v1070
        %v1079 = vpack.c.b16 %v1073, %v1072
        %v1080 = vpack.c.b16 %v1075, %v1074
        %v1081 = vpack.c.b16 %v1077, %v1076
        %vm1086 = vcmask 523264
        %v1088 = vsel %vm1086, %v1046, 0
        %1090 = vmatprep.subr.bf16.mxu0 0
        %1091 = vmatpush1.bf16.msra.mxu0 %v1078
        %1092 = vmatprep.subr.bf16.mxu0 0
        %1093 = vmatpush1.bf16.msra.mxu0 %v1079
        %1094 = vmatprep.subr.bf16.mxu0 0
        %1095 = vmatpush1.bf16.msra.mxu0 %v1080
        %1096 = vmatprep.subr.bf16.mxu0 0
        %1097 = vmatpush1.bf16.msra.mxu0 %v1081
        %1098 = vmatprep.subr.bf16.mxu0 0
        %1099 = vmatpush1.bf16.msra.mxu0 0
        %1100 = vmatprep.subr.bf16.mxu0 0
        %1101 = vmatpush1.bf16.msra.mxu0 0
        %1102 = vmatprep.subr.bf16.mxu0 0
        %1103 = vmatpush1.bf16.msra.mxu0 0
        %1104 = vmatprep.subr.bf16.mxu0 0
        %1105 = vmatpush1.bf16.msra.mxu0 0
        %1106 = vmatprep.subr.bf16.mxu0 0
        %1107 = vmatpush1.bf16.msra.mxu0 0
        %1108 = vmatprep.subr.bf16.mxu0 0
        %1109 = vmatpush1.bf16.msra.mxu0 0
        %1110 = vmatprep.subr.bf16.mxu0 0
        %1111 = vmatpush1.bf16.msra.mxu0 0
        %1112 = vmatprep.subr.bf16.mxu0 0
        %1113 = vmatpush1.bf16.msra.mxu0 0
        %1114 = vmatprep.subr.bf16.mxu0 0
        %1115 = vmatpush1.bf16.msra.mxu0 0
        %1116 = vmatprep.subr.bf16.mxu0 0
        %1117 = vmatpush1.bf16.msra.mxu0 0
        %1118 = vmatprep.subr.bf16.mxu0 0
        %1119 = vmatpush1.bf16.msra.mxu0 0
        %1120 = vmatprep.subr.bf16.mxu0 0
        %1121 = vmatpush1.bf16.msra.mxu0 0
        %1122 = vmatprep.mubr.bf16.mxu0 0
        %1123 = vmatmul.mubr.bf16.gmra.mrb[0].mxu0 %v1088
        %v1124 = vpop.f32.mrb[0].mxu0
        %v1125 = vadd.f32 %v1060, %v1124
        %v1126 = vpop.f32.mrb[0].mxu0
        %v1127 = vpop.f32.mrb[0].mxu0
        %v1128 = vpop.f32.mrb[0].mxu0
        %1129 = vdwg.mxu0
        %v1130 = vxor.u32 %v1125, 2147483648
        %v1131 = vmul.f32 %v1130, 1.442695
        %v1132 = vpow.pop %v1131
        %v1133 = vadd.f32 %v1132, 1.0
        %v1134 = vrcp.pop %v1133
        %v1135 = vmul.f32 1.0, %v1134
        %v1136 = vmul.f32 %v1125, %v1135
        %1138 = vrot.lane.b32.xlu0 %v1125, 96
        %v1139 = vpop.permute.xlu0 %1138
        %v1141 = vmul.f32 %v1136, %v1139
        %v1142 = vadd.f32 %v946, %v1141
        %1143 = vst.msk [vmem:[%s628] sm:$0xff] %vm637, %v1142
        %s1144 = sand.u32 %s365, 1
        %s1145 = scalar_lea.sflag [#allocation4], %s1144
        %s1146 = sand.u32 %s365, 1
        %s1147 = smul.addr %s1146, 8
        %s1148 = scalar_lea.vmem [#allocation19], %s1147
        // Predicated region
        $region121: #{tpu_custom_call.1} parent=79 // pred_check
          %p1149 = pneg %p375
        $region122: #{tpu_custom_call.1} parent=79 // pred_check_branch
          %1151 = sbr.rel (%p1149) target = $region124
        $region123: #{tpu_custom_call.1} parent=79 // pred_region
          %s1153 = ssub.s32 128, 128
          %1154 = vsyncadd %s1145, %s1153
          %s1155 = smul.addr %s37, 128
          %s1156 = scalar_lea.hbm %s15, %s1155
          %s1158 = sshll.u32 %s1148, 4
          %s1159 = int_to_ptr.vmem [resolvable:$true] %s1158
          %1161 = dma.vmem_to_hbm [thread:$0]  %s1159, 128, %s1156, %s1145
        $region124: #{tpu_custom_call.1} parent=79 // pred_fallthru
          _
      $region80: #{tpu_custom_call.1} parent=5 // pred_fallthru
        _
      %p1162 = scmp.le.s32.totalorder 2, %s32
      // Predicated region
      $region125: #{tpu_custom_call.1} parent=5 // pred_check
        %p1163 = pneg %p1162
      $region126: #{tpu_custom_call.1} parent=5 // pred_check_branch
        %1165 = sbr.rel (%p1163) target = $region128
      $region127: #{tpu_custom_call.1} parent=5 // pred_region
        %s1166 = ssub.s32 %s32, 2
        // Predicated region
        $region129: #{tpu_custom_call.1} parent=127 // pred_check
          %p1167 = pneg %p381
        $region130: #{tpu_custom_call.1} parent=127 // pred_check_branch
          %1169 = sbr.rel (%p1167) target = $region132
        $region131: #{tpu_custom_call.1} parent=127 // pred_region
          %s1170 = sand.u32 %s366, 1
          %s1171 = scalar_lea.sflag [#allocation4], %s1170
          %s1172 = sand.u32 %s366, 1
          %s1173 = smul.addr %s1172, 8
          %s1174 = scalar_lea.vmem [#allocation19], %s1173
          %1175 = dma.done %s1171, 128
        $region132: #{tpu_custom_call.1} parent=127 // pred_fallthru
          _
      $region128: #{tpu_custom_call.1} parent=5 // pred_fallthru
        _
    $region6: #{tpu_custom_call.1} parent=1 // loop_footer
      %s36 = sadd.s32 1, %s32
    $region7: #{tpu_custom_call.1} parent=1 // loop_footer_branch
      %31 = sbr.rel target = $region3
    $region8: #{tpu_custom_call.1} parent=1 // loop_exit
      _
    %1176 = vsyncpa [#allocation3], 1
    %s1177 = scalar_lea.sflag [#allocation3], 1
    %1178 = vsyncpa %s1177, 1
    %1179 = vsyncpa [#allocation6], 1
    %1180 = vsyncpa [#allocation9], 1
    %1181 = vsyncpa [#allocation12], 1
    %1182 = vsyncpa [#allocation15], 1
    %1183 = vsyncpa [#allocation18], 1
    %1184 = vsyncpa [#allocation4], 1
    %s1185 = scalar_lea.sflag [#allocation4], 1
    %1186 = vsyncpa %s1185, 1

</llo_original>
